<compile_context>
chip_gen: v7x
topology: tpu7x:2x2x1
jax: 0.10.0
libtpu: 0.0.40
codegen_flags: <defaults>
</compile_context>

<pallas_src>
import jax
import jax.numpy as jnp
from jax import lax
from jax.experimental import pallas as pl
from jax.experimental.pallas import tpu as pltpu

LATENT_DIM = 128
NEG_SLOPE = 0.01          # nn.LeakyReLU default
BN_EPS = 1e-5             # nn.BatchNorm default eps

_CT_CH = [(64, 32), (32, 16), (16, 8), (8, 4), (4, 1)]   # (Cin, Cout) / stage


def _final_block_perm():
    """Source block j encodes (kh4,kh3,kh2,kh1,h1[2 bits]); stride-2 transposed
    convs put each new kh at the LSB of H, so the destination block index is
    H>>1 = h1*16 + kh1*8 + kh2*4 + kh3*2 + kh4 (a field-reversal of j)."""
    perm = []
    for j in range(64):
        kh4, kh3 = (j >> 5) & 1, (j >> 4) & 1
        kh2, kh1 = (j >> 3) & 1, (j >> 2) & 1
        h1 = j & 3
        perm.append(h1 * 16 + kh1 * 8 + kh2 * 4 + kh3 * 2 + kh4)
    return tuple(perm)


_FINAL_PERM = _final_block_perm()


# ------------------------------ fused kernel --------------------------------

def _generator_kernel(x_ref, lw_ref, lb_ref, g0_ref, b0_ref,
                      bdw_ref, cg_ref, cbt_ref, msel_ref,
                      bd5w_ref, b5_ref, o_ref, sa_ref, sb_ref):
    B = x_ref.shape[0]

    # ---- Linear(128,512) + BatchNorm1d (batch stats) + LeakyReLU -----------
    # Linear weight columns are pre-permuted to (h1, w1, c) order so the
    # "view(-1, 64, 4, 2)" below is a pure row re-packing.
    y = jnp.dot(x_ref[...], lw_ref[...],
                preferred_element_type=jnp.float32) + lb_ref[...]
    inv_b = 1.0 / float(B)
    m1 = jnp.sum(y, axis=0, keepdims=True) * inv_b
    m2 = jnp.sum(y * y, axis=0, keepdims=True) * inv_b
    var = jnp.maximum(m2 - m1 * m1, 0.0)               # one-pass, guarded
    scale = lax.rsqrt(var + BN_EPS) * g0_ref[...]
    shift = b0_ref[...] - m1 * scale
    y = y * scale + shift
    y = jnp.where(y >= 0.0, y, NEG_SLOPE * y)

    # view(-1, 64, 4, 2): repack (B,512) -> (4B,128); rows=(h1,b), cols=(w1,c).
    for h in range(4):
        sa_ref[h * B:(h + 1) * B, :] = y[:, h * 128:(h + 1) * 128]

    # ---- 4 x [ConvTranspose2d(2x2,s=2) + BatchNorm2d + LeakyReLU] ----------
    # Each stage: one (R,128)x(128,256) block-diagonal matmul (kh=0 in cols
    # [0:128], kh=1 in cols [128:256]); rows double every stage.
    slabs = (sa_ref, sb_ref)
    cur = 0
    R = 4 * B
    for i in range(4):
        src, dst = slabs[cur], slabs[1 - cur]
        a = src[0:R, :]
        yy = jnp.dot(a, bdw_ref[i], preferred_element_type=jnp.float32)
        y0, y1 = yy[:, :128], yy[:, 128:]
        # (ConvT bias omitted for stages 0-3: a per-channel constant before
        #  training-mode BN is exactly cancelled by the mean subtraction.)

        # BatchNorm2d: per-channel batch stats; channel c lives at every
        # column ≡ c (mod Cout), so the grouped reduction is one tiny matmul
        # against a precomputed 0/1 selection matrix.
        inv_n = 1.0 / float(2 * R * (4 << i))          # n = B * H_out * W_out
        cs1 = (jnp.sum(y0, axis=0, keepdims=True)
               + jnp.sum(y1, axis=0, keepdims=True)) * inv_n
        cs2 = (jnp.sum(y0 * y0, axis=0, keepdims=True)
               + jnp.sum(y1 * y1, axis=0, keepdims=True)) * inv_n
        msel = msel_ref[i]
        s1 = jnp.dot(cs1, msel, preferred_element_type=jnp.float32)
        s2 = jnp.dot(cs2, msel, preferred_element_type=jnp.float32)
        var = jnp.maximum(s2 - s1 * s1, 0.0)
        scale = lax.rsqrt(var + BN_EPS) * cg_ref[i]
        shift = cbt_ref[i] - s1 * scale
        z0 = y0 * scale + shift
        z1 = y1 * scale + shift
        z0 = jnp.where(z0 >= 0.0, z0, NEG_SLOPE * z0)
        z1 = jnp.where(z1 >= 0.0, z1, NEG_SLOPE * z1)
        dst[0:R, :] = z0            # kh=0 half
        dst[R:2 * R, :] = z1        # kh=1 half
        cur = 1 - cur
        R *= 2

    # ---- final ConvTranspose2d(4 -> 1) + Tanh, lane-dense (64B,128) --------
    # Output columns = (kh5, W); rows = (H>>1)*B + b via permuted aligned
    # (B,128) block stores.  Processed in 8 chunks to bound live vregs.
    src = slabs[cur]                # (64B,128), blocks = (kh4,kh3,kh2,kh1,h1)
    w5 = bd5w_ref[...]
    bias5 = b5_ref[...]
    for c in range(8):
        a_chunk = src[c * 8 * B:(c + 1) * 8 * B, :]
        yf = jnp.tanh(jnp.dot(a_chunk, w5,
                              preferred_element_type=jnp.float32) + bias5)
        for t in range(8):
            dest = _FINAL_PERM[c * 8 + t]
            o_ref[dest * B:(dest + 1) * B, :] = yf[t * B:(t + 1) * B, :]


def _full_spec(shape):
    return pl.BlockSpec(shape, lambda i: (0,) * len(shape))


def generator_forward(x, kp):
    """x: (B, 128) float32 -> (B, 1, 128, 64) float32 (NCHW, like PyTorch)."""
    B = x.shape[0]
    assert B % 8 == 0, "batch must be a multiple of 8 (sublane alignment)"

    inputs = (x, kp["lin_w"], kp["lin_b"], kp["bn0_g"], kp["bn0_b"],
              kp["bdw"], kp["cgamma"], kp["cbeta"], kp["msel"],
              kp["bd5w"], kp["b5"])

    out2d = pl.pallas_call(
        _generator_kernel,
        grid=(1,),
        in_specs=[_full_spec(a.shape) for a in inputs],
        out_specs=_full_spec((64 * B, 128)),
        out_shape=jax.ShapeDtypeStruct((64 * B, 128), jnp.float32),
        scratch_shapes=[pltpu.VMEM((64 * B, 128), jnp.float32),
                        pltpu.VMEM((32 * B, 128), jnp.float32)],
        compiler_params=pltpu.CompilerParams(
            dimension_semantics=("arbitrary",),
            vmem_limit_bytes=32 * 1024 * 1024),
        # TODO(synk): for large B, row-tile stages 3-4 / the final stage and
        # shard across both v7x TensorCores with a cross-core BN-stat
        # reduction; optionally cast matmul operands to bf16 after validating
        # tolerance.
    )(*inputs)

    # Kernel output: row = (H>>1)*B + b, col = (H&1)*64 + W.  Only a small
    # per-batch block transpose remains (b is innermost within each B-row
    # block inside the kernel).
    # TODO(synk): absorb this (64,B)->(B,64) block transpose into the kernel
    # with sublane-strided destination stores once strided stores are safe.
    return (out2d.reshape(64, B, 2, 64).transpose(1, 0, 2, 3)
            .reshape(B, 1, 128, 64))


# ---------------------- parameter preparation (layout) ----------------------

def _block_diag_ct(w, S):
    """Block-diagonal matrices for ConvTranspose2d(k=2, s=2) in the packed
    (W-group, channel) column layout.
    w: (Cin, Cout, 2, 2).  Returns (2, S*Cin, 2*S*Cout) with
    bd[kh, s*Cin+ci, (2*s+kw)*Cout+co] = w[ci, co, kh, kw]."""
    cin, cout = w.shape[0], w.shape[1]
    s_idx = jnp.arange(S)
    t_idx = jnp.arange(2 * S)
    mats = []
    for kh in range(2):
        acc = jnp.zeros((S, cin, 2 * S, cout), jnp.float32)
        for kw in range(2):
            sel = (t_idx[None, :] == (2 * s_idx[:, None] + kw)).astype(jnp.float32)
            acc = acc + jnp.einsum("st,io->sito", sel, w[:, :, kh, kw])
        mats.append(acc.reshape(S * cin, 2 * S * cout))
    return jnp.stack(mats, axis=0)


def prepare_params(params):
    """Re-layout PyTorch-style parameters into the fused-kernel layout."""
    kp = {}

    # Linear / BN1d: permute the 512 features from (c, h1, w1) to (h1, w1, c)
    # so that view(-1, 64, 4, 2) becomes a pure row re-packing in the kernel.
    def perm512(v):
        return v.reshape(-1, 64, 4, 2).transpose(0, 2, 3, 1).reshape(-1, 512)

    kp["lin_w"] = (params["lin_w"].reshape(LATENT_DIM, 64, 4, 2)
                   .transpose(0, 2, 3, 1).reshape(LATENT_DIM, 512))
    kp["lin_b"] = perm512(params["lin_b"])
    kp["bn0_g"] = perm512(params["bn0_g"])
    kp["bn0_b"] = perm512(params["bn0_b"])

    bdw, cg, cbt, msel = [], [], [], []
    for i, (cin, cout) in enumerate(_CT_CH):
        S = 2 ** (i + 1)                              # W-groups packed in cols
        blk = _block_diag_ct(params[f"ct{i}_w"], S)   # (2, 128, 2*S*cout)
        if i < 4:
            # Fuse the two kh matmuls into one 256-wide RHS (N-dim concat).
            bdw.append(jnp.concatenate([blk[0], blk[1]], axis=-1))   # (128,256)
            cg.append(jnp.tile(params[f"bn{i+1}_g"].reshape(-1), 2 * S).reshape(1, -1))
            cbt.append(jnp.tile(params[f"bn{i+1}_b"].reshape(-1), 2 * S).reshape(1, -1))
            cols = jnp.arange(2 * S * cout)
            msel.append(((cols[:, None] % cout) == (cols[None, :] % cout))
                        .astype(jnp.float32))
            # ConvT bias dropped here: exactly cancelled by training-mode BN.
        else:
            kp["bd5w"] = jnp.concatenate([blk[0], blk[1]], axis=-1)  # (128,128)
            bias_col = jnp.tile(params[f"ct{i}_b"], 2 * S).reshape(1, -1)
            kp["b5"] = jnp.concatenate([bias_col, bias_col], axis=-1)  # (1,128)

    kp["bdw"] = jnp.stack(bdw, axis=0)               # (4, 128, 256)
    kp["cgamma"] = jnp.stack(cg, axis=0)             # (4, 1, 128)
    kp["cbeta"] = jnp.stack(cbt, axis=0)             # (4, 1, 128)
    kp["msel"] = jnp.stack(msel, axis=0)             # (4, 128, 128)
    return kp


# ------------------------- reference + parameters ----------------------------

def init_params(key):
    params = {}
    k = key
    k, sub = jax.random.split(k)
    params["lin_w"] = 0.05 * jax.random.normal(sub, (LATENT_DIM, 512), jnp.float32)
    k, sub = jax.random.split(k)
    params["lin_b"] = 0.05 * jax.random.normal(sub, (1, 512), jnp.float32)
    for i, c in enumerate([512, 32, 16, 8, 4]):
        k, sub = jax.random.split(k)
        params[f"bn{i}_g"] = 1.0 + 0.1 * jax.random.normal(sub, (1, c), jnp.float32)
        k, sub = jax.random.split(k)
        params[f"bn{i}_b"] = 0.1 * jax.random.normal(sub, (1, c), jnp.float32)
    for i, (cin, cout) in enumerate(_CT_CH):
        k, sub = jax.random.split(k)
        params[f"ct{i}_w"] = 0.1 * jax.random.normal(sub, (cin, cout, 2, 2), jnp.float32)
        k, sub = jax.random.split(k)
        params[f"ct{i}_b"] = 0.1 * jax.random.normal(sub, (cout,), jnp.float32)
    return params


def reference_forward(x, params):
    """Plain-JAX mirror of the PyTorch module (training-mode BatchNorm)."""
    h = jnp.dot(x, params["lin_w"]) + params["lin_b"]
    mean = jnp.mean(h, axis=0, keepdims=True)
    var = jnp.mean((h - mean) ** 2, axis=0, keepdims=True)
    h = (h - mean) * lax.rsqrt(var + BN_EPS) * params["bn0_g"] + params["bn0_b"]
    h = jnp.where(h >= 0.0, h, NEG_SLOPE * h)
    h = h.reshape(-1, 64, 4, 2)
    for i, _ in enumerate(_CT_CH):
        w = params[f"ct{i}_w"]
        b = params[f"ct{i}_b"]
        y = jnp.einsum("bchw,cokl->bohkwl", h, w)
        Bb, Co, H, _, W, _ = y.shape
        y = y.reshape(Bb, Co, 2 * H, 2 * W) + b[None, :, None, None]
        if i < 4:
            mean = jnp.mean(y, axis=(0, 2, 3), keepdims=True)
            var = jnp.mean((y - mean) ** 2, axis=(0, 2, 3), keepdims=True)
            y = (y - mean) * lax.rsqrt(var + BN_EPS)
            y = (y * params[f"bn{i+1}_g"].reshape(1, -1, 1, 1)
                 + params[f"bn{i+1}_b"].reshape(1, -1, 1, 1))
            y = jnp.where(y >= 0.0, y, NEG_SLOPE * y)
        else:
            y = jnp.tanh(y)
        h = y
    return h


if __name__ == "__main__":
    key = jax.random.PRNGKey(0)
    pkey, xkey = jax.random.split(key)
    params = init_params(pkey)

    B = 8                                     # multiple of 8 (sublane aligned)
    x = jax.random.normal(xkey, (B, LATENT_DIM), jnp.float32)

    kparams = prepare_params(params)          # one-time layout plumbing
    out = jax.block_until_ready(jax.jit(generator_forward)(x, kparams))

    assert out.shape == (B, 1, 128, 64), out.shape
    assert bool(jnp.all(jnp.isfinite(out)))
    assert bool(jnp.all(jnp.abs(out) <= 1.0 + 1e-6))      # tanh range

    ref = jax.jit(reference_forward)(x, params)
    max_err = float(jnp.max(jnp.abs(out - ref)))
    assert max_err < 2e-3, f"max |pallas - reference| = {max_err}"

    print("KERNEL_OK")
</pallas_src>

<mosaic_0001>
module attributes {stable_mosaic.version = 11 : i64} {
  func.func @_generator_kernel(%arg0: i32, %arg1: memref<8x128xf32, #tpu.memory_space<vmem>>, %arg2: memref<128x512xf32, #tpu.memory_space<vmem>>, %arg3: memref<1x512xf32, #tpu.memory_space<vmem>>, %arg4: memref<1x512xf32, #tpu.memory_space<vmem>>, %arg5: memref<1x512xf32, #tpu.memory_space<vmem>>, %arg6: memref<4x128x256xf32, #tpu.memory_space<vmem>>, %arg7: memref<4x1x128xf32, #tpu.memory_space<vmem>>, %arg8: memref<4x1x128xf32, #tpu.memory_space<vmem>>, %arg9: memref<4x128x128xf32, #tpu.memory_space<vmem>>, %arg10: memref<128x128xf32, #tpu.memory_space<vmem>>, %arg11: memref<1x128xf32, #tpu.memory_space<vmem>>, %arg12: memref<512x128xf32, #tpu.memory_space<vmem>>, %arg13: memref<512x128xf32, #tpu.memory_space<vmem>>, %arg14: memref<256x128xf32, #tpu.memory_space<vmem>>) attributes {dimension_semantics = [#tpu.dimension_semantics<arbitrary>], iteration_bounds = array<i64: 1>, scalar_prefetch = 0 : i64, scratch_operands = 2 : i64, tpu.core_type = #tpu.core_type<tc>, window_params = [{pipeline_mode = #tpu.pipeline_mode<synchronous>, transform_indices = @transform_0, window_bounds = array<i64: 8, 128>}, {pipeline_mode = #tpu.pipeline_mode<synchronous>, transform_indices = @transform_1, window_bounds = array<i64: 128, 512>}, {pipeline_mode = #tpu.pipeline_mode<synchronous>, transform_indices = @transform_2, window_bounds = array<i64: 1, 512>}, {pipeline_mode = #tpu.pipeline_mode<synchronous>, transform_indices = @transform_3, window_bounds = array<i64: 1, 512>}, {pipeline_mode = #tpu.pipeline_mode<synchronous>, transform_indices = @transform_4, window_bounds = array<i64: 1, 512>}, {pipeline_mode = #tpu.pipeline_mode<synchronous>, transform_indices = @transform_5, window_bounds = array<i64: 4, 128, 256>}, {pipeline_mode = #tpu.pipeline_mode<synchronous>, transform_indices = @transform_6, window_bounds = array<i64: 4, 1, 128>}, {pipeline_mode = #tpu.pipeline_mode<synchronous>, transform_indices = @transform_7, window_bounds = array<i64: 4, 1, 128>}, {pipeline_mode = #tpu.pipeline_mode<synchronous>, transform_indices = @transform_8, window_bounds = array<i64: 4, 128, 128>}, {pipeline_mode = #tpu.pipeline_mode<synchronous>, transform_indices = @transform_9, window_bounds = array<i64: 128, 128>}, {pipeline_mode = #tpu.pipeline_mode<synchronous>, transform_indices = @transform_10, window_bounds = array<i64: 1, 128>}, {pipeline_mode = #tpu.pipeline_mode<synchronous>, transform_indices = @transform_11, window_bounds = array<i64: 512, 128>}]} {
    %c0 = arith.constant 0 : index
    %c0_0 = arith.constant 0 : index
    %0 = vector.load %arg1[%c0, %c0_0] : memref<8x128xf32, #tpu.memory_space<vmem>>, vector<8x128xf32>
    %c0_1 = arith.constant 0 : index
    %c0_2 = arith.constant 0 : index
    %1 = vector.load %arg2[%c0_1, %c0_2] : memref<128x512xf32, #tpu.memory_space<vmem>>, vector<128x512xf32>
    %cst = arith.constant dense<0.000000e+00> : vector<8x512xf32>
    %2 = tpu.matmul %0, %1, %cst {dimension_numbers = #tpu.dot_dimension_numbers<[1], [0], [0], [1], [0, 0, 1, 1], [], []>} : vector<8x128xf32>, vector<128x512xf32>, vector<8x512xf32> -> vector<8x512xf32>
    %c0_3 = arith.constant 0 : index
    %c0_4 = arith.constant 0 : index
    %3 = vector.load %arg3[%c0_3, %c0_4] : memref<1x512xf32, #tpu.memory_space<vmem>>, vector<1x512xf32>
    %4 = vector.broadcast %3 : vector<1x512xf32> to vector<8x512xf32>
    %5 = arith.addf %2, %4 : vector<8x512xf32>
    %cst_5 = arith.constant dense<0.000000e+00> : vector<512xf32>
    %6 = vector.multi_reduction <add>, %5, %cst_5 [0] : vector<8x512xf32> to vector<512xf32>
    %7 = vector.shape_cast %6 : vector<512xf32> to vector<1x512xf32>
    %cst_6 = arith.constant 1.250000e-01 : f32
    %8 = vector.broadcast %cst_6 : f32 to vector<1x512xf32>
    %9 = arith.mulf %7, %8 : vector<1x512xf32>
    %10 = arith.mulf %5, %5 : vector<8x512xf32>
    %cst_7 = arith.constant dense<0.000000e+00> : vector<512xf32>
    %11 = vector.multi_reduction <add>, %10, %cst_7 [0] : vector<8x512xf32> to vector<512xf32>
    %12 = vector.shape_cast %11 : vector<512xf32> to vector<1x512xf32>
    %cst_8 = arith.constant 1.250000e-01 : f32
    %13 = vector.broadcast %cst_8 : f32 to vector<1x512xf32>
    %14 = arith.mulf %12, %13 : vector<1x512xf32>
    %15 = arith.mulf %9, %9 : vector<1x512xf32>
    %16 = arith.subf %14, %15 : vector<1x512xf32>
    %cst_9 = arith.constant 0.000000e+00 : f32
    %17 = vector.broadcast %cst_9 : f32 to vector<1x512xf32>
    %18 = arith.maximumf %16, %17 : vector<1x512xf32>
    %cst_10 = arith.constant 9.99999974E-6 : f32
    %19 = vector.broadcast %cst_10 : f32 to vector<1x512xf32>
    %20 = arith.addf %18, %19 : vector<1x512xf32>
    %21 = math.rsqrt %20 : vector<1x512xf32>
    %c0_11 = arith.constant 0 : index
    %c0_12 = arith.constant 0 : index
    %22 = vector.load %arg4[%c0_11, %c0_12] : memref<1x512xf32, #tpu.memory_space<vmem>>, vector<1x512xf32>
    %23 = arith.mulf %21, %22 : vector<1x512xf32>
    %c0_13 = arith.constant 0 : index
    %c0_14 = arith.constant 0 : index
    %24 = vector.load %arg5[%c0_13, %c0_14] : memref<1x512xf32, #tpu.memory_space<vmem>>, vector<1x512xf32>
    %25 = arith.mulf %9, %23 : vector<1x512xf32>
    %26 = arith.subf %24, %25 : vector<1x512xf32>
    %27 = vector.broadcast %23 : vector<1x512xf32> to vector<8x512xf32>
    %28 = arith.mulf %5, %27 : vector<8x512xf32>
    %29 = vector.broadcast %26 : vector<1x512xf32> to vector<8x512xf32>
    %30 = arith.addf %28, %29 : vector<8x512xf32>
    %cst_15 = arith.constant 0.000000e+00 : f32
    %31 = vector.broadcast %cst_15 : f32 to vector<8x512xf32>
    %32 = arith.cmpf oge, %30, %31 : vector<8x512xf32>
    %cst_16 = arith.constant 0.00999999977 : f32
    %33 = vector.broadcast %cst_16 : f32 to vector<8x512xf32>
    %34 = arith.mulf %33, %30 : vector<8x512xf32>
    %35 = arith.select %32, %30, %34 : vector<8x512xi1>, vector<8x512xf32>
    %36 = vector.extract_strided_slice %35 {offsets = [0, 0], sizes = [8, 128], strides = [1, 1]} : vector<8x512xf32> to vector<8x128xf32>
    %c0_17 = arith.constant 0 : index
    %c0_18 = arith.constant 0 : index
    %37 = vector.load %arg13[%c0_17, %c0_18] : memref<512x128xf32, #tpu.memory_space<vmem>>, vector<8x128xf32>
    tpu.vector_store %arg13[%c0_17, %c0_18], %36 {strides = array<i32>} : memref<512x128xf32, #tpu.memory_space<vmem>>, vector<8x128xf32>,
    %38 = vector.extract_strided_slice %35 {offsets = [0, 128], sizes = [8, 128], strides = [1, 1]} : vector<8x512xf32> to vector<8x128xf32>
    %c8 = arith.constant 8 : index
    %c0_19 = arith.constant 0 : index
    %39 = vector.load %arg13[%c8, %c0_19] : memref<512x128xf32, #tpu.memory_space<vmem>>, vector<8x128xf32>
    tpu.vector_store %arg13[%c8, %c0_19], %38 {strides = array<i32>} : memref<512x128xf32, #tpu.memory_space<vmem>>, vector<8x128xf32>,
    %40 = vector.extract_strided_slice %35 {offsets = [0, 256], sizes = [8, 128], strides = [1, 1]} : vector<8x512xf32> to vector<8x128xf32>
    %c16 = arith.constant 16 : index
    %c0_20 = arith.constant 0 : index
    %41 = vector.load %arg13[%c16, %c0_20] : memref<512x128xf32, #tpu.memory_space<vmem>>, vector<8x128xf32>
    tpu.vector_store %arg13[%c16, %c0_20], %40 {strides = array<i32>} : memref<512x128xf32, #tpu.memory_space<vmem>>, vector<8x128xf32>,
    %42 = vector.extract_strided_slice %35 {offsets = [0, 384], sizes = [8, 128], strides = [1, 1]} : vector<8x512xf32> to vector<8x128xf32>
    %c24 = arith.constant 24 : index
    %c0_21 = arith.constant 0 : index
    %43 = vector.load %arg13[%c24, %c0_21] : memref<512x128xf32, #tpu.memory_space<vmem>>, vector<8x128xf32>
    tpu.vector_store %arg13[%c24, %c0_21], %42 {strides = array<i32>} : memref<512x128xf32, #tpu.memory_space<vmem>>, vector<8x128xf32>,
    %c0_22 = arith.constant 0 : index
    %c0_23 = arith.constant 0 : index
    %44 = vector.load %arg13[%c0_22, %c0_23] : memref<512x128xf32, #tpu.memory_space<vmem>>, vector<32x128xf32>
    %c0_24 = arith.constant 0 : index
    %c0_25 = arith.constant 0 : index
    %c0_26 = arith.constant 0 : index
    %45 = vector.load %arg6[%c0_24, %c0_25, %c0_26] : memref<4x128x256xf32, #tpu.memory_space<vmem>>, vector<1x128x256xf32>
    %46 = vector.shape_cast %45 : vector<1x128x256xf32> to vector<128x256xf32>
    %cst_27 = arith.constant dense<0.000000e+00> : vector<32x256xf32>
    %47 = tpu.matmul %44, %46, %cst_27 {dimension_numbers = #tpu.dot_dimension_numbers<[1], [0], [0], [1], [0, 0, 1, 1], [], []>} : vector<32x128xf32>, vector<128x256xf32>, vector<32x256xf32> -> vector<32x256xf32>
    %48 = vector.extract_strided_slice %47 {offsets = [0, 0], sizes = [32, 128], strides = [1, 1]} : vector<32x256xf32> to vector<32x128xf32>
    %49 = vector.extract_strided_slice %47 {offsets = [0, 128], sizes = [32, 128], strides = [1, 1]} : vector<32x256xf32> to vector<32x128xf32>
    %cst_28 = arith.constant dense<0.000000e+00> : vector<128xf32>
    %50 = vector.multi_reduction <add>, %48, %cst_28 [0] : vector<32x128xf32> to vector<128xf32>
    %51 = vector.shape_cast %50 : vector<128xf32> to vector<1x128xf32>
    %cst_29 = arith.constant dense<0.000000e+00> : vector<128xf32>
    %52 = vector.multi_reduction <add>, %49, %cst_29 [0] : vector<32x128xf32> to vector<128xf32>
    %53 = vector.shape_cast %52 : vector<128xf32> to vector<1x128xf32>
    %54 = arith.addf %51, %53 : vector<1x128xf32>
    %cst_30 = arith.constant 3.906250e-03 : f32
    %55 = vector.broadcast %cst_30 : f32 to vector<1x128xf32>
    %56 = arith.mulf %54, %55 : vector<1x128xf32>
    %57 = arith.mulf %48, %48 : vector<32x128xf32>
    %cst_31 = arith.constant dense<0.000000e+00> : vector<128xf32>
    %58 = vector.multi_reduction <add>, %57, %cst_31 [0] : vector<32x128xf32> to vector<128xf32>
    %59 = vector.shape_cast %58 : vector<128xf32> to vector<1x128xf32>
    %60 = arith.mulf %49, %49 : vector<32x128xf32>
    %cst_32 = arith.constant dense<0.000000e+00> : vector<128xf32>
    %61 = vector.multi_reduction <add>, %60, %cst_32 [0] : vector<32x128xf32> to vector<128xf32>
    %62 = vector.shape_cast %61 : vector<128xf32> to vector<1x128xf32>
    %63 = arith.addf %59, %62 : vector<1x128xf32>
    %cst_33 = arith.constant 3.906250e-03 : f32
    %64 = vector.broadcast %cst_33 : f32 to vector<1x128xf32>
    %65 = arith.mulf %63, %64 : vector<1x128xf32>
    %c0_34 = arith.constant 0 : index
    %c0_35 = arith.constant 0 : index
    %c0_36 = arith.constant 0 : index
    %66 = vector.load %arg9[%c0_34, %c0_35, %c0_36] : memref<4x128x128xf32, #tpu.memory_space<vmem>>, vector<1x128x128xf32>
    %67 = vector.shape_cast %66 : vector<1x128x128xf32> to vector<128x128xf32>
    %cst_37 = arith.constant dense<0.000000e+00> : vector<1x128xf32>
    %68 = tpu.matmul %56, %67, %cst_37 {dimension_numbers = #tpu.dot_dimension_numbers<[1], [0], [0], [1], [0, 0, 1, 1], [], []>} : vector<1x128xf32>, vector<128x128xf32>, vector<1x128xf32> -> vector<1x128xf32>
    %cst_38 = arith.constant dense<0.000000e+00> : vector<1x128xf32>
    %69 = tpu.matmul %65, %67, %cst_38 {dimension_numbers = #tpu.dot_dimension_numbers<[1], [0], [0], [1], [0, 0, 1, 1], [], []>} : vector<1x128xf32>, vector<128x128xf32>, vector<1x128xf32> -> vector<1x128xf32>
    %70 = arith.mulf %68, %68 : vector<1x128xf32>
    %71 = arith.subf %69, %70 : vector<1x128xf32>
    %cst_39 = arith.constant 0.000000e+00 : f32
    %72 = vector.broadcast %cst_39 : f32 to vector<1x128xf32>
    %73 = arith.maximumf %71, %72 : vector<1x128xf32>
    %cst_40 = arith.constant 9.99999974E-6 : f32
    %74 = vector.broadcast %cst_40 : f32 to vector<1x128xf32>
    %75 = arith.addf %73, %74 : vector<1x128xf32>
    %76 = math.rsqrt %75 : vector<1x128xf32>
    %c0_41 = arith.constant 0 : index
    %c0_42 = arith.constant 0 : index
    %c0_43 = arith.constant 0 : index
    %77 = vector.load %arg7[%c0_41, %c0_42, %c0_43] : memref<4x1x128xf32, #tpu.memory_space<vmem>>, vector<1x1x128xf32>
    %78 = vector.shape_cast %77 : vector<1x1x128xf32> to vector<1x128xf32>
    %79 = arith.mulf %76, %78 : vector<1x128xf32>
    %c0_44 = arith.constant 0 : index
    %c0_45 = arith.constant 0 : index
    %c0_46 = arith.constant 0 : index
    %80 = vector.load %arg8[%c0_44, %c0_45, %c0_46] : memref<4x1x128xf32, #tpu.memory_space<vmem>>, vector<1x1x128xf32>
    %81 = vector.shape_cast %80 : vector<1x1x128xf32> to vector<1x128xf32>
    %82 = arith.mulf %68, %79 : vector<1x128xf32>
    %83 = arith.subf %81, %82 : vector<1x128xf32>
    %84 = vector.broadcast %79 : vector<1x128xf32> to vector<32x128xf32>
    %85 = arith.mulf %48, %84 : vector<32x128xf32>
    %86 = vector.broadcast %83 : vector<1x128xf32> to vector<32x128xf32>
    %87 = arith.addf %85, %86 : vector<32x128xf32>
    %88 = vector.broadcast %79 : vector<1x128xf32> to vector<32x128xf32>
    %89 = arith.mulf %49, %88 : vector<32x128xf32>
    %90 = vector.broadcast %83 : vector<1x128xf32> to vector<32x128xf32>
    %91 = arith.addf %89, %90 : vector<32x128xf32>
    %cst_47 = arith.constant 0.000000e+00 : f32
    %92 = vector.broadcast %cst_47 : f32 to vector<32x128xf32>
    %93 = arith.cmpf oge, %87, %92 : vector<32x128xf32>
    %cst_48 = arith.constant 0.00999999977 : f32
    %94 = vector.broadcast %cst_48 : f32 to vector<32x128xf32>
    %95 = arith.mulf %94, %87 : vector<32x128xf32>
    %96 = arith.select %93, %87, %95 : vector<32x128xi1>, vector<32x128xf32>
    %cst_49 = arith.constant 0.000000e+00 : f32
    %97 = vector.broadcast %cst_49 : f32 to vector<32x128xf32>
    %98 = arith.cmpf oge, %91, %97 : vector<32x128xf32>
    %cst_50 = arith.constant 0.00999999977 : f32
    %99 = vector.broadcast %cst_50 : f32 to vector<32x128xf32>
    %100 = arith.mulf %99, %91 : vector<32x128xf32>
    %101 = arith.select %98, %91, %100 : vector<32x128xi1>, vector<32x128xf32>
    %c0_51 = arith.constant 0 : index
    %c0_52 = arith.constant 0 : index
    %102 = vector.load %arg14[%c0_51, %c0_52] : memref<256x128xf32, #tpu.memory_space<vmem>>, vector<32x128xf32>
    tpu.vector_store %arg14[%c0_51, %c0_52], %96 {strides = array<i32>} : memref<256x128xf32, #tpu.memory_space<vmem>>, vector<32x128xf32>,
    %c32 = arith.constant 32 : index
    %c0_53 = arith.constant 0 : index
    %103 = vector.load %arg14[%c32, %c0_53] : memref<256x128xf32, #tpu.memory_space<vmem>>, vector<32x128xf32>
    tpu.vector_store %arg14[%c32, %c0_53], %101 {strides = array<i32>} : memref<256x128xf32, #tpu.memory_space<vmem>>, vector<32x128xf32>,
    %c0_54 = arith.constant 0 : index
    %c0_55 = arith.constant 0 : index
    %104 = vector.load %arg14[%c0_54, %c0_55] : memref<256x128xf32, #tpu.memory_space<vmem>>, vector<64x128xf32>
    %c1 = arith.constant 1 : index
    %c0_56 = arith.constant 0 : index
    %c0_57 = arith.constant 0 : index
    %105 = vector.load %arg6[%c1, %c0_56, %c0_57] : memref<4x128x256xf32, #tpu.memory_space<vmem>>, vector<1x128x256xf32>
    %106 = vector.shape_cast %105 : vector<1x128x256xf32> to vector<128x256xf32>
    %cst_58 = arith.constant dense<0.000000e+00> : vector<64x256xf32>
    %107 = tpu.matmul %104, %106, %cst_58 {dimension_numbers = #tpu.dot_dimension_numbers<[1], [0], [0], [1], [0, 0, 1, 1], [], []>} : vector<64x128xf32>, vector<128x256xf32>, vector<64x256xf32> -> vector<64x256xf32>
    %108 = vector.extract_strided_slice %107 {offsets = [0, 0], sizes = [64, 128], strides = [1, 1]} : vector<64x256xf32> to vector<64x128xf32>
    %109 = vector.extract_strided_slice %107 {offsets = [0, 128], sizes = [64, 128], strides = [1, 1]} : vector<64x256xf32> to vector<64x128xf32>
    %cst_59 = arith.constant dense<0.000000e+00> : vector<128xf32>
    %110 = vector.multi_reduction <add>, %108, %cst_59 [0] : vector<64x128xf32> to vector<128xf32>
    %111 = vector.shape_cast %110 : vector<128xf32> to vector<1x128xf32>
    %cst_60 = arith.constant dense<0.000000e+00> : vector<128xf32>
    %112 = vector.multi_reduction <add>, %109, %cst_60 [0] : vector<64x128xf32> to vector<128xf32>
    %113 = vector.shape_cast %112 : vector<128xf32> to vector<1x128xf32>
    %114 = arith.addf %111, %113 : vector<1x128xf32>
    %cst_61 = arith.constant 9.765625E-4 : f32
    %115 = vector.broadcast %cst_61 : f32 to vector<1x128xf32>
    %116 = arith.mulf %114, %115 : vector<1x128xf32>
    %117 = arith.mulf %108, %108 : vector<64x128xf32>
    %cst_62 = arith.constant dense<0.000000e+00> : vector<128xf32>
    %118 = vector.multi_reduction <add>, %117, %cst_62 [0] : vector<64x128xf32> to vector<128xf32>
    %119 = vector.shape_cast %118 : vector<128xf32> to vector<1x128xf32>
    %120 = arith.mulf %109, %109 : vector<64x128xf32>
    %cst_63 = arith.constant dense<0.000000e+00> : vector<128xf32>
    %121 = vector.multi_reduction <add>, %120, %cst_63 [0] : vector<64x128xf32> to vector<128xf32>
    %122 = vector.shape_cast %121 : vector<128xf32> to vector<1x128xf32>
    %123 = arith.addf %119, %122 : vector<1x128xf32>
    %cst_64 = arith.constant 9.765625E-4 : f32
    %124 = vector.broadcast %cst_64 : f32 to vector<1x128xf32>
    %125 = arith.mulf %123, %124 : vector<1x128xf32>
    %c1_65 = arith.constant 1 : index
    %c0_66 = arith.constant 0 : index
    %c0_67 = arith.constant 0 : index
    %126 = vector.load %arg9[%c1_65, %c0_66, %c0_67] : memref<4x128x128xf32, #tpu.memory_space<vmem>>, vector<1x128x128xf32>
    %127 = vector.shape_cast %126 : vector<1x128x128xf32> to vector<128x128xf32>
    %cst_68 = arith.constant dense<0.000000e+00> : vector<1x128xf32>
    %128 = tpu.matmul %116, %127, %cst_68 {dimension_numbers = #tpu.dot_dimension_numbers<[1], [0], [0], [1], [0, 0, 1, 1], [], []>} : vector<1x128xf32>, vector<128x128xf32>, vector<1x128xf32> -> vector<1x128xf32>
    %cst_69 = arith.constant dense<0.000000e+00> : vector<1x128xf32>
    %129 = tpu.matmul %125, %127, %cst_69 {dimension_numbers = #tpu.dot_dimension_numbers<[1], [0], [0], [1], [0, 0, 1, 1], [], []>} : vector<1x128xf32>, vector<128x128xf32>, vector<1x128xf32> -> vector<1x128xf32>
    %130 = arith.mulf %128, %128 : vector<1x128xf32>
    %131 = arith.subf %129, %130 : vector<1x128xf32>
    %cst_70 = arith.constant 0.000000e+00 : f32
    %132 = vector.broadcast %cst_70 : f32 to vector<1x128xf32>
    %133 = arith.maximumf %131, %132 : vector<1x128xf32>
    %cst_71 = arith.constant 9.99999974E-6 : f32
    %134 = vector.broadcast %cst_71 : f32 to vector<1x128xf32>
    %135 = arith.addf %133, %134 : vector<1x128xf32>
    %136 = math.rsqrt %135 : vector<1x128xf32>
    %c1_72 = arith.constant 1 : index
    %c0_73 = arith.constant 0 : index
    %c0_74 = arith.constant 0 : index
    %137 = vector.load %arg7[%c1_72, %c0_73, %c0_74] : memref<4x1x128xf32, #tpu.memory_space<vmem>>, vector<1x1x128xf32>
    %138 = vector.shape_cast %137 : vector<1x1x128xf32> to vector<1x128xf32>
    %139 = arith.mulf %136, %138 : vector<1x128xf32>
    %c1_75 = arith.constant 1 : index
    %c0_76 = arith.constant 0 : index
    %c0_77 = arith.constant 0 : index
    %140 = vector.load %arg8[%c1_75, %c0_76, %c0_77] : memref<4x1x128xf32, #tpu.memory_space<vmem>>, vector<1x1x128xf32>
    %141 = vector.shape_cast %140 : vector<1x1x128xf32> to vector<1x128xf32>
    %142 = arith.mulf %128, %139 : vector<1x128xf32>
    %143 = arith.subf %141, %142 : vector<1x128xf32>
    %144 = vector.broadcast %139 : vector<1x128xf32> to vector<64x128xf32>
    %145 = arith.mulf %108, %144 : vector<64x128xf32>
    %146 = vector.broadcast %143 : vector<1x128xf32> to vector<64x128xf32>
    %147 = arith.addf %145, %146 : vector<64x128xf32>
    %148 = vector.broadcast %139 : vector<1x128xf32> to vector<64x128xf32>
    %149 = arith.mulf %109, %148 : vector<64x128xf32>
    %150 = vector.broadcast %143 : vector<1x128xf32> to vector<64x128xf32>
    %151 = arith.addf %149, %150 : vector<64x128xf32>
    %cst_78 = arith.constant 0.000000e+00 : f32
    %152 = vector.broadcast %cst_78 : f32 to vector<64x128xf32>
    %153 = arith.cmpf oge, %147, %152 : vector<64x128xf32>
    %cst_79 = arith.constant 0.00999999977 : f32
    %154 = vector.broadcast %cst_79 : f32 to vector<64x128xf32>
    %155 = arith.mulf %154, %147 : vector<64x128xf32>
    %156 = arith.select %153, %147, %155 : vector<64x128xi1>, vector<64x128xf32>
    %cst_80 = arith.constant 0.000000e+00 : f32
    %157 = vector.broadcast %cst_80 : f32 to vector<64x128xf32>
    %158 = arith.cmpf oge, %151, %157 : vector<64x128xf32>
    %cst_81 = arith.constant 0.00999999977 : f32
    %159 = vector.broadcast %cst_81 : f32 to vector<64x128xf32>
    %160 = arith.mulf %159, %151 : vector<64x128xf32>
    %161 = arith.select %158, %151, %160 : vector<64x128xi1>, vector<64x128xf32>
    %c0_82 = arith.constant 0 : index
    %c0_83 = arith.constant 0 : index
    %162 = vector.load %arg13[%c0_82, %c0_83] : memref<512x128xf32, #tpu.memory_space<vmem>>, vector<64x128xf32>
    tpu.vector_store %arg13[%c0_82, %c0_83], %156 {strides = array<i32>} : memref<512x128xf32, #tpu.memory_space<vmem>>, vector<64x128xf32>,
    %c64 = arith.constant 64 : index
    %c0_84 = arith.constant 0 : index
    %163 = vector.load %arg13[%c64, %c0_84] : memref<512x128xf32, #tpu.memory_space<vmem>>, vector<64x128xf32>
    tpu.vector_store %arg13[%c64, %c0_84], %161 {strides = array<i32>} : memref<512x128xf32, #tpu.memory_space<vmem>>, vector<64x128xf32>,
    %c0_85 = arith.constant 0 : index
    %c0_86 = arith.constant 0 : index
    %164 = vector.load %arg13[%c0_85, %c0_86] : memref<512x128xf32, #tpu.memory_space<vmem>>, vector<128x128xf32>
    %c2 = arith.constant 2 : index
    %c0_87 = arith.constant 0 : index
    %c0_88 = arith.constant 0 : index
    %165 = vector.load %arg6[%c2, %c0_87, %c0_88] : memref<4x128x256xf32, #tpu.memory_space<vmem>>, vector<1x128x256xf32>
    %166 = vector.shape_cast %165 : vector<1x128x256xf32> to vector<128x256xf32>
    %cst_89 = arith.constant dense<0.000000e+00> : vector<128x256xf32>
    %167 = tpu.matmul %164, %166, %cst_89 {dimension_numbers = #tpu.dot_dimension_numbers<[1], [0], [0], [1], [0, 0, 1, 1], [], []>} : vector<128x128xf32>, vector<128x256xf32>, vector<128x256xf32> -> vector<128x256xf32>
    %168 = vector.extract_strided_slice %167 {offsets = [0, 0], sizes = [128, 128], strides = [1, 1]} : vector<128x256xf32> to vector<128x128xf32>
    %169 = vector.extract_strided_slice %167 {offsets = [0, 128], sizes = [128, 128], strides = [1, 1]} : vector<128x256xf32> to vector<128x128xf32>
    %cst_90 = arith.constant dense<0.000000e+00> : vector<128xf32>
    %170 = vector.multi_reduction <add>, %168, %cst_90 [0] : vector<128x128xf32> to vector<128xf32>
    %171 = vector.shape_cast %170 : vector<128xf32> to vector<1x128xf32>
    %cst_91 = arith.constant dense<0.000000e+00> : vector<128xf32>
    %172 = vector.multi_reduction <add>, %169, %cst_91 [0] : vector<128x128xf32> to vector<128xf32>
    %173 = vector.shape_cast %172 : vector<128xf32> to vector<1x128xf32>
    %174 = arith.addf %171, %173 : vector<1x128xf32>
    %cst_92 = arith.constant 2.44140625E-4 : f32
    %175 = vector.broadcast %cst_92 : f32 to vector<1x128xf32>
    %176 = arith.mulf %174, %175 : vector<1x128xf32>
    %177 = arith.mulf %168, %168 : vector<128x128xf32>
    %cst_93 = arith.constant dense<0.000000e+00> : vector<128xf32>
    %178 = vector.multi_reduction <add>, %177, %cst_93 [0] : vector<128x128xf32> to vector<128xf32>
    %179 = vector.shape_cast %178 : vector<128xf32> to vector<1x128xf32>
    %180 = arith.mulf %169, %169 : vector<128x128xf32>
    %cst_94 = arith.constant dense<0.000000e+00> : vector<128xf32>
    %181 = vector.multi_reduction <add>, %180, %cst_94 [0] : vector<128x128xf32> to vector<128xf32>
    %182 = vector.shape_cast %181 : vector<128xf32> to vector<1x128xf32>
    %183 = arith.addf %179, %182 : vector<1x128xf32>
    %cst_95 = arith.constant 2.44140625E-4 : f32
    %184 = vector.broadcast %cst_95 : f32 to vector<1x128xf32>
    %185 = arith.mulf %183, %184 : vector<1x128xf32>
    %c2_96 = arith.constant 2 : index
    %c0_97 = arith.constant 0 : index
    %c0_98 = arith.constant 0 : index
    %186 = vector.load %arg9[%c2_96, %c0_97, %c0_98] : memref<4x128x128xf32, #tpu.memory_space<vmem>>, vector<1x128x128xf32>
    %187 = vector.shape_cast %186 : vector<1x128x128xf32> to vector<128x128xf32>
    %cst_99 = arith.constant dense<0.000000e+00> : vector<1x128xf32>
    %188 = tpu.matmul %176, %187, %cst_99 {dimension_numbers = #tpu.dot_dimension_numbers<[1], [0], [0], [1], [0, 0, 1, 1], [], []>} : vector<1x128xf32>, vector<128x128xf32>, vector<1x128xf32> -> vector<1x128xf32>
    %cst_100 = arith.constant dense<0.000000e+00> : vector<1x128xf32>
    %189 = tpu.matmul %185, %187, %cst_100 {dimension_numbers = #tpu.dot_dimension_numbers<[1], [0], [0], [1], [0, 0, 1, 1], [], []>} : vector<1x128xf32>, vector<128x128xf32>, vector<1x128xf32> -> vector<1x128xf32>
    %190 = arith.mulf %188, %188 : vector<1x128xf32>
    %191 = arith.subf %189, %190 : vector<1x128xf32>
    %cst_101 = arith.constant 0.000000e+00 : f32
    %192 = vector.broadcast %cst_101 : f32 to vector<1x128xf32>
    %193 = arith.maximumf %191, %192 : vector<1x128xf32>
    %cst_102 = arith.constant 9.99999974E-6 : f32
    %194 = vector.broadcast %cst_102 : f32 to vector<1x128xf32>
    %195 = arith.addf %193, %194 : vector<1x128xf32>
    %196 = math.rsqrt %195 : vector<1x128xf32>
    %c2_103 = arith.constant 2 : index
    %c0_104 = arith.constant 0 : index
    %c0_105 = arith.constant 0 : index
    %197 = vector.load %arg7[%c2_103, %c0_104, %c0_105] : memref<4x1x128xf32, #tpu.memory_space<vmem>>, vector<1x1x128xf32>
    %198 = vector.shape_cast %197 : vector<1x1x128xf32> to vector<1x128xf32>
    %199 = arith.mulf %196, %198 : vector<1x128xf32>
    %c2_106 = arith.constant 2 : index
    %c0_107 = arith.constant 0 : index
    %c0_108 = arith.constant 0 : index
    %200 = vector.load %arg8[%c2_106, %c0_107, %c0_108] : memref<4x1x128xf32, #tpu.memory_space<vmem>>, vector<1x1x128xf32>
    %201 = vector.shape_cast %200 : vector<1x1x128xf32> to vector<1x128xf32>
    %202 = arith.mulf %188, %199 : vector<1x128xf32>
    %203 = arith.subf %201, %202 : vector<1x128xf32>
    %204 = vector.broadcast %199 : vector<1x128xf32> to vector<128x128xf32>
    %205 = arith.mulf %168, %204 : vector<128x128xf32>
    %206 = vector.broadcast %203 : vector<1x128xf32> to vector<128x128xf32>
    %207 = arith.addf %205, %206 : vector<128x128xf32>
    %208 = vector.broadcast %199 : vector<1x128xf32> to vector<128x128xf32>
    %209 = arith.mulf %169, %208 : vector<128x128xf32>
    %210 = vector.broadcast %203 : vector<1x128xf32> to vector<128x128xf32>
    %211 = arith.addf %209, %210 : vector<128x128xf32>
    %cst_109 = arith.constant 0.000000e+00 : f32
    %212 = vector.broadcast %cst_109 : f32 to vector<128x128xf32>
    %213 = arith.cmpf oge, %207, %212 : vector<128x128xf32>
    %cst_110 = arith.constant 0.00999999977 : f32
    %214 = vector.broadcast %cst_110 : f32 to vector<128x128xf32>
    %215 = arith.mulf %214, %207 : vector<128x128xf32>
    %216 = arith.select %213, %207, %215 : vector<128x128xi1>, vector<128x128xf32>
    %cst_111 = arith.constant 0.000000e+00 : f32
    %217 = vector.broadcast %cst_111 : f32 to vector<128x128xf32>
    %218 = arith.cmpf oge, %211, %217 : vector<128x128xf32>
    %cst_112 = arith.constant 0.00999999977 : f32
    %219 = vector.broadcast %cst_112 : f32 to vector<128x128xf32>
    %220 = arith.mulf %219, %211 : vector<128x128xf32>
    %221 = arith.select %218, %211, %220 : vector<128x128xi1>, vector<128x128xf32>
    %c0_113 = arith.constant 0 : index
    %c0_114 = arith.constant 0 : index
    %222 = vector.load %arg14[%c0_113, %c0_114] : memref<256x128xf32, #tpu.memory_space<vmem>>, vector<128x128xf32>
    tpu.vector_store %arg14[%c0_113, %c0_114], %216 {strides = array<i32>} : memref<256x128xf32, #tpu.memory_space<vmem>>, vector<128x128xf32>,
    %c128 = arith.constant 128 : index
    %c0_115 = arith.constant 0 : index
    %223 = vector.load %arg14[%c128, %c0_115] : memref<256x128xf32, #tpu.memory_space<vmem>>, vector<128x128xf32>
    tpu.vector_store %arg14[%c128, %c0_115], %221 {strides = array<i32>} : memref<256x128xf32, #tpu.memory_space<vmem>>, vector<128x128xf32>,
    %c0_116 = arith.constant 0 : index
    %c0_117 = arith.constant 0 : index
    %224 = vector.load %arg14[%c0_116, %c0_117] : memref<256x128xf32, #tpu.memory_space<vmem>>, vector<256x128xf32>
    %c3 = arith.constant 3 : index
    %c0_118 = arith.constant 0 : index
    %c0_119 = arith.constant 0 : index
    %225 = vector.load %arg6[%c3, %c0_118, %c0_119] : memref<4x128x256xf32, #tpu.memory_space<vmem>>, vector<1x128x256xf32>
    %226 = vector.shape_cast %225 : vector<1x128x256xf32> to vector<128x256xf32>
    %cst_120 = arith.constant dense<0.000000e+00> : vector<256x256xf32>
    %227 = tpu.matmul %224, %226, %cst_120 {dimension_numbers = #tpu.dot_dimension_numbers<[1], [0], [0], [1], [0, 0, 1, 1], [], []>} : vector<256x128xf32>, vector<128x256xf32>, vector<256x256xf32> -> vector<256x256xf32>
    %228 = vector.extract_strided_slice %227 {offsets = [0, 0], sizes = [256, 128], strides = [1, 1]} : vector<256x256xf32> to vector<256x128xf32>
    %229 = vector.extract_strided_slice %227 {offsets = [0, 128], sizes = [256, 128], strides = [1, 1]} : vector<256x256xf32> to vector<256x128xf32>
    %cst_121 = arith.constant dense<0.000000e+00> : vector<128xf32>
    %230 = vector.multi_reduction <add>, %228, %cst_121 [0] : vector<256x128xf32> to vector<128xf32>
    %231 = vector.shape_cast %230 : vector<128xf32> to vector<1x128xf32>
    %cst_122 = arith.constant dense<0.000000e+00> : vector<128xf32>
    %232 = vector.multi_reduction <add>, %229, %cst_122 [0] : vector<256x128xf32> to vector<128xf32>
    %233 = vector.shape_cast %232 : vector<128xf32> to vector<1x128xf32>
    %234 = arith.addf %231, %233 : vector<1x128xf32>
    %cst_123 = arith.constant 6.10351563E-5 : f32
    %235 = vector.broadcast %cst_123 : f32 to vector<1x128xf32>
    %236 = arith.mulf %234, %235 : vector<1x128xf32>
    %237 = arith.mulf %228, %228 : vector<256x128xf32>
    %cst_124 = arith.constant dense<0.000000e+00> : vector<128xf32>
    %238 = vector.multi_reduction <add>, %237, %cst_124 [0] : vector<256x128xf32> to vector<128xf32>
    %239 = vector.shape_cast %238 : vector<128xf32> to vector<1x128xf32>
    %240 = arith.mulf %229, %229 : vector<256x128xf32>
    %cst_125 = arith.constant dense<0.000000e+00> : vector<128xf32>
    %241 = vector.multi_reduction <add>, %240, %cst_125 [0] : vector<256x128xf32> to vector<128xf32>
    %242 = vector.shape_cast %241 : vector<128xf32> to vector<1x128xf32>
    %243 = arith.addf %239, %242 : vector<1x128xf32>
    %cst_126 = arith.constant 6.10351563E-5 : f32
    %244 = vector.broadcast %cst_126 : f32 to vector<1x128xf32>
    %245 = arith.mulf %243, %244 : vector<1x128xf32>
    %c3_127 = arith.constant 3 : index
    %c0_128 = arith.constant 0 : index
    %c0_129 = arith.constant 0 : index
    %246 = vector.load %arg9[%c3_127, %c0_128, %c0_129] : memref<4x128x128xf32, #tpu.memory_space<vmem>>, vector<1x128x128xf32>
    %247 = vector.shape_cast %246 : vector<1x128x128xf32> to vector<128x128xf32>
    %cst_130 = arith.constant dense<0.000000e+00> : vector<1x128xf32>
    %248 = tpu.matmul %236, %247, %cst_130 {dimension_numbers = #tpu.dot_dimension_numbers<[1], [0], [0], [1], [0, 0, 1, 1], [], []>} : vector<1x128xf32>, vector<128x128xf32>, vector<1x128xf32> -> vector<1x128xf32>
    %cst_131 = arith.constant dense<0.000000e+00> : vector<1x128xf32>
    %249 = tpu.matmul %245, %247, %cst_131 {dimension_numbers = #tpu.dot_dimension_numbers<[1], [0], [0], [1], [0, 0, 1, 1], [], []>} : vector<1x128xf32>, vector<128x128xf32>, vector<1x128xf32> -> vector<1x128xf32>
    %250 = arith.mulf %248, %248 : vector<1x128xf32>
    %251 = arith.subf %249, %250 : vector<1x128xf32>
    %cst_132 = arith.constant 0.000000e+00 : f32
    %252 = vector.broadcast %cst_132 : f32 to vector<1x128xf32>
    %253 = arith.maximumf %251, %252 : vector<1x128xf32>
    %cst_133 = arith.constant 9.99999974E-6 : f32
    %254 = vector.broadcast %cst_133 : f32 to vector<1x128xf32>
    %255 = arith.addf %253, %254 : vector<1x128xf32>
    %256 = math.rsqrt %255 : vector<1x128xf32>
    %c3_134 = arith.constant 3 : index
    %c0_135 = arith.constant 0 : index
    %c0_136 = arith.constant 0 : index
    %257 = vector.load %arg7[%c3_134, %c0_135, %c0_136] : memref<4x1x128xf32, #tpu.memory_space<vmem>>, vector<1x1x128xf32>
    %258 = vector.shape_cast %257 : vector<1x1x128xf32> to vector<1x128xf32>
    %259 = arith.mulf %256, %258 : vector<1x128xf32>
    %c3_137 = arith.constant 3 : index
    %c0_138 = arith.constant 0 : index
    %c0_139 = arith.constant 0 : index
    %260 = vector.load %arg8[%c3_137, %c0_138, %c0_139] : memref<4x1x128xf32, #tpu.memory_space<vmem>>, vector<1x1x128xf32>
    %261 = vector.shape_cast %260 : vector<1x1x128xf32> to vector<1x128xf32>
    %262 = arith.mulf %248, %259 : vector<1x128xf32>
    %263 = arith.subf %261, %262 : vector<1x128xf32>
    %264 = vector.broadcast %259 : vector<1x128xf32> to vector<256x128xf32>
    %265 = arith.mulf %228, %264 : vector<256x128xf32>
    %266 = vector.broadcast %263 : vector<1x128xf32> to vector<256x128xf32>
    %267 = arith.addf %265, %266 : vector<256x128xf32>
    %268 = vector.broadcast %259 : vector<1x128xf32> to vector<256x128xf32>
    %269 = arith.mulf %229, %268 : vector<256x128xf32>
    %270 = vector.broadcast %263 : vector<1x128xf32> to vector<256x128xf32>
    %271 = arith.addf %269, %270 : vector<256x128xf32>
    %cst_140 = arith.constant 0.000000e+00 : f32
    %272 = vector.broadcast %cst_140 : f32 to vector<256x128xf32>
    %273 = arith.cmpf oge, %267, %272 : vector<256x128xf32>
    %cst_141 = arith.constant 0.00999999977 : f32
    %274 = vector.broadcast %cst_141 : f32 to vector<256x128xf32>
    %275 = arith.mulf %274, %267 : vector<256x128xf32>
    %276 = arith.select %273, %267, %275 : vector<256x128xi1>, vector<256x128xf32>
    %cst_142 = arith.constant 0.000000e+00 : f32
    %277 = vector.broadcast %cst_142 : f32 to vector<256x128xf32>
    %278 = arith.cmpf oge, %271, %277 : vector<256x128xf32>
    %cst_143 = arith.constant 0.00999999977 : f32
    %279 = vector.broadcast %cst_143 : f32 to vector<256x128xf32>
    %280 = arith.mulf %279, %271 : vector<256x128xf32>
    %281 = arith.select %278, %271, %280 : vector<256x128xi1>, vector<256x128xf32>
    %c0_144 = arith.constant 0 : index
    %c0_145 = arith.constant 0 : index
    %282 = vector.load %arg13[%c0_144, %c0_145] : memref<512x128xf32, #tpu.memory_space<vmem>>, vector<256x128xf32>
    tpu.vector_store %arg13[%c0_144, %c0_145], %276 {strides = array<i32>} : memref<512x128xf32, #tpu.memory_space<vmem>>, vector<256x128xf32>,
    %c256 = arith.constant 256 : index
    %c0_146 = arith.constant 0 : index
    %283 = vector.load %arg13[%c256, %c0_146] : memref<512x128xf32, #tpu.memory_space<vmem>>, vector<256x128xf32>
    tpu.vector_store %arg13[%c256, %c0_146], %281 {strides = array<i32>} : memref<512x128xf32, #tpu.memory_space<vmem>>, vector<256x128xf32>,
    %c0_147 = arith.constant 0 : index
    %c0_148 = arith.constant 0 : index
    %284 = vector.load %arg10[%c0_147, %c0_148] : memref<128x128xf32, #tpu.memory_space<vmem>>, vector<128x128xf32>
    %c0_149 = arith.constant 0 : index
    %c0_150 = arith.constant 0 : index
    %285 = vector.load %arg11[%c0_149, %c0_150] : memref<1x128xf32, #tpu.memory_space<vmem>>, vector<1x128xf32>
    %c0_151 = arith.constant 0 : index
    %c0_152 = arith.constant 0 : index
    %286 = vector.load %arg13[%c0_151, %c0_152] : memref<512x128xf32, #tpu.memory_space<vmem>>, vector<64x128xf32>
    %cst_153 = arith.constant dense<0.000000e+00> : vector<64x128xf32>
    %287 = tpu.matmul %286, %284, %cst_153 {dimension_numbers = #tpu.dot_dimension_numbers<[1], [0], [0], [1], [0, 0, 1, 1], [], []>} : vector<64x128xf32>, vector<128x128xf32>, vector<64x128xf32> -> vector<64x128xf32>
    %288 = vector.broadcast %285 : vector<1x128xf32> to vector<64x128xf32>
    %289 = arith.addf %287, %288 : vector<64x128xf32>
    %290 = math.tanh %289 : vector<64x128xf32>
    %291 = vector.extract_strided_slice %290 {offsets = [0, 0], sizes = [8, 128], strides = [1, 1]} : vector<64x128xf32> to vector<8x128xf32>
    %c0_154 = arith.constant 0 : index
    %c0_155 = arith.constant 0 : index
    %292 = vector.load %arg12[%c0_154, %c0_155] : memref<512x128xf32, #tpu.memory_space<vmem>>, vector<8x128xf32>
    tpu.vector_store %arg12[%c0_154, %c0_155], %291 {strides = array<i32>} : memref<512x128xf32, #tpu.memory_space<vmem>>, vector<8x128xf32>,
    %293 = vector.extract_strided_slice %290 {offsets = [8, 0], sizes = [8, 128], strides = [1, 1]} : vector<64x128xf32> to vector<8x128xf32>
    %c128_156 = arith.constant 128 : index
    %c0_157 = arith.constant 0 : index
    %294 = vector.load %arg12[%c128_156, %c0_157] : memref<512x128xf32, #tpu.memory_space<vmem>>, vector<8x128xf32>
    tpu.vector_store %arg12[%c128_156, %c0_157], %293 {strides = array<i32>} : memref<512x128xf32, #tpu.memory_space<vmem>>, vector<8x128xf32>,
    %295 = vector.extract_strided_slice %290 {offsets = [16, 0], sizes = [8, 128], strides = [1, 1]} : vector<64x128xf32> to vector<8x128xf32>
    %c256_158 = arith.constant 256 : index
    %c0_159 = arith.constant 0 : index
    %296 = vector.load %arg12[%c256_158, %c0_159] : memref<512x128xf32, #tpu.memory_space<vmem>>, vector<8x128xf32>
    tpu.vector_store %arg12[%c256_158, %c0_159], %295 {strides = array<i32>} : memref<512x128xf32, #tpu.memory_space<vmem>>, vector<8x128xf32>,
    %297 = vector.extract_strided_slice %290 {offsets = [24, 0], sizes = [8, 128], strides = [1, 1]} : vector<64x128xf32> to vector<8x128xf32>
    %c384 = arith.constant 384 : index
    %c0_160 = arith.constant 0 : index
    %298 = vector.load %arg12[%c384, %c0_160] : memref<512x128xf32, #tpu.memory_space<vmem>>, vector<8x128xf32>
    tpu.vector_store %arg12[%c384, %c0_160], %297 {strides = array<i32>} : memref<512x128xf32, #tpu.memory_space<vmem>>, vector<8x128xf32>,
    %299 = vector.extract_strided_slice %290 {offsets = [32, 0], sizes = [8, 128], strides = [1, 1]} : vector<64x128xf32> to vector<8x128xf32>
    %c64_161 = arith.constant 64 : index
    %c0_162 = arith.constant 0 : index
    %300 = vector.load %arg12[%c64_161, %c0_162] : memref<512x128xf32, #tpu.memory_space<vmem>>, vector<8x128xf32>
    tpu.vector_store %arg12[%c64_161, %c0_162], %299 {strides = array<i32>} : memref<512x128xf32, #tpu.memory_space<vmem>>, vector<8x128xf32>,
    %301 = vector.extract_strided_slice %290 {offsets = [40, 0], sizes = [8, 128], strides = [1, 1]} : vector<64x128xf32> to vector<8x128xf32>
    %c192 = arith.constant 192 : index
    %c0_163 = arith.constant 0 : index
    %302 = vector.load %arg12[%c192, %c0_163] : memref<512x128xf32, #tpu.memory_space<vmem>>, vector<8x128xf32>
    tpu.vector_store %arg12[%c192, %c0_163], %301 {strides = array<i32>} : memref<512x128xf32, #tpu.memory_space<vmem>>, vector<8x128xf32>,
    %303 = vector.extract_strided_slice %290 {offsets = [48, 0], sizes = [8, 128], strides = [1, 1]} : vector<64x128xf32> to vector<8x128xf32>
    %c320 = arith.constant 320 : index
    %c0_164 = arith.constant 0 : index
    %304 = vector.load %arg12[%c320, %c0_164] : memref<512x128xf32, #tpu.memory_space<vmem>>, vector<8x128xf32>
    tpu.vector_store %arg12[%c320, %c0_164], %303 {strides = array<i32>} : memref<512x128xf32, #tpu.memory_space<vmem>>, vector<8x128xf32>,
    %305 = vector.extract_strided_slice %290 {offsets = [56, 0], sizes = [8, 128], strides = [1, 1]} : vector<64x128xf32> to vector<8x128xf32>
    %c448 = arith.constant 448 : index
    %c0_165 = arith.constant 0 : index
    %306 = vector.load %arg12[%c448, %c0_165] : memref<512x128xf32, #tpu.memory_space<vmem>>, vector<8x128xf32>
    tpu.vector_store %arg12[%c448, %c0_165], %305 {strides = array<i32>} : memref<512x128xf32, #tpu.memory_space<vmem>>, vector<8x128xf32>,
    %c64_166 = arith.constant 64 : index
    %c0_167 = arith.constant 0 : index
    %307 = vector.load %arg13[%c64_166, %c0_167] : memref<512x128xf32, #tpu.memory_space<vmem>>, vector<64x128xf32>
    %cst_168 = arith.constant dense<0.000000e+00> : vector<64x128xf32>
    %308 = tpu.matmul %307, %284, %cst_168 {dimension_numbers = #tpu.dot_dimension_numbers<[1], [0], [0], [1], [0, 0, 1, 1], [], []>} : vector<64x128xf32>, vector<128x128xf32>, vector<64x128xf32> -> vector<64x128xf32>
    %309 = vector.broadcast %285 : vector<1x128xf32> to vector<64x128xf32>
    %310 = arith.addf %308, %309 : vector<64x128xf32>
    %311 = math.tanh %310 : vector<64x128xf32>
    %312 = vector.extract_strided_slice %311 {offsets = [0, 0], sizes = [8, 128], strides = [1, 1]} : vector<64x128xf32> to vector<8x128xf32>
    %c32_169 = arith.constant 32 : index
    %c0_170 = arith.constant 0 : index
    %313 = vector.load %arg12[%c32_169, %c0_170] : memref<512x128xf32, #tpu.memory_space<vmem>>, vector<8x128xf32>
    tpu.vector_store %arg12[%c32_169, %c0_170], %312 {strides = array<i32>} : memref<512x128xf32, #tpu.memory_space<vmem>>, vector<8x128xf32>,
    %314 = vector.extract_strided_slice %311 {offsets = [8, 0], sizes = [8, 128], strides = [1, 1]} : vector<64x128xf32> to vector<8x128xf32>
    %c160 = arith.constant 160 : index
    %c0_171 = arith.constant 0 : index
    %315 = vector.load %arg12[%c160, %c0_171] : memref<512x128xf32, #tpu.memory_space<vmem>>, vector<8x128xf32>
    tpu.vector_store %arg12[%c160, %c0_171], %314 {strides = array<i32>} : memref<512x128xf32, #tpu.memory_space<vmem>>, vector<8x128xf32>,
    %316 = vector.extract_strided_slice %311 {offsets = [16, 0], sizes = [8, 128], strides = [1, 1]} : vector<64x128xf32> to vector<8x128xf32>
    %c288 = arith.constant 288 : index
    %c0_172 = arith.constant 0 : index
    %317 = vector.load %arg12[%c288, %c0_172] : memref<512x128xf32, #tpu.memory_space<vmem>>, vector<8x128xf32>
    tpu.vector_store %arg12[%c288, %c0_172], %316 {strides = array<i32>} : memref<512x128xf32, #tpu.memory_space<vmem>>, vector<8x128xf32>,
    %318 = vector.extract_strided_slice %311 {offsets = [24, 0], sizes = [8, 128], strides = [1, 1]} : vector<64x128xf32> to vector<8x128xf32>
    %c416 = arith.constant 416 : index
    %c0_173 = arith.constant 0 : index
    %319 = vector.load %arg12[%c416, %c0_173] : memref<512x128xf32, #tpu.memory_space<vmem>>, vector<8x128xf32>
    tpu.vector_store %arg12[%c416, %c0_173], %318 {strides = array<i32>} : memref<512x128xf32, #tpu.memory_space<vmem>>, vector<8x128xf32>,
    %320 = vector.extract_strided_slice %311 {offsets = [32, 0], sizes = [8, 128], strides = [1, 1]} : vector<64x128xf32> to vector<8x128xf32>
    %c96 = arith.constant 96 : index
    %c0_174 = arith.constant 0 : index
    %321 = vector.load %arg12[%c96, %c0_174] : memref<512x128xf32, #tpu.memory_space<vmem>>, vector<8x128xf32>
    tpu.vector_store %arg12[%c96, %c0_174], %320 {strides = array<i32>} : memref<512x128xf32, #tpu.memory_space<vmem>>, vector<8x128xf32>,
    %322 = vector.extract_strided_slice %311 {offsets = [40, 0], sizes = [8, 128], strides = [1, 1]} : vector<64x128xf32> to vector<8x128xf32>
    %c224 = arith.constant 224 : index
    %c0_175 = arith.constant 0 : index
    %323 = vector.load %arg12[%c224, %c0_175] : memref<512x128xf32, #tpu.memory_space<vmem>>, vector<8x128xf32>
    tpu.vector_store %arg12[%c224, %c0_175], %322 {strides = array<i32>} : memref<512x128xf32, #tpu.memory_space<vmem>>, vector<8x128xf32>,
    %324 = vector.extract_strided_slice %311 {offsets = [48, 0], sizes = [8, 128], strides = [1, 1]} : vector<64x128xf32> to vector<8x128xf32>
    %c352 = arith.constant 352 : index
    %c0_176 = arith.constant 0 : index
    %325 = vector.load %arg12[%c352, %c0_176] : memref<512x128xf32, #tpu.memory_space<vmem>>, vector<8x128xf32>
    tpu.vector_store %arg12[%c352, %c0_176], %324 {strides = array<i32>} : memref<512x128xf32, #tpu.memory_space<vmem>>, vector<8x128xf32>,
    %326 = vector.extract_strided_slice %311 {offsets = [56, 0], sizes = [8, 128], strides = [1, 1]} : vector<64x128xf32> to vector<8x128xf32>
    %c480 = arith.constant 480 : index
    %c0_177 = arith.constant 0 : index
    %327 = vector.load %arg12[%c480, %c0_177] : memref<512x128xf32, #tpu.memory_space<vmem>>, vector<8x128xf32>
    tpu.vector_store %arg12[%c480, %c0_177], %326 {strides = array<i32>} : memref<512x128xf32, #tpu.memory_space<vmem>>, vector<8x128xf32>,
    %c128_178 = arith.constant 128 : index
    %c0_179 = arith.constant 0 : index
    %328 = vector.load %arg13[%c128_178, %c0_179] : memref<512x128xf32, #tpu.memory_space<vmem>>, vector<64x128xf32>
    %cst_180 = arith.constant dense<0.000000e+00> : vector<64x128xf32>
    %329 = tpu.matmul %328, %284, %cst_180 {dimension_numbers = #tpu.dot_dimension_numbers<[1], [0], [0], [1], [0, 0, 1, 1], [], []>} : vector<64x128xf32>, vector<128x128xf32>, vector<64x128xf32> -> vector<64x128xf32>
    %330 = vector.broadcast %285 : vector<1x128xf32> to vector<64x128xf32>
    %331 = arith.addf %329, %330 : vector<64x128xf32>
    %332 = math.tanh %331 : vector<64x128xf32>
    %333 = vector.extract_strided_slice %332 {offsets = [0, 0], sizes = [8, 128], strides = [1, 1]} : vector<64x128xf32> to vector<8x128xf32>
    %c16_181 = arith.constant 16 : index
    %c0_182 = arith.constant 0 : index
    %334 = vector.load %arg12[%c16_181, %c0_182] : memref<512x128xf32, #tpu.memory_space<vmem>>, vector<8x128xf32>
    tpu.vector_store %arg12[%c16_181, %c0_182], %333 {strides = array<i32>} : memref<512x128xf32, #tpu.memory_space<vmem>>, vector<8x128xf32>,
    %335 = vector.extract_strided_slice %332 {offsets = [8, 0], sizes = [8, 128], strides = [1, 1]} : vector<64x128xf32> to vector<8x128xf32>
    %c144 = arith.constant 144 : index
    %c0_183 = arith.constant 0 : index
    %336 = vector.load %arg12[%c144, %c0_183] : memref<512x128xf32, #tpu.memory_space<vmem>>, vector<8x128xf32>
    tpu.vector_store %arg12[%c144, %c0_183], %335 {strides = array<i32>} : memref<512x128xf32, #tpu.memory_space<vmem>>, vector<8x128xf32>,
    %337 = vector.extract_strided_slice %332 {offsets = [16, 0], sizes = [8, 128], strides = [1, 1]} : vector<64x128xf32> to vector<8x128xf32>
    %c272 = arith.constant 272 : index
    %c0_184 = arith.constant 0 : index
    %338 = vector.load %arg12[%c272, %c0_184] : memref<512x128xf32, #tpu.memory_space<vmem>>, vector<8x128xf32>
    tpu.vector_store %arg12[%c272, %c0_184], %337 {strides = array<i32>} : memref<512x128xf32, #tpu.memory_space<vmem>>, vector<8x128xf32>,
    %339 = vector.extract_strided_slice %332 {offsets = [24, 0], sizes = [8, 128], strides = [1, 1]} : vector<64x128xf32> to vector<8x128xf32>
    %c400 = arith.constant 400 : index
    %c0_185 = arith.constant 0 : index
    %340 = vector.load %arg12[%c400, %c0_185] : memref<512x128xf32, #tpu.memory_space<vmem>>, vector<8x128xf32>
    tpu.vector_store %arg12[%c400, %c0_185], %339 {strides = array<i32>} : memref<512x128xf32, #tpu.memory_space<vmem>>, vector<8x128xf32>,
    %341 = vector.extract_strided_slice %332 {offsets = [32, 0], sizes = [8, 128], strides = [1, 1]} : vector<64x128xf32> to vector<8x128xf32>
    %c80 = arith.constant 80 : index
    %c0_186 = arith.constant 0 : index
    %342 = vector.load %arg12[%c80, %c0_186] : memref<512x128xf32, #tpu.memory_space<vmem>>, vector<8x128xf32>
    tpu.vector_store %arg12[%c80, %c0_186], %341 {strides = array<i32>} : memref<512x128xf32, #tpu.memory_space<vmem>>, vector<8x128xf32>,
    %343 = vector.extract_strided_slice %332 {offsets = [40, 0], sizes = [8, 128], strides = [1, 1]} : vector<64x128xf32> to vector<8x128xf32>
    %c208 = arith.constant 208 : index
    %c0_187 = arith.constant 0 : index
    %344 = vector.load %arg12[%c208, %c0_187] : memref<512x128xf32, #tpu.memory_space<vmem>>, vector<8x128xf32>
    tpu.vector_store %arg12[%c208, %c0_187], %343 {strides = array<i32>} : memref<512x128xf32, #tpu.memory_space<vmem>>, vector<8x128xf32>,
    %345 = vector.extract_strided_slice %332 {offsets = [48, 0], sizes = [8, 128], strides = [1, 1]} : vector<64x128xf32> to vector<8x128xf32>
    %c336 = arith.constant 336 : index
    %c0_188 = arith.constant 0 : index
    %346 = vector.load %arg12[%c336, %c0_188] : memref<512x128xf32, #tpu.memory_space<vmem>>, vector<8x128xf32>
    tpu.vector_store %arg12[%c336, %c0_188], %345 {strides = array<i32>} : memref<512x128xf32, #tpu.memory_space<vmem>>, vector<8x128xf32>,
    %347 = vector.extract_strided_slice %332 {offsets = [56, 0], sizes = [8, 128], strides = [1, 1]} : vector<64x128xf32> to vector<8x128xf32>
    %c464 = arith.constant 464 : index
    %c0_189 = arith.constant 0 : index
    %348 = vector.load %arg12[%c464, %c0_189] : memref<512x128xf32, #tpu.memory_space<vmem>>, vector<8x128xf32>
    tpu.vector_store %arg12[%c464, %c0_189], %347 {strides = array<i32>} : memref<512x128xf32, #tpu.memory_space<vmem>>, vector<8x128xf32>,
    %c192_190 = arith.constant 192 : index
    %c0_191 = arith.constant 0 : index
    %349 = vector.load %arg13[%c192_190, %c0_191] : memref<512x128xf32, #tpu.memory_space<vmem>>, vector<64x128xf32>
    %cst_192 = arith.constant dense<0.000000e+00> : vector<64x128xf32>
    %350 = tpu.matmul %349, %284, %cst_192 {dimension_numbers = #tpu.dot_dimension_numbers<[1], [0], [0], [1], [0, 0, 1, 1], [], []>} : vector<64x128xf32>, vector<128x128xf32>, vector<64x128xf32> -> vector<64x128xf32>
    %351 = vector.broadcast %285 : vector<1x128xf32> to vector<64x128xf32>
    %352 = arith.addf %350, %351 : vector<64x128xf32>
    %353 = math.tanh %352 : vector<64x128xf32>
    %354 = vector.extract_strided_slice %353 {offsets = [0, 0], sizes = [8, 128], strides = [1, 1]} : vector<64x128xf32> to vector<8x128xf32>
    %c48 = arith.constant 48 : index
    %c0_193 = arith.constant 0 : index
    %355 = vector.load %arg12[%c48, %c0_193] : memref<512x128xf32, #tpu.memory_space<vmem>>, vector<8x128xf32>
    tpu.vector_store %arg12[%c48, %c0_193], %354 {strides = array<i32>} : memref<512x128xf32, #tpu.memory_space<vmem>>, vector<8x128xf32>,
    %356 = vector.extract_strided_slice %353 {offsets = [8, 0], sizes = [8, 128], strides = [1, 1]} : vector<64x128xf32> to vector<8x128xf32>
    %c176 = arith.constant 176 : index
    %c0_194 = arith.constant 0 : index
    %357 = vector.load %arg12[%c176, %c0_194] : memref<512x128xf32, #tpu.memory_space<vmem>>, vector<8x128xf32>
    tpu.vector_store %arg12[%c176, %c0_194], %356 {strides = array<i32>} : memref<512x128xf32, #tpu.memory_space<vmem>>, vector<8x128xf32>,
    %358 = vector.extract_strided_slice %353 {offsets = [16, 0], sizes = [8, 128], strides = [1, 1]} : vector<64x128xf32> to vector<8x128xf32>
    %c304 = arith.constant 304 : index
    %c0_195 = arith.constant 0 : index
    %359 = vector.load %arg12[%c304, %c0_195] : memref<512x128xf32, #tpu.memory_space<vmem>>, vector<8x128xf32>
    tpu.vector_store %arg12[%c304, %c0_195], %358 {strides = array<i32>} : memref<512x128xf32, #tpu.memory_space<vmem>>, vector<8x128xf32>,
    %360 = vector.extract_strided_slice %353 {offsets = [24, 0], sizes = [8, 128], strides = [1, 1]} : vector<64x128xf32> to vector<8x128xf32>
    %c432 = arith.constant 432 : index
    %c0_196 = arith.constant 0 : index
    %361 = vector.load %arg12[%c432, %c0_196] : memref<512x128xf32, #tpu.memory_space<vmem>>, vector<8x128xf32>
    tpu.vector_store %arg12[%c432, %c0_196], %360 {strides = array<i32>} : memref<512x128xf32, #tpu.memory_space<vmem>>, vector<8x128xf32>,
    %362 = vector.extract_strided_slice %353 {offsets = [32, 0], sizes = [8, 128], strides = [1, 1]} : vector<64x128xf32> to vector<8x128xf32>
    %c112 = arith.constant 112 : index
    %c0_197 = arith.constant 0 : index
    %363 = vector.load %arg12[%c112, %c0_197] : memref<512x128xf32, #tpu.memory_space<vmem>>, vector<8x128xf32>
    tpu.vector_store %arg12[%c112, %c0_197], %362 {strides = array<i32>} : memref<512x128xf32, #tpu.memory_space<vmem>>, vector<8x128xf32>,
    %364 = vector.extract_strided_slice %353 {offsets = [40, 0], sizes = [8, 128], strides = [1, 1]} : vector<64x128xf32> to vector<8x128xf32>
    %c240 = arith.constant 240 : index
    %c0_198 = arith.constant 0 : index
    %365 = vector.load %arg12[%c240, %c0_198] : memref<512x128xf32, #tpu.memory_space<vmem>>, vector<8x128xf32>
    tpu.vector_store %arg12[%c240, %c0_198], %364 {strides = array<i32>} : memref<512x128xf32, #tpu.memory_space<vmem>>, vector<8x128xf32>,
    %366 = vector.extract_strided_slice %353 {offsets = [48, 0], sizes = [8, 128], strides = [1, 1]} : vector<64x128xf32> to vector<8x128xf32>
    %c368 = arith.constant 368 : index
    %c0_199 = arith.constant 0 : index
    %367 = vector.load %arg12[%c368, %c0_199] : memref<512x128xf32, #tpu.memory_space<vmem>>, vector<8x128xf32>
    tpu.vector_store %arg12[%c368, %c0_199], %366 {strides = array<i32>} : memref<512x128xf32, #tpu.memory_space<vmem>>, vector<8x128xf32>,
    %368 = vector.extract_strided_slice %353 {offsets = [56, 0], sizes = [8, 128], strides = [1, 1]} : vector<64x128xf32> to vector<8x128xf32>
    %c496 = arith.constant 496 : index
    %c0_200 = arith.constant 0 : index
    %369 = vector.load %arg12[%c496, %c0_200] : memref<512x128xf32, #tpu.memory_space<vmem>>, vector<8x128xf32>
    tpu.vector_store %arg12[%c496, %c0_200], %368 {strides = array<i32>} : memref<512x128xf32, #tpu.memory_space<vmem>>, vector<8x128xf32>,
    %c256_201 = arith.constant 256 : index
    %c0_202 = arith.constant 0 : index
    %370 = vector.load %arg13[%c256_201, %c0_202] : memref<512x128xf32, #tpu.memory_space<vmem>>, vector<64x128xf32>
    %cst_203 = arith.constant dense<0.000000e+00> : vector<64x128xf32>
    %371 = tpu.matmul %370, %284, %cst_203 {dimension_numbers = #tpu.dot_dimension_numbers<[1], [0], [0], [1], [0, 0, 1, 1], [], []>} : vector<64x128xf32>, vector<128x128xf32>, vector<64x128xf32> -> vector<64x128xf32>
    %372 = vector.broadcast %285 : vector<1x128xf32> to vector<64x128xf32>
    %373 = arith.addf %371, %372 : vector<64x128xf32>
    %374 = math.tanh %373 : vector<64x128xf32>
    %375 = vector.extract_strided_slice %374 {offsets = [0, 0], sizes = [8, 128], strides = [1, 1]} : vector<64x128xf32> to vector<8x128xf32>
    %c8_204 = arith.constant 8 : index
    %c0_205 = arith.constant 0 : index
    %376 = vector.load %arg12[%c8_204, %c0_205] : memref<512x128xf32, #tpu.memory_space<vmem>>, vector<8x128xf32>
    tpu.vector_store %arg12[%c8_204, %c0_205], %375 {strides = array<i32>} : memref<512x128xf32, #tpu.memory_space<vmem>>, vector<8x128xf32>,
    %377 = vector.extract_strided_slice %374 {offsets = [8, 0], sizes = [8, 128], strides = [1, 1]} : vector<64x128xf32> to vector<8x128xf32>
    %c136 = arith.constant 136 : index
    %c0_206 = arith.constant 0 : index
    %378 = vector.load %arg12[%c136, %c0_206] : memref<512x128xf32, #tpu.memory_space<vmem>>, vector<8x128xf32>
    tpu.vector_store %arg12[%c136, %c0_206], %377 {strides = array<i32>} : memref<512x128xf32, #tpu.memory_space<vmem>>, vector<8x128xf32>,
    %379 = vector.extract_strided_slice %374 {offsets = [16, 0], sizes = [8, 128], strides = [1, 1]} : vector<64x128xf32> to vector<8x128xf32>
    %c264 = arith.constant 264 : index
    %c0_207 = arith.constant 0 : index
    %380 = vector.load %arg12[%c264, %c0_207] : memref<512x128xf32, #tpu.memory_space<vmem>>, vector<8x128xf32>
    tpu.vector_store %arg12[%c264, %c0_207], %379 {strides = array<i32>} : memref<512x128xf32, #tpu.memory_space<vmem>>, vector<8x128xf32>,
    %381 = vector.extract_strided_slice %374 {offsets = [24, 0], sizes = [8, 128], strides = [1, 1]} : vector<64x128xf32> to vector<8x128xf32>
    %c392 = arith.constant 392 : index
    %c0_208 = arith.constant 0 : index
    %382 = vector.load %arg12[%c392, %c0_208] : memref<512x128xf32, #tpu.memory_space<vmem>>, vector<8x128xf32>
    tpu.vector_store %arg12[%c392, %c0_208], %381 {strides = array<i32>} : memref<512x128xf32, #tpu.memory_space<vmem>>, vector<8x128xf32>,
    %383 = vector.extract_strided_slice %374 {offsets = [32, 0], sizes = [8, 128], strides = [1, 1]} : vector<64x128xf32> to vector<8x128xf32>
    %c72 = arith.constant 72 : index
    %c0_209 = arith.constant 0 : index
    %384 = vector.load %arg12[%c72, %c0_209] : memref<512x128xf32, #tpu.memory_space<vmem>>, vector<8x128xf32>
    tpu.vector_store %arg12[%c72, %c0_209], %383 {strides = array<i32>} : memref<512x128xf32, #tpu.memory_space<vmem>>, vector<8x128xf32>,
    %385 = vector.extract_strided_slice %374 {offsets = [40, 0], sizes = [8, 128], strides = [1, 1]} : vector<64x128xf32> to vector<8x128xf32>
    %c200 = arith.constant 200 : index
    %c0_210 = arith.constant 0 : index
    %386 = vector.load %arg12[%c200, %c0_210] : memref<512x128xf32, #tpu.memory_space<vmem>>, vector<8x128xf32>
    tpu.vector_store %arg12[%c200, %c0_210], %385 {strides = array<i32>} : memref<512x128xf32, #tpu.memory_space<vmem>>, vector<8x128xf32>,
    %387 = vector.extract_strided_slice %374 {offsets = [48, 0], sizes = [8, 128], strides = [1, 1]} : vector<64x128xf32> to vector<8x128xf32>
    %c328 = arith.constant 328 : index
    %c0_211 = arith.constant 0 : index
    %388 = vector.load %arg12[%c328, %c0_211] : memref<512x128xf32, #tpu.memory_space<vmem>>, vector<8x128xf32>
    tpu.vector_store %arg12[%c328, %c0_211], %387 {strides = array<i32>} : memref<512x128xf32, #tpu.memory_space<vmem>>, vector<8x128xf32>,
    %389 = vector.extract_strided_slice %374 {offsets = [56, 0], sizes = [8, 128], strides = [1, 1]} : vector<64x128xf32> to vector<8x128xf32>
    %c456 = arith.constant 456 : index
    %c0_212 = arith.constant 0 : index
    %390 = vector.load %arg12[%c456, %c0_212] : memref<512x128xf32, #tpu.memory_space<vmem>>, vector<8x128xf32>
    tpu.vector_store %arg12[%c456, %c0_212], %389 {strides = array<i32>} : memref<512x128xf32, #tpu.memory_space<vmem>>, vector<8x128xf32>,
    %c320_213 = arith.constant 320 : index
    %c0_214 = arith.constant 0 : index
    %391 = vector.load %arg13[%c320_213, %c0_214] : memref<512x128xf32, #tpu.memory_space<vmem>>, vector<64x128xf32>
    %cst_215 = arith.constant dense<0.000000e+00> : vector<64x128xf32>
    %392 = tpu.matmul %391, %284, %cst_215 {dimension_numbers = #tpu.dot_dimension_numbers<[1], [0], [0], [1], [0, 0, 1, 1], [], []>} : vector<64x128xf32>, vector<128x128xf32>, vector<64x128xf32> -> vector<64x128xf32>
    %393 = vector.broadcast %285 : vector<1x128xf32> to vector<64x128xf32>
    %394 = arith.addf %392, %393 : vector<64x128xf32>
    %395 = math.tanh %394 : vector<64x128xf32>
    %396 = vector.extract_strided_slice %395 {offsets = [0, 0], sizes = [8, 128], strides = [1, 1]} : vector<64x128xf32> to vector<8x128xf32>
    %c40 = arith.constant 40 : index
    %c0_216 = arith.constant 0 : index
    %397 = vector.load %arg12[%c40, %c0_216] : memref<512x128xf32, #tpu.memory_space<vmem>>, vector<8x128xf32>
    tpu.vector_store %arg12[%c40, %c0_216], %396 {strides = array<i32>} : memref<512x128xf32, #tpu.memory_space<vmem>>, vector<8x128xf32>,
    %398 = vector.extract_strided_slice %395 {offsets = [8, 0], sizes = [8, 128], strides = [1, 1]} : vector<64x128xf32> to vector<8x128xf32>
    %c168 = arith.constant 168 : index
    %c0_217 = arith.constant 0 : index
    %399 = vector.load %arg12[%c168, %c0_217] : memref<512x128xf32, #tpu.memory_space<vmem>>, vector<8x128xf32>
    tpu.vector_store %arg12[%c168, %c0_217], %398 {strides = array<i32>} : memref<512x128xf32, #tpu.memory_space<vmem>>, vector<8x128xf32>,
    %400 = vector.extract_strided_slice %395 {offsets = [16, 0], sizes = [8, 128], strides = [1, 1]} : vector<64x128xf32> to vector<8x128xf32>
    %c296 = arith.constant 296 : index
    %c0_218 = arith.constant 0 : index
    %401 = vector.load %arg12[%c296, %c0_218] : memref<512x128xf32, #tpu.memory_space<vmem>>, vector<8x128xf32>
    tpu.vector_store %arg12[%c296, %c0_218], %400 {strides = array<i32>} : memref<512x128xf32, #tpu.memory_space<vmem>>, vector<8x128xf32>,
    %402 = vector.extract_strided_slice %395 {offsets = [24, 0], sizes = [8, 128], strides = [1, 1]} : vector<64x128xf32> to vector<8x128xf32>
    %c424 = arith.constant 424 : index
    %c0_219 = arith.constant 0 : index
    %403 = vector.load %arg12[%c424, %c0_219] : memref<512x128xf32, #tpu.memory_space<vmem>>, vector<8x128xf32>
    tpu.vector_store %arg12[%c424, %c0_219], %402 {strides = array<i32>} : memref<512x128xf32, #tpu.memory_space<vmem>>, vector<8x128xf32>,
    %404 = vector.extract_strided_slice %395 {offsets = [32, 0], sizes = [8, 128], strides = [1, 1]} : vector<64x128xf32> to vector<8x128xf32>
    %c104 = arith.constant 104 : index
    %c0_220 = arith.constant 0 : index
    %405 = vector.load %arg12[%c104, %c0_220] : memref<512x128xf32, #tpu.memory_space<vmem>>, vector<8x128xf32>
    tpu.vector_store %arg12[%c104, %c0_220], %404 {strides = array<i32>} : memref<512x128xf32, #tpu.memory_space<vmem>>, vector<8x128xf32>,
    %406 = vector.extract_strided_slice %395 {offsets = [40, 0], sizes = [8, 128], strides = [1, 1]} : vector<64x128xf32> to vector<8x128xf32>
    %c232 = arith.constant 232 : index
    %c0_221 = arith.constant 0 : index
    %407 = vector.load %arg12[%c232, %c0_221] : memref<512x128xf32, #tpu.memory_space<vmem>>, vector<8x128xf32>
    tpu.vector_store %arg12[%c232, %c0_221], %406 {strides = array<i32>} : memref<512x128xf32, #tpu.memory_space<vmem>>, vector<8x128xf32>,
    %408 = vector.extract_strided_slice %395 {offsets = [48, 0], sizes = [8, 128], strides = [1, 1]} : vector<64x128xf32> to vector<8x128xf32>
    %c360 = arith.constant 360 : index
    %c0_222 = arith.constant 0 : index
    %409 = vector.load %arg12[%c360, %c0_222] : memref<512x128xf32, #tpu.memory_space<vmem>>, vector<8x128xf32>
    tpu.vector_store %arg12[%c360, %c0_222], %408 {strides = array<i32>} : memref<512x128xf32, #tpu.memory_space<vmem>>, vector<8x128xf32>,
    %410 = vector.extract_strided_slice %395 {offsets = [56, 0], sizes = [8, 128], strides = [1, 1]} : vector<64x128xf32> to vector<8x128xf32>
    %c488 = arith.constant 488 : index
    %c0_223 = arith.constant 0 : index
    %411 = vector.load %arg12[%c488, %c0_223] : memref<512x128xf32, #tpu.memory_space<vmem>>, vector<8x128xf32>
    tpu.vector_store %arg12[%c488, %c0_223], %410 {strides = array<i32>} : memref<512x128xf32, #tpu.memory_space<vmem>>, vector<8x128xf32>,
    %c384_224 = arith.constant 384 : index
    %c0_225 = arith.constant 0 : index
    %412 = vector.load %arg13[%c384_224, %c0_225] : memref<512x128xf32, #tpu.memory_space<vmem>>, vector<64x128xf32>
    %cst_226 = arith.constant dense<0.000000e+00> : vector<64x128xf32>
    %413 = tpu.matmul %412, %284, %cst_226 {dimension_numbers = #tpu.dot_dimension_numbers<[1], [0], [0], [1], [0, 0, 1, 1], [], []>} : vector<64x128xf32>, vector<128x128xf32>, vector<64x128xf32> -> vector<64x128xf32>
    %414 = vector.broadcast %285 : vector<1x128xf32> to vector<64x128xf32>
    %415 = arith.addf %413, %414 : vector<64x128xf32>
    %416 = math.tanh %415 : vector<64x128xf32>
    %417 = vector.extract_strided_slice %416 {offsets = [0, 0], sizes = [8, 128], strides = [1, 1]} : vector<64x128xf32> to vector<8x128xf32>
    %c24_227 = arith.constant 24 : index
    %c0_228 = arith.constant 0 : index
    %418 = vector.load %arg12[%c24_227, %c0_228] : memref<512x128xf32, #tpu.memory_space<vmem>>, vector<8x128xf32>
    tpu.vector_store %arg12[%c24_227, %c0_228], %417 {strides = array<i32>} : memref<512x128xf32, #tpu.memory_space<vmem>>, vector<8x128xf32>,
    %419 = vector.extract_strided_slice %416 {offsets = [8, 0], sizes = [8, 128], strides = [1, 1]} : vector<64x128xf32> to vector<8x128xf32>
    %c152 = arith.constant 152 : index
    %c0_229 = arith.constant 0 : index
    %420 = vector.load %arg12[%c152, %c0_229] : memref<512x128xf32, #tpu.memory_space<vmem>>, vector<8x128xf32>
    tpu.vector_store %arg12[%c152, %c0_229], %419 {strides = array<i32>} : memref<512x128xf32, #tpu.memory_space<vmem>>, vector<8x128xf32>,
    %421 = vector.extract_strided_slice %416 {offsets = [16, 0], sizes = [8, 128], strides = [1, 1]} : vector<64x128xf32> to vector<8x128xf32>
    %c280 = arith.constant 280 : index
    %c0_230 = arith.constant 0 : index
    %422 = vector.load %arg12[%c280, %c0_230] : memref<512x128xf32, #tpu.memory_space<vmem>>, vector<8x128xf32>
    tpu.vector_store %arg12[%c280, %c0_230], %421 {strides = array<i32>} : memref<512x128xf32, #tpu.memory_space<vmem>>, vector<8x128xf32>,
    %423 = vector.extract_strided_slice %416 {offsets = [24, 0], sizes = [8, 128], strides = [1, 1]} : vector<64x128xf32> to vector<8x128xf32>
    %c408 = arith.constant 408 : index
    %c0_231 = arith.constant 0 : index
    %424 = vector.load %arg12[%c408, %c0_231] : memref<512x128xf32, #tpu.memory_space<vmem>>, vector<8x128xf32>
    tpu.vector_store %arg12[%c408, %c0_231], %423 {strides = array<i32>} : memref<512x128xf32, #tpu.memory_space<vmem>>, vector<8x128xf32>,
    %425 = vector.extract_strided_slice %416 {offsets = [32, 0], sizes = [8, 128], strides = [1, 1]} : vector<64x128xf32> to vector<8x128xf32>
    %c88 = arith.constant 88 : index
    %c0_232 = arith.constant 0 : index
    %426 = vector.load %arg12[%c88, %c0_232] : memref<512x128xf32, #tpu.memory_space<vmem>>, vector<8x128xf32>
    tpu.vector_store %arg12[%c88, %c0_232], %425 {strides = array<i32>} : memref<512x128xf32, #tpu.memory_space<vmem>>, vector<8x128xf32>,
    %427 = vector.extract_strided_slice %416 {offsets = [40, 0], sizes = [8, 128], strides = [1, 1]} : vector<64x128xf32> to vector<8x128xf32>
    %c216 = arith.constant 216 : index
    %c0_233 = arith.constant 0 : index
    %428 = vector.load %arg12[%c216, %c0_233] : memref<512x128xf32, #tpu.memory_space<vmem>>, vector<8x128xf32>
    tpu.vector_store %arg12[%c216, %c0_233], %427 {strides = array<i32>} : memref<512x128xf32, #tpu.memory_space<vmem>>, vector<8x128xf32>,
    %429 = vector.extract_strided_slice %416 {offsets = [48, 0], sizes = [8, 128], strides = [1, 1]} : vector<64x128xf32> to vector<8x128xf32>
    %c344 = arith.constant 344 : index
    %c0_234 = arith.constant 0 : index
    %430 = vector.load %arg12[%c344, %c0_234] : memref<512x128xf32, #tpu.memory_space<vmem>>, vector<8x128xf32>
    tpu.vector_store %arg12[%c344, %c0_234], %429 {strides = array<i32>} : memref<512x128xf32, #tpu.memory_space<vmem>>, vector<8x128xf32>,
    %431 = vector.extract_strided_slice %416 {offsets = [56, 0], sizes = [8, 128], strides = [1, 1]} : vector<64x128xf32> to vector<8x128xf32>
    %c472 = arith.constant 472 : index
    %c0_235 = arith.constant 0 : index
    %432 = vector.load %arg12[%c472, %c0_235] : memref<512x128xf32, #tpu.memory_space<vmem>>, vector<8x128xf32>
    tpu.vector_store %arg12[%c472, %c0_235], %431 {strides = array<i32>} : memref<512x128xf32, #tpu.memory_space<vmem>>, vector<8x128xf32>,
    %c448_236 = arith.constant 448 : index
    %c0_237 = arith.constant 0 : index
    %433 = vector.load %arg13[%c448_236, %c0_237] : memref<512x128xf32, #tpu.memory_space<vmem>>, vector<64x128xf32>
    %cst_238 = arith.constant dense<0.000000e+00> : vector<64x128xf32>
    %434 = tpu.matmul %433, %284, %cst_238 {dimension_numbers = #tpu.dot_dimension_numbers<[1], [0], [0], [1], [0, 0, 1, 1], [], []>} : vector<64x128xf32>, vector<128x128xf32>, vector<64x128xf32> -> vector<64x128xf32>
    %435 = vector.broadcast %285 : vector<1x128xf32> to vector<64x128xf32>
    %436 = arith.addf %434, %435 : vector<64x128xf32>
    %437 = math.tanh %436 : vector<64x128xf32>
    %438 = vector.extract_strided_slice %437 {offsets = [0, 0], sizes = [8, 128], strides = [1, 1]} : vector<64x128xf32> to vector<8x128xf32>
    %c56 = arith.constant 56 : index
    %c0_239 = arith.constant 0 : index
    %439 = vector.load %arg12[%c56, %c0_239] : memref<512x128xf32, #tpu.memory_space<vmem>>, vector<8x128xf32>
    tpu.vector_store %arg12[%c56, %c0_239], %438 {strides = array<i32>} : memref<512x128xf32, #tpu.memory_space<vmem>>, vector<8x128xf32>,
    %440 = vector.extract_strided_slice %437 {offsets = [8, 0], sizes = [8, 128], strides = [1, 1]} : vector<64x128xf32> to vector<8x128xf32>
    %c184 = arith.constant 184 : index
    %c0_240 = arith.constant 0 : index
    %441 = vector.load %arg12[%c184, %c0_240] : memref<512x128xf32, #tpu.memory_space<vmem>>, vector<8x128xf32>
    tpu.vector_store %arg12[%c184, %c0_240], %440 {strides = array<i32>} : memref<512x128xf32, #tpu.memory_space<vmem>>, vector<8x128xf32>,
    %442 = vector.extract_strided_slice %437 {offsets = [16, 0], sizes = [8, 128], strides = [1, 1]} : vector<64x128xf32> to vector<8x128xf32>
    %c312 = arith.constant 312 : index
    %c0_241 = arith.constant 0 : index
    %443 = vector.load %arg12[%c312, %c0_241] : memref<512x128xf32, #tpu.memory_space<vmem>>, vector<8x128xf32>
    tpu.vector_store %arg12[%c312, %c0_241], %442 {strides = array<i32>} : memref<512x128xf32, #tpu.memory_space<vmem>>, vector<8x128xf32>,
    %444 = vector.extract_strided_slice %437 {offsets = [24, 0], sizes = [8, 128], strides = [1, 1]} : vector<64x128xf32> to vector<8x128xf32>
    %c440 = arith.constant 440 : index
    %c0_242 = arith.constant 0 : index
    %445 = vector.load %arg12[%c440, %c0_242] : memref<512x128xf32, #tpu.memory_space<vmem>>, vector<8x128xf32>
    tpu.vector_store %arg12[%c440, %c0_242], %444 {strides = array<i32>} : memref<512x128xf32, #tpu.memory_space<vmem>>, vector<8x128xf32>,
    %446 = vector.extract_strided_slice %437 {offsets = [32, 0], sizes = [8, 128], strides = [1, 1]} : vector<64x128xf32> to vector<8x128xf32>
    %c120 = arith.constant 120 : index
    %c0_243 = arith.constant 0 : index
    %447 = vector.load %arg12[%c120, %c0_243] : memref<512x128xf32, #tpu.memory_space<vmem>>, vector<8x128xf32>
    tpu.vector_store %arg12[%c120, %c0_243], %446 {strides = array<i32>} : memref<512x128xf32, #tpu.memory_space<vmem>>, vector<8x128xf32>,
    %448 = vector.extract_strided_slice %437 {offsets = [40, 0], sizes = [8, 128], strides = [1, 1]} : vector<64x128xf32> to vector<8x128xf32>
    %c248 = arith.constant 248 : index
    %c0_244 = arith.constant 0 : index
    %449 = vector.load %arg12[%c248, %c0_244] : memref<512x128xf32, #tpu.memory_space<vmem>>, vector<8x128xf32>
    tpu.vector_store %arg12[%c248, %c0_244], %448 {strides = array<i32>} : memref<512x128xf32, #tpu.memory_space<vmem>>, vector<8x128xf32>,
    %450 = vector.extract_strided_slice %437 {offsets = [48, 0], sizes = [8, 128], strides = [1, 1]} : vector<64x128xf32> to vector<8x128xf32>
    %c376 = arith.constant 376 : index
    %c0_245 = arith.constant 0 : index
    %451 = vector.load %arg12[%c376, %c0_245] : memref<512x128xf32, #tpu.memory_space<vmem>>, vector<8x128xf32>
    tpu.vector_store %arg12[%c376, %c0_245], %450 {strides = array<i32>} : memref<512x128xf32, #tpu.memory_space<vmem>>, vector<8x128xf32>,
    %452 = vector.extract_strided_slice %437 {offsets = [56, 0], sizes = [8, 128], strides = [1, 1]} : vector<64x128xf32> to vector<8x128xf32>
    %c504 = arith.constant 504 : index
    %c0_246 = arith.constant 0 : index
    %453 = vector.load %arg12[%c504, %c0_246] : memref<512x128xf32, #tpu.memory_space<vmem>>, vector<8x128xf32>
    tpu.vector_store %arg12[%c504, %c0_246], %452 {strides = array<i32>} : memref<512x128xf32, #tpu.memory_space<vmem>>, vector<8x128xf32>,
    return
  }
  func.func @transform_0(%arg0: i32) -> (i32, i32) {
    %c0_i32 = arith.constant 0 : i32
    %c0_i32_0 = arith.constant 0 : i32
    %c0_i32_1 = arith.constant 0 : i32
    return %c0_i32, %c0_i32_0 : i32, i32
  }
  func.func @transform_1(%arg0: i32) -> (i32, i32) {
    %c0_i32 = arith.constant 0 : i32
    %c0_i32_0 = arith.constant 0 : i32
    %c0_i32_1 = arith.constant 0 : i32
    return %c0_i32, %c0_i32_0 : i32, i32
  }
  func.func @transform_2(%arg0: i32) -> (i32, i32) {
    %c0_i32 = arith.constant 0 : i32
    %c0_i32_0 = arith.constant 0 : i32
    %c0_i32_1 = arith.constant 0 : i32
    return %c0_i32, %c0_i32_0 : i32, i32
  }
  func.func @transform_3(%arg0: i32) -> (i32, i32) {
    %c0_i32 = arith.constant 0 : i32
    %c0_i32_0 = arith.constant 0 : i32
    %c0_i32_1 = arith.constant 0 : i32
    return %c0_i32, %c0_i32_0 : i32, i32
  }
  func.func @transform_4(%arg0: i32) -> (i32, i32) {
    %c0_i32 = arith.constant 0 : i32
    %c0_i32_0 = arith.constant 0 : i32
    %c0_i32_1 = arith.constant 0 : i32
    return %c0_i32, %c0_i32_0 : i32, i32
  }
  func.func @transform_5(%arg0: i32) -> (i32, i32, i32) {
    %c0_i32 = arith.constant 0 : i32
    %c0_i32_0 = arith.constant 0 : i32
    %c0_i32_1 = arith.constant 0 : i32
    %c0_i32_2 = arith.constant 0 : i32
    return %c0_i32, %c0_i32_0, %c0_i32_1 : i32, i32, i32
  }
  func.func @transform_6(%arg0: i32) -> (i32, i32, i32) {
    %c0_i32 = arith.constant 0 : i32
    %c0_i32_0 = arith.constant 0 : i32
    %c0_i32_1 = arith.constant 0 : i32
    %c0_i32_2 = arith.constant 0 : i32
    return %c0_i32, %c0_i32_0, %c0_i32_1 : i32, i32, i32
  }
  func.func @transform_7(%arg0: i32) -> (i32, i32, i32) {
    %c0_i32 = arith.constant 0 : i32
    %c0_i32_0 = arith.constant 0 : i32
    %c0_i32_1 = arith.constant 0 : i32
    %c0_i32_2 = arith.constant 0 : i32
    return %c0_i32, %c0_i32_0, %c0_i32_1 : i32, i32, i32
  }
  func.func @transform_8(%arg0: i32) -> (i32, i32, i32) {
    %c0_i32 = arith.constant 0 : i32
    %c0_i32_0 = arith.constant 0 : i32
    %c0_i32_1 = arith.constant 0 : i32
    %c0_i32_2 = arith.constant 0 : i32
    return %c0_i32, %c0_i32_0, %c0_i32_1 : i32, i32, i32
  }
  func.func @transform_9(%arg0: i32) -> (i32, i32) {
    %c0_i32 = arith.constant 0 : i32
    %c0_i32_0 = arith.constant 0 : i32
    %c0_i32_1 = arith.constant 0 : i32
    return %c0_i32, %c0_i32_0 : i32, i32
  }
  func.func @transform_10(%arg0: i32) -> (i32, i32) {
    %c0_i32 = arith.constant 0 : i32
    %c0_i32_0 = arith.constant 0 : i32
    %c0_i32_1 = arith.constant 0 : i32
    return %c0_i32, %c0_i32_0 : i32, i32
  }
  func.func @transform_11(%arg0: i32) -> (i32, i32) {
    %c0_i32 = arith.constant 0 : i32
    %c0_i32_0 = arith.constant 0 : i32
    %c0_i32_1 = arith.constant 0 : i32
    return %c0_i32, %c0_i32_0 : i32, i32
  }
}

</mosaic_0001>

<llo_original>
// kernel: generator_forward.1
$region0: #{generator_forward.1}
  #allocation0 [shape = 'u32[]', space=smem, size = 0x4, offset = 0x4, fixed_abs, tag = 'smem constant byte address 0x4 - core index']
  #allocation1 [shape = 'u32[144,128]{1,0:T(1,128)}', space=vmem, size = 0x12000, scoped, tag = 'internal scratch']
  #allocation2 [shape = 'f32[512,128]{1,0:T(8,128)}', space=vmem, size = 0x40000, scoped, tag = 'scratch operand']
  #allocation3 [shape = 'f32[256,128]{1,0:T(8,128)}', space=vmem, size = 0x20000, scoped, tag = 'scratch operand']
  %s0 = inlined_call_operand.hbm [shape: f32[8,128], index: 0, kind: input, shape index: {}]
  %s1 = inlined_call_operand.hbm [shape: f32[128,512], index: 1, kind: input, shape index: {}]
  %s2 = inlined_call_operand.vmem [shape: f32[1,512], index: 2, kind: input, shape index: {}]
  %s3 = inlined_call_operand.vmem [shape: f32[1,512], index: 3, kind: input, shape index: {}]
  %s4 = inlined_call_operand.vmem [shape: f32[1,512], index: 4, kind: input, shape index: {}]
  %s5 = inlined_call_operand.hbm [shape: f32[4,128,256], index: 5, kind: input, shape index: {}]
  %s6 = inlined_call_operand.vmem [shape: f32[4,1,128], index: 6, kind: input, shape index: {}]
  %s7 = inlined_call_operand.vmem [shape: f32[4,1,128], index: 7, kind: input, shape index: {}]
  %s8 = inlined_call_operand.hbm [shape: f32[4,128,128], index: 8, kind: input, shape index: {}]
  %s9 = inlined_call_operand.hbm [shape: f32[128,128], index: 9, kind: input, shape index: {}]
  %s10 = inlined_call_operand.vmem [shape: f32[1,128], index: 10, kind: input, shape index: {}]
  %s11 = inlined_call_operand.vmem [shape: f32[512,128], index: 11, kind: output, shape index: {}]
  %s12 = sld [smem:[#allocation0]]
  $region74: #{generator_forward.1} parent=0
    _
  %s14 = ssub.s32 1, %s12
  %s15 = scalar_select 0, %s14, %s12
  $region1: #{generator_forward.1} parent=0
    #allocation4 [shape = 'u8[4096]{0}', space=vmem, size = 0x1000, scoped, tag = 'input window, operand 0, single buffered']
    #allocation5 [shape = 's32[1]{0}', space=sflag, size = 0x4, scoped, tag = 'scoped memory for generator_forward.1']
    #allocation6 [shape = 'u8[262144]{0}', space=vmem, size = 0x40000, scoped, tag = 'input window, operand 1, single buffered']
    #allocation7 [shape = 's32[1]{0}', space=sflag, size = 0x4, scoped, tag = 'scoped memory for generator_forward.1']
    #allocation8 [shape = 'u8[524288]{0}', space=vmem, size = 0x80000, scoped, tag = 'input window, operand 5, single buffered']
    #allocation9 [shape = 'u8[262144]{0}', space=vmem, size = 0x40000, scoped, tag = 'input window, operand 8, single buffered']
    #allocation10 [shape = 's32[1]{0}', space=sflag, size = 0x4, scoped, tag = 'scoped memory for generator_forward.1']
    #allocation11 [shape = 'u8[65536]{0}', space=vmem, size = 0x10000, scoped, tag = 'input window, operand 9, single buffered']
    %16 = vsyncpa [#allocation5], 0
    %17 = vsyncpa [#allocation7], 0
    %18 = vsyncpa [#allocation10], 0
    // Predicated region
    $region2: #{generator_forward.1} parent=1 // pred_check
      _
    $region3: #{generator_forward.1} parent=1 // pred_check_branch
      %20 = sbr.rel (0) target = $region5
    $region4: #{generator_forward.1} parent=1 // pred_region
      %s22 = ssub.s32 128, 128
      %23 = vsyncadd [#allocation5], %s22
      %s25 = sshll.u32 [#allocation4], 4
      %s26 = int_to_ptr.vmem [resolvable:$true] %s25
      %28 = dma.hbm_to_vmem [thread:$0]  %s0, 128, %s26, [#allocation5]
    $region5: #{generator_forward.1} parent=1 // pred_fallthru
      _
    // Predicated region
    $region6: #{generator_forward.1} parent=1 // pred_check
      _
    $region7: #{generator_forward.1} parent=1 // pred_check_branch
      %30 = sbr.rel (0) target = $region9
    $region8: #{generator_forward.1} parent=1 // pred_region
      %s32 = ssub.s32 8192, 8192
      %33 = vsyncadd [#allocation7], %s32
      %s34 = sshll.u32 [#allocation6], 4
      %s35 = int_to_ptr.vmem [resolvable:$true] %s34
      %40 = dma.hbm_to_vmem [thread:$0]  %s1, 8192, %s35, [#allocation7], 512, 512, 32
    $region9: #{generator_forward.1} parent=1 // pred_fallthru
      _
    // Predicated region
    $region10: #{generator_forward.1} parent=1 // pred_check
      _
    $region11: #{generator_forward.1} parent=1 // pred_check_branch
      %42 = sbr.rel (0) target = $region13
    $region12: #{generator_forward.1} parent=1 // pred_region
      _
    $region13: #{generator_forward.1} parent=1 // pred_fallthru
      _
    // Predicated region
    $region14: #{generator_forward.1} parent=1 // pred_check
      _
    $region15: #{generator_forward.1} parent=1 // pred_check_branch
      %44 = sbr.rel (0) target = $region17
    $region16: #{generator_forward.1} parent=1 // pred_region
      _
    $region17: #{generator_forward.1} parent=1 // pred_fallthru
      _
    // Predicated region
    $region18: #{generator_forward.1} parent=1 // pred_check
      _
    $region19: #{generator_forward.1} parent=1 // pred_check_branch
      %46 = sbr.rel (0) target = $region21
    $region20: #{generator_forward.1} parent=1 // pred_region
      _
    $region21: #{generator_forward.1} parent=1 // pred_fallthru
      _
    // Predicated region
    $region22: #{generator_forward.1} parent=1 // pred_check
      _
    $region23: #{generator_forward.1} parent=1 // pred_check_branch
      %48 = sbr.rel (0) target = $region25
    $region24: #{generator_forward.1} parent=1 // pred_region
      %s50 = ssub.s32 16384, 16384
      %51 = vsyncadd [#allocation7], %s50
      %s52 = sshll.u32 [#allocation8], 4
      %s53 = int_to_ptr.vmem [resolvable:$true] %s52
      %58 = dma.hbm_to_vmem [thread:$0]  %s5, 16384, %s53, [#allocation7], 256, 256, 16
    $region25: #{generator_forward.1} parent=1 // pred_fallthru
      _
    // Predicated region
    $region26: #{generator_forward.1} parent=1 // pred_check
      _
    $region27: #{generator_forward.1} parent=1 // pred_check_branch
      %60 = sbr.rel (0) target = $region29
    $region28: #{generator_forward.1} parent=1 // pred_region
      _
    $region29: #{generator_forward.1} parent=1 // pred_fallthru
      _
    // Predicated region
    $region30: #{generator_forward.1} parent=1 // pred_check
      _
    $region31: #{generator_forward.1} parent=1 // pred_check_branch
      %62 = sbr.rel (0) target = $region33
    $region32: #{generator_forward.1} parent=1 // pred_region
      _
    $region33: #{generator_forward.1} parent=1 // pred_fallthru
      _
    // Predicated region
    $region34: #{generator_forward.1} parent=1 // pred_check
      _
    $region35: #{generator_forward.1} parent=1 // pred_check_branch
      %64 = sbr.rel (0) target = $region37
    $region36: #{generator_forward.1} parent=1 // pred_region
      %s66 = ssub.s32 8192, 8192
      %67 = vsyncadd [#allocation10], %s66
      %s68 = sshll.u32 [#allocation9], 4
      %s69 = int_to_ptr.vmem [resolvable:$true] %s68
      %74 = dma.hbm_to_vmem [thread:$0]  %s8, 8192, %s69, [#allocation10], 128, 128, 8
    $region37: #{generator_forward.1} parent=1 // pred_fallthru
      _
    // Predicated region
    $region38: #{generator_forward.1} parent=1 // pred_check
      _
    $region39: #{generator_forward.1} parent=1 // pred_check_branch
      %76 = sbr.rel (0) target = $region41
    $region40: #{generator_forward.1} parent=1 // pred_region
      %s78 = ssub.s32 2048, 2048
      %79 = vsyncadd [#allocation10], %s78
      %s80 = sshll.u32 [#allocation11], 4
      %s81 = int_to_ptr.vmem [resolvable:$true] %s80
      %86 = dma.hbm_to_vmem [thread:$0]  %s9, 2048, %s81, [#allocation10], 128, 128, 8
    $region41: #{generator_forward.1} parent=1 // pred_fallthru
      _
    // Predicated region
    $region42: #{generator_forward.1} parent=1 // pred_check
      _
    $region43: #{generator_forward.1} parent=1 // pred_check_branch
      %88 = sbr.rel (0) target = $region45
    $region44: #{generator_forward.1} parent=1 // pred_region
      _
    $region45: #{generator_forward.1} parent=1 // pred_fallthru
      _
    // Predicated region
    $region46: #{generator_forward.1} parent=1 // pred_check
      _
    $region47: #{generator_forward.1} parent=1 // pred_check_branch
      %90 = sbr.rel (0) target = $region49
    $region48: #{generator_forward.1} parent=1 // pred_region
      %91 = dma.done [#allocation5], 128
    $region49: #{generator_forward.1} parent=1 // pred_fallthru
      _
    // Predicated region
    $region50: #{generator_forward.1} parent=1 // pred_check
      _
    $region51: #{generator_forward.1} parent=1 // pred_check_branch
      %93 = sbr.rel (0) target = $region53
    $region52: #{generator_forward.1} parent=1 // pred_region
      %94 = dma.done [#allocation7], 8192
    $region53: #{generator_forward.1} parent=1 // pred_fallthru
      _
    // Predicated region
    $region54: #{generator_forward.1} parent=1 // pred_check
      _
    $region55: #{generator_forward.1} parent=1 // pred_check_branch
      %96 = sbr.rel (0) target = $region57
    $region56: #{generator_forward.1} parent=1 // pred_region
      %97 = dma.done [#allocation7], 16384
    $region57: #{generator_forward.1} parent=1 // pred_fallthru
      _
    // Predicated region
    $region58: #{generator_forward.1} parent=1 // pred_check
      _
    $region59: #{generator_forward.1} parent=1 // pred_check_branch
      %99 = sbr.rel (0) target = $region61
    $region60: #{generator_forward.1} parent=1 // pred_region
      %100 = dma.done [#allocation10], 8192
    $region61: #{generator_forward.1} parent=1 // pred_fallthru
      _
    // Predicated region
    $region62: #{generator_forward.1} parent=1 // pred_check
      _
    $region63: #{generator_forward.1} parent=1 // pred_check_branch
      %102 = sbr.rel (0) target = $region65
    $region64: #{generator_forward.1} parent=1 // pred_region
      %103 = dma.done [#allocation10], 2048
    $region65: #{generator_forward.1} parent=1 // pred_fallthru
      _
    %v104 = vld [vmem:[#allocation4] sm:$0xff]
    %v105 = vld [vmem:[#allocation6] sm:$0xff]
    %v106 = vld [vmem:[#allocation6 + $0x8] sm:$0xff]
    %v107 = vld [vmem:[#allocation6 + $0x10] sm:$0xff]
    %v108 = vld [vmem:[#allocation6 + $0x18] sm:$0xff]
    %v109 = vld [vmem:[#allocation6 + $0x20] sm:$0xff]
    %v110 = vld [vmem:[#allocation6 + $0x28] sm:$0xff]
    %v111 = vld [vmem:[#allocation6 + $0x30] sm:$0xff]
    %v112 = vld [vmem:[#allocation6 + $0x38] sm:$0xff]
    %v113 = vld [vmem:[#allocation6 + $0x40] sm:$0xff]
    %v114 = vld [vmem:[#allocation6 + $0x48] sm:$0xff]
    %v115 = vld [vmem:[#allocation6 + $0x50] sm:$0xff]
    %v116 = vld [vmem:[#allocation6 + $0x58] sm:$0xff]
    %v117 = vld [vmem:[#allocation6 + $0x60] sm:$0xff]
    %v118 = vld [vmem:[#allocation6 + $0x68] sm:$0xff]
    %v119 = vld [vmem:[#allocation6 + $0x70] sm:$0xff]
    %v120 = vld [vmem:[#allocation6 + $0x78] sm:$0xff]
    %v121 = vld [vmem:[#allocation6 + $0x80] sm:$0xff]
    %v122 = vld [vmem:[#allocation6 + $0x88] sm:$0xff]
    %v123 = vld [vmem:[#allocation6 + $0x90] sm:$0xff]
    %v124 = vld [vmem:[#allocation6 + $0x98] sm:$0xff]
    %v125 = vld [vmem:[#allocation6 + $0xa0] sm:$0xff]
    %v126 = vld [vmem:[#allocation6 + $0xa8] sm:$0xff]
    %v127 = vld [vmem:[#allocation6 + $0xb0] sm:$0xff]
    %v128 = vld [vmem:[#allocation6 + $0xb8] sm:$0xff]
    %v129 = vld [vmem:[#allocation6 + $0xc0] sm:$0xff]
    %v130 = vld [vmem:[#allocation6 + $0xc8] sm:$0xff]
    %v131 = vld [vmem:[#allocation6 + $0xd0] sm:$0xff]
    %v132 = vld [vmem:[#allocation6 + $0xd8] sm:$0xff]
    %v133 = vld [vmem:[#allocation6 + $0xe0] sm:$0xff]
    %v134 = vld [vmem:[#allocation6 + $0xe8] sm:$0xff]
    %v135 = vld [vmem:[#allocation6 + $0xf0] sm:$0xff]
    %v136 = vld [vmem:[#allocation6 + $0xf8] sm:$0xff]
    %v137 = vld [vmem:[#allocation6 + $0x100] sm:$0xff]
    %v138 = vld [vmem:[#allocation6 + $0x108] sm:$0xff]
    %v139 = vld [vmem:[#allocation6 + $0x110] sm:$0xff]
    %v140 = vld [vmem:[#allocation6 + $0x118] sm:$0xff]
    %v141 = vld [vmem:[#allocation6 + $0x120] sm:$0xff]
    %v142 = vld [vmem:[#allocation6 + $0x128] sm:$0xff]
    %v143 = vld [vmem:[#allocation6 + $0x130] sm:$0xff]
    %v144 = vld [vmem:[#allocation6 + $0x138] sm:$0xff]
    %v145 = vld [vmem:[#allocation6 + $0x140] sm:$0xff]
    %v146 = vld [vmem:[#allocation6 + $0x148] sm:$0xff]
    %v147 = vld [vmem:[#allocation6 + $0x150] sm:$0xff]
    %v148 = vld [vmem:[#allocation6 + $0x158] sm:$0xff]
    %v149 = vld [vmem:[#allocation6 + $0x160] sm:$0xff]
    %v150 = vld [vmem:[#allocation6 + $0x168] sm:$0xff]
    %v151 = vld [vmem:[#allocation6 + $0x170] sm:$0xff]
    %v152 = vld [vmem:[#allocation6 + $0x178] sm:$0xff]
    %v153 = vld [vmem:[#allocation6 + $0x180] sm:$0xff]
    %v154 = vld [vmem:[#allocation6 + $0x188] sm:$0xff]
    %v155 = vld [vmem:[#allocation6 + $0x190] sm:$0xff]
    %v156 = vld [vmem:[#allocation6 + $0x198] sm:$0xff]
    %v157 = vld [vmem:[#allocation6 + $0x1a0] sm:$0xff]
    %v158 = vld [vmem:[#allocation6 + $0x1a8] sm:$0xff]
    %v159 = vld [vmem:[#allocation6 + $0x1b0] sm:$0xff]
    %v160 = vld [vmem:[#allocation6 + $0x1b8] sm:$0xff]
    %v161 = vld [vmem:[#allocation6 + $0x1c0] sm:$0xff]
    %v162 = vld [vmem:[#allocation6 + $0x1c8] sm:$0xff]
    %v163 = vld [vmem:[#allocation6 + $0x1d0] sm:$0xff]
    %v164 = vld [vmem:[#allocation6 + $0x1d8] sm:$0xff]
    %v165 = vld [vmem:[#allocation6 + $0x1e0] sm:$0xff]
    %v166 = vld [vmem:[#allocation6 + $0x1e8] sm:$0xff]
    %v167 = vld [vmem:[#allocation6 + $0x1f0] sm:$0xff]
    %v168 = vld [vmem:[#allocation6 + $0x1f8] sm:$0xff]
    %v169 = vld [vmem:[%s2] sm:$0xf]
    %v171 = vlaneseq
    %v172 = vshrl.u32 %v171, 7
    %v173 = vsub.s32 0, %v172
    %v174 = vrot.slane %v169, %v173
    %v175 = vlaneseq
    %v176 = vshrl.u32 %v175, 7
    %v177 = vsub.s32 1, %v176
    %v178 = vrot.slane %v169, %v177
    %v179 = vlaneseq
    %v180 = vshrl.u32 %v179, 7
    %v181 = vsub.s32 2, %v180
    %v182 = vrot.slane %v169, %v181
    %v183 = vlaneseq
    %v184 = vshrl.u32 %v183, 7
    %v185 = vsub.s32 3, %v184
    %v186 = vrot.slane %v169, %v185
    %191 = vmatprep.subr.mxu0 %v106
    %192 = vmatpush1.msra.mxu0 %v105
    %193 = vmatprep.subr.mxu0 %v110
    %194 = vmatpush1.msra.mxu0 %v109
    %195 = vmatprep.subr.mxu0 %v114
    %196 = vmatpush1.msra.mxu0 %v113
    %197 = vmatprep.subr.mxu0 %v118
    %198 = vmatpush1.msra.mxu0 %v117
    %199 = vmatprep.subr.mxu0 %v122
    %200 = vmatpush1.msra.mxu0 %v121
    %201 = vmatprep.subr.mxu0 %v126
    %202 = vmatpush1.msra.mxu0 %v125
    %203 = vmatprep.subr.mxu0 %v130
    %204 = vmatpush1.msra.mxu0 %v129
    %205 = vmatprep.subr.mxu0 %v134
    %206 = vmatpush1.msra.mxu0 %v133
    %207 = vmatprep.subr.mxu0 %v138
    %208 = vmatpush1.msra.mxu0 %v137
    %209 = vmatprep.subr.mxu0 %v142
    %210 = vmatpush1.msra.mxu0 %v141
    %211 = vmatprep.subr.mxu0 %v146
    %212 = vmatpush1.msra.mxu0 %v145
    %213 = vmatprep.subr.mxu0 %v150
    %214 = vmatpush1.msra.mxu0 %v149
    %215 = vmatprep.subr.mxu0 %v154
    %216 = vmatpush1.msra.mxu0 %v153
    %217 = vmatprep.subr.mxu0 %v158
    %218 = vmatpush1.msra.mxu0 %v157
    %219 = vmatprep.subr.mxu0 %v162
    %220 = vmatpush1.msra.mxu0 %v161
    %221 = vmatprep.subr.mxu0 %v166
    %222 = vmatpush1.msra.mxu0 %v165
    %223 = vmatprep.subr.mxu0 0.0
    %224 = vmatpush1.msra.mxu0 0.0
    %225 = vmatprep.subr.mxu0 0.0
    %226 = vmatpush1.msra.mxu0 0.0
    %227 = vmatprep.subr.mxu0 0.0
    %228 = vmatpush1.msra.mxu0 0.0
    %229 = vmatprep.subr.mxu0 0.0
    %230 = vmatpush1.msra.mxu0 0.0
    %231 = vmatprep.subr.mxu0 0.0
    %232 = vmatpush1.msra.mxu0 0.0
    %233 = vmatprep.subr.mxu0 0.0
    %234 = vmatpush1.msra.mxu0 0.0
    %235 = vmatprep.subr.mxu0 0.0
    %236 = vmatpush1.msra.mxu0 0.0
    %237 = vmatprep.subr.mxu0 0.0
    %238 = vmatpush1.msra.mxu0 0.0
    %239 = vmatprep.subr.mxu0 0.0
    %240 = vmatpush1.msra.mxu0 0.0
    %241 = vmatprep.subr.mxu0 0.0
    %242 = vmatpush1.msra.mxu0 0.0
    %243 = vmatprep.subr.mxu0 0.0
    %244 = vmatpush1.msra.mxu0 0.0
    %245 = vmatprep.subr.mxu0 0.0
    %246 = vmatpush1.msra.mxu0 0.0
    %247 = vmatprep.subr.mxu0 0.0
    %248 = vmatpush1.msra.mxu0 0.0
    %249 = vmatprep.subr.mxu0 0.0
    %250 = vmatpush1.msra.mxu0 0.0
    %251 = vmatprep.subr.mxu0 0.0
    %252 = vmatpush1.msra.mxu0 0.0
    %253 = vmatprep.subr.mxu0 0.0
    %254 = vmatpush1.msra.mxu0 0.0
    %255 = vmatprep.mubr.f32.mxu0 0.0
    %256 = vmatmul.mubr.f32.gmra.mrb[0].mxu0 %v104
    %v257 = vpop.f32.mrb[0].mxu0
    %v258 = vadd.f32 %v174, %v257
    %v259 = vpop.f32.mrb[0].mxu0
    %v260 = vadd.f32 %v178, %v259
    %261 = vdwg.mxu0
    %262 = vmatprep.subr.mxu0 %v108
    %263 = vmatpush1.msra.mxu0 %v107
    %264 = vmatprep.subr.mxu0 %v112
    %265 = vmatpush1.msra.mxu0 %v111
    %266 = vmatprep.subr.mxu0 %v116
    %267 = vmatpush1.msra.mxu0 %v115
    %268 = vmatprep.subr.mxu0 %v120
    %269 = vmatpush1.msra.mxu0 %v119
    %270 = vmatprep.subr.mxu0 %v124
    %271 = vmatpush1.msra.mxu0 %v123
    %272 = vmatprep.subr.mxu0 %v128
    %273 = vmatpush1.msra.mxu0 %v127
    %274 = vmatprep.subr.mxu0 %v132
    %275 = vmatpush1.msra.mxu0 %v131
    %276 = vmatprep.subr.mxu0 %v136
    %277 = vmatpush1.msra.mxu0 %v135
    %278 = vmatprep.subr.mxu0 %v140
    %279 = vmatpush1.msra.mxu0 %v139
    %280 = vmatprep.subr.mxu0 %v144
    %281 = vmatpush1.msra.mxu0 %v143
    %282 = vmatprep.subr.mxu0 %v148
    %283 = vmatpush1.msra.mxu0 %v147
    %284 = vmatprep.subr.mxu0 %v152
    %285 = vmatpush1.msra.mxu0 %v151
    %286 = vmatprep.subr.mxu0 %v156
    %287 = vmatpush1.msra.mxu0 %v155
    %288 = vmatprep.subr.mxu0 %v160
    %289 = vmatpush1.msra.mxu0 %v159
    %290 = vmatprep.subr.mxu0 %v164
    %291 = vmatpush1.msra.mxu0 %v163
    %292 = vmatprep.subr.mxu0 %v168
    %293 = vmatpush1.msra.mxu0 %v167
    %294 = vmatprep.subr.mxu0 0.0
    %295 = vmatpush1.msra.mxu0 0.0
    %296 = vmatprep.subr.mxu0 0.0
    %297 = vmatpush1.msra.mxu0 0.0
    %298 = vmatprep.subr.mxu0 0.0
    %299 = vmatpush1.msra.mxu0 0.0
    %300 = vmatprep.subr.mxu0 0.0
    %301 = vmatpush1.msra.mxu0 0.0
    %302 = vmatprep.subr.mxu0 0.0
    %303 = vmatpush1.msra.mxu0 0.0
    %304 = vmatprep.subr.mxu0 0.0
    %305 = vmatpush1.msra.mxu0 0.0
    %306 = vmatprep.subr.mxu0 0.0
    %307 = vmatpush1.msra.mxu0 0.0
    %308 = vmatprep.subr.mxu0 0.0
    %309 = vmatpush1.msra.mxu0 0.0
    %310 = vmatprep.subr.mxu0 0.0
    %311 = vmatpush1.msra.mxu0 0.0
    %312 = vmatprep.subr.mxu0 0.0
    %313 = vmatpush1.msra.mxu0 0.0
    %314 = vmatprep.subr.mxu0 0.0
    %315 = vmatpush1.msra.mxu0 0.0
    %316 = vmatprep.subr.mxu0 0.0
    %317 = vmatpush1.msra.mxu0 0.0
    %318 = vmatprep.subr.mxu0 0.0
    %319 = vmatpush1.msra.mxu0 0.0
    %320 = vmatprep.subr.mxu0 0.0
    %321 = vmatpush1.msra.mxu0 0.0
    %322 = vmatprep.subr.mxu0 0.0
    %323 = vmatpush1.msra.mxu0 0.0
    %324 = vmatprep.subr.mxu0 0.0
    %325 = vmatpush1.msra.mxu0 0.0
    %326 = vmatprep.mubr.f32.mxu0 0.0
    %327 = vmatmul.mubr.f32.gmra.mrb[0].mxu0 %v104
    %v328 = vpop.f32.mrb[0].mxu0
    %v329 = vadd.f32 %v182, %v328
    %v330 = vpop.f32.mrb[0].mxu0
    %v331 = vadd.f32 %v186, %v330
    %332 = vdwg.mxu0
    %v333 = vrot.slane %v258, 4
    %v334 = vadd.f32 %v258, %v333
    %v335 = vrot.slane %v334, 2
    %v336 = vadd.f32 %v334, %v335
    %v337 = vrot.slane %v336, 1
    %v338 = vadd.f32 %v336, %v337
    %v339 = vrot.slane %v260, 4
    %v340 = vadd.f32 %v260, %v339
    %v341 = vrot.slane %v340, 2
    %v342 = vadd.f32 %v340, %v341
    %v343 = vrot.slane %v342, 1
    %v344 = vadd.f32 %v342, %v343
    %v345 = vrot.slane %v329, 4
    %v346 = vadd.f32 %v329, %v345
    %v347 = vrot.slane %v346, 2
    %v348 = vadd.f32 %v346, %v347
    %v349 = vrot.slane %v348, 1
    %v350 = vadd.f32 %v348, %v349
    %v351 = vrot.slane %v331, 4
    %v352 = vadd.f32 %v331, %v351
    %v353 = vrot.slane %v352, 2
    %v354 = vadd.f32 %v352, %v353
    %v355 = vrot.slane %v354, 1
    %v356 = vadd.f32 %v354, %v355
    %v357 = vmul.f32 %v338, 0.125
    %v358 = vmul.f32 %v344, 0.125
    %v359 = vmul.f32 %v350, 0.125
    %v360 = vmul.f32 %v356, 0.125
    %v361 = vmul.f32 %v258, %v258
    %v362 = vmul.f32 %v260, %v260
    %v363 = vmul.f32 %v329, %v329
    %v364 = vmul.f32 %v331, %v331
    %v365 = vrot.slane %v361, 4
    %v366 = vadd.f32 %v361, %v365
    %v367 = vrot.slane %v366, 2
    %v368 = vadd.f32 %v366, %v367
    %v369 = vrot.slane %v368, 1
    %v370 = vadd.f32 %v368, %v369
    %v371 = vrot.slane %v362, 4
    %v372 = vadd.f32 %v362, %v371
    %v373 = vrot.slane %v372, 2
    %v374 = vadd.f32 %v372, %v373
    %v375 = vrot.slane %v374, 1
    %v376 = vadd.f32 %v374, %v375
    %v377 = vrot.slane %v363, 4
    %v378 = vadd.f32 %v363, %v377
    %v379 = vrot.slane %v378, 2
    %v380 = vadd.f32 %v378, %v379
    %v381 = vrot.slane %v380, 1
    %v382 = vadd.f32 %v380, %v381
    %v383 = vrot.slane %v364, 4
    %v384 = vadd.f32 %v364, %v383
    %v385 = vrot.slane %v384, 2
    %v386 = vadd.f32 %v384, %v385
    %v387 = vrot.slane %v386, 1
    %v388 = vadd.f32 %v386, %v387
    %v389 = vmul.f32 %v370, 0.125
    %v390 = vmul.f32 %v376, 0.125
    %v391 = vmul.f32 %v382, 0.125
    %v392 = vmul.f32 %v388, 0.125
    %v393 = vmul.f32 %v357, %v357
    %v394 = vmul.f32 %v358, %v358
    %v395 = vmul.f32 %v359, %v359
    %v396 = vmul.f32 %v360, %v360
    %v397 = vsub.f32 %v389, %v393
    %v398 = vsub.f32 %v390, %v394
    %v399 = vsub.f32 %v391, %v395
    %v400 = vsub.f32 %v392, %v396
    %v401 = vmax.f32 %v397, 0.0
    %v402 = vmax.f32 %v398, 0.0
    %v403 = vmax.f32 %v399, 0.0
    %v404 = vmax.f32 %v400, 0.0
    %v405 = vadd.f32 %v401, 1e-05
    %v406 = vadd.f32 %v402, 1e-05
    %v407 = vadd.f32 %v403, 1e-05
    %v408 = vadd.f32 %v404, 1e-05
    %v409 = vrsqrt.pop %v405
    %v410 = vrsqrt.pop %v406
    %v411 = vrsqrt.pop %v407
    %v412 = vrsqrt.pop %v408
    %v413 = vld [vmem:[%s3] sm:$0xf]
    %v415 = vlaneseq
    %v416 = vshrl.u32 %v415, 7
    %v417 = vsub.s32 0, %v416
    %v418 = vrot.slane %v413, %v417
    %v419 = vlaneseq
    %v420 = vshrl.u32 %v419, 7
    %v421 = vsub.s32 1, %v420
    %v422 = vrot.slane %v413, %v421
    %v423 = vlaneseq
    %v424 = vshrl.u32 %v423, 7
    %v425 = vsub.s32 2, %v424
    %v426 = vrot.slane %v413, %v425
    %v427 = vlaneseq
    %v428 = vshrl.u32 %v427, 7
    %v429 = vsub.s32 3, %v428
    %v430 = vrot.slane %v413, %v429
    %v435 = vmul.f32 %v409, %v418
    %v436 = vmul.f32 %v410, %v422
    %v437 = vmul.f32 %v411, %v426
    %v438 = vmul.f32 %v412, %v430
    %v439 = vld [vmem:[%s4] sm:$0xf]
    %v440 = vmul.f32 %v357, %v435
    %v441 = vmul.f32 %v358, %v436
    %v442 = vmul.f32 %v359, %v437
    %v443 = vmul.f32 %v360, %v438
    %v448 = vcombine.low %v440, %v441
    %v449 = vcombine.low %v442, %v443
    %v451 = vunpack.c.l.s4 1966171168
    %v452 = vunpack.c.0.s8 %v451
    %v453 = vlaneseq
    %v454 = vshrl.u32 %v453, 7
    %v455 = vsub.s32 %v452, %v454
    %v456 = vrot.slane %v448, %v455
    %v458 = vunpack.c.l.s4 1966171168
    %v459 = vunpack.c.0.s8 %v458
    %v460 = vlaneseq
    %v461 = vshrl.u32 %v460, 7
    %v462 = vsub.s32 %v459, %v461
    %v463 = vrot.slane %v449, %v462
    %v464 = vcombine.low %v456, %v463
    %v466 = vunpack.c.l.s4 1966171168
    %v467 = vunpack.c.0.s8 %v466
    %v468 = vlaneseq
    %v469 = vshrl.u32 %v468, 7
    %v470 = vsub.s32 %v467, %v469
    %v471 = vrot.slane %v464, %v470
    %v473 = vsub.f32 %v439, %v471
    %v474 = vlaneseq
    %v475 = vshrl.u32 %v474, 7
    %v476 = vsub.s32 0, %v475
    %v477 = vrot.slane %v435, %v476
    %v478 = vlaneseq
    %v479 = vshrl.u32 %v478, 7
    %v480 = vsub.s32 0, %v479
    %v481 = vrot.slane %v436, %v480
    %v482 = vlaneseq
    %v483 = vshrl.u32 %v482, 7
    %v484 = vsub.s32 0, %v483
    %v485 = vrot.slane %v437, %v484
    %v486 = vlaneseq
    %v487 = vshrl.u32 %v486, 7
    %v488 = vsub.s32 0, %v487
    %v489 = vrot.slane %v438, %v488
    %v490 = vmul.f32 %v258, %v477
    %v491 = vmul.f32 %v260, %v481
    %v492 = vmul.f32 %v329, %v485
    %v493 = vmul.f32 %v331, %v489
    %v495 = vlaneseq
    %v496 = vshrl.u32 %v495, 7
    %v497 = vsub.s32 0, %v496
    %v498 = vrot.slane %v473, %v497
    %v499 = vlaneseq
    %v500 = vshrl.u32 %v499, 7
    %v501 = vsub.s32 1, %v500
    %v502 = vrot.slane %v473, %v501
    %v503 = vlaneseq
    %v504 = vshrl.u32 %v503, 7
    %v505 = vsub.s32 2, %v504
    %v506 = vrot.slane %v473, %v505
    %v507 = vlaneseq
    %v508 = vshrl.u32 %v507, 7
    %v509 = vsub.s32 3, %v508
    %v510 = vrot.slane %v473, %v509
    %v515 = vadd.f32 %v490, %v498
    %v516 = vadd.f32 %v491, %v502
    %v517 = vadd.f32 %v492, %v506
    %v518 = vadd.f32 %v493, %v510
    %vm519 = vcmp.ge.f32.partialorder %v515, 0.0
    %vm520 = vcmp.ge.f32.partialorder %v516, 0.0
    %vm521 = vcmp.ge.f32.partialorder %v517, 0.0
    %vm522 = vcmp.ge.f32.partialorder %v518, 0.0
    %v523 = vmul.f32 %v515, 0.01
    %v524 = vmul.f32 %v516, 0.01
    %v525 = vmul.f32 %v517, 0.01
    %v526 = vmul.f32 %v518, 0.01
    %v527 = vsel %vm519, %v515, %v523
    %v528 = vsel %vm520, %v516, %v524
    %v529 = vsel %vm521, %v517, %v525
    %v530 = vsel %vm522, %v518, %v526
    %531 = vst [vmem:[#allocation2] sm:$0xff] %v527
    %532 = vst [vmem:[#allocation2 + $0x8] sm:$0xff] %v528
    %533 = vst [vmem:[#allocation2 + $0x10] sm:$0xff] %v529
    %534 = vst [vmem:[#allocation2 + $0x18] sm:$0xff] %v530
    %v535 = vld [vmem:[#allocation2] sm:$0xff]
    %v536 = vld [vmem:[#allocation2 + $0x8] sm:$0xff]
    %v537 = vld [vmem:[#allocation2 + $0x10] sm:$0xff]
    %v538 = vld [vmem:[#allocation2 + $0x18] sm:$0xff]
    %v539 = vld [vmem:[#allocation8] sm:$0xff]
    %v540 = vld [vmem:[#allocation8 + $0x8] sm:$0xff]
    %v541 = vld [vmem:[#allocation8 + $0x10] sm:$0xff]
    %v542 = vld [vmem:[#allocation8 + $0x18] sm:$0xff]
    %v543 = vld [vmem:[#allocation8 + $0x20] sm:$0xff]
    %v544 = vld [vmem:[#allocation8 + $0x28] sm:$0xff]
    %v545 = vld [vmem:[#allocation8 + $0x30] sm:$0xff]
    %v546 = vld [vmem:[#allocation8 + $0x38] sm:$0xff]
    %v547 = vld [vmem:[#allocation8 + $0x40] sm:$0xff]
    %v548 = vld [vmem:[#allocation8 + $0x48] sm:$0xff]
    %v549 = vld [vmem:[#allocation8 + $0x50] sm:$0xff]
    %v550 = vld [vmem:[#allocation8 + $0x58] sm:$0xff]
    %v551 = vld [vmem:[#allocation8 + $0x60] sm:$0xff]
    %v552 = vld [vmem:[#allocation8 + $0x68] sm:$0xff]
    %v553 = vld [vmem:[#allocation8 + $0x70] sm:$0xff]
    %v554 = vld [vmem:[#allocation8 + $0x78] sm:$0xff]
    %v555 = vld [vmem:[#allocation8 + $0x80] sm:$0xff]
    %v556 = vld [vmem:[#allocation8 + $0x88] sm:$0xff]
    %v557 = vld [vmem:[#allocation8 + $0x90] sm:$0xff]
    %v558 = vld [vmem:[#allocation8 + $0x98] sm:$0xff]
    %v559 = vld [vmem:[#allocation8 + $0xa0] sm:$0xff]
    %v560 = vld [vmem:[#allocation8 + $0xa8] sm:$0xff]
    %v561 = vld [vmem:[#allocation8 + $0xb0] sm:$0xff]
    %v562 = vld [vmem:[#allocation8 + $0xb8] sm:$0xff]
    %v563 = vld [vmem:[#allocation8 + $0xc0] sm:$0xff]
    %v564 = vld [vmem:[#allocation8 + $0xc8] sm:$0xff]
    %v565 = vld [vmem:[#allocation8 + $0xd0] sm:$0xff]
    %v566 = vld [vmem:[#allocation8 + $0xd8] sm:$0xff]
    %v567 = vld [vmem:[#allocation8 + $0xe0] sm:$0xff]
    %v568 = vld [vmem:[#allocation8 + $0xe8] sm:$0xff]
    %v569 = vld [vmem:[#allocation8 + $0xf0] sm:$0xff]
    %v570 = vld [vmem:[#allocation8 + $0xf8] sm:$0xff]
    %571 = vmatprep.subr.mxu0 %v540
    %572 = vmatpush1.msra.mxu0 %v539
    %573 = vmatprep.subr.mxu0 %v542
    %574 = vmatpush1.msra.mxu0 %v541
    %575 = vmatprep.subr.mxu0 %v544
    %576 = vmatpush1.msra.mxu0 %v543
    %577 = vmatprep.subr.mxu0 %v546
    %578 = vmatpush1.msra.mxu0 %v545
    %579 = vmatprep.subr.mxu0 %v548
    %580 = vmatpush1.msra.mxu0 %v547
    %581 = vmatprep.subr.mxu0 %v550
    %582 = vmatpush1.msra.mxu0 %v549
    %583 = vmatprep.subr.mxu0 %v552
    %584 = vmatpush1.msra.mxu0 %v551
    %585 = vmatprep.subr.mxu0 %v554
    %586 = vmatpush1.msra.mxu0 %v553
    %587 = vmatprep.subr.mxu0 %v556
    %588 = vmatpush1.msra.mxu0 %v555
    %589 = vmatprep.subr.mxu0 %v558
    %590 = vmatpush1.msra.mxu0 %v557
    %591 = vmatprep.subr.mxu0 %v560
    %592 = vmatpush1.msra.mxu0 %v559
    %593 = vmatprep.subr.mxu0 %v562
    %594 = vmatpush1.msra.mxu0 %v561
    %595 = vmatprep.subr.mxu0 %v564
    %596 = vmatpush1.msra.mxu0 %v563
    %597 = vmatprep.subr.mxu0 %v566
    %598 = vmatpush1.msra.mxu0 %v565
    %599 = vmatprep.subr.mxu0 %v568
    %600 = vmatpush1.msra.mxu0 %v567
    %601 = vmatprep.subr.mxu0 %v570
    %602 = vmatpush1.msra.mxu0 %v569
    %603 = vmatprep.subr.mxu0 0.0
    %604 = vmatpush1.msra.mxu0 0.0
    %605 = vmatprep.subr.mxu0 0.0
    %606 = vmatpush1.msra.mxu0 0.0
    %607 = vmatprep.subr.mxu0 0.0
    %608 = vmatpush1.msra.mxu0 0.0
    %609 = vmatprep.subr.mxu0 0.0
    %610 = vmatpush1.msra.mxu0 0.0
    %611 = vmatprep.subr.mxu0 0.0
    %612 = vmatpush1.msra.mxu0 0.0
    %613 = vmatprep.subr.mxu0 0.0
    %614 = vmatpush1.msra.mxu0 0.0
    %615 = vmatprep.subr.mxu0 0.0
    %616 = vmatpush1.msra.mxu0 0.0
    %617 = vmatprep.subr.mxu0 0.0
    %618 = vmatpush1.msra.mxu0 0.0
    %619 = vmatprep.subr.mxu0 0.0
    %620 = vmatpush1.msra.mxu0 0.0
    %621 = vmatprep.subr.mxu0 0.0
    %622 = vmatpush1.msra.mxu0 0.0
    %623 = vmatprep.subr.mxu0 0.0
    %624 = vmatpush1.msra.mxu0 0.0
    %625 = vmatprep.subr.mxu0 0.0
    %626 = vmatpush1.msra.mxu0 0.0
    %627 = vmatprep.subr.mxu0 0.0
    %628 = vmatpush1.msra.mxu0 0.0
    %629 = vmatprep.subr.mxu0 0.0
    %630 = vmatpush1.msra.mxu0 0.0
    %631 = vmatprep.subr.mxu0 0.0
    %632 = vmatpush1.msra.mxu0 0.0
    %633 = vmatprep.subr.mxu0 0.0
    %634 = vmatpush1.msra.mxu0 0.0
    %635 = vmatprep.mubr.f32.mxu0 0.0
    %636 = vmatmul.mubr.f32.gmra.mrb[0].mxu0 %v535
    %v637 = vpop.f32.mrb[0].mxu0
    %v638 = vadd.f32 0.0, %v637
    %v639 = vpop.f32.mrb[0].mxu0
    %v640 = vadd.f32 0.0, %v639
    %641 = vmatprep.mubr.f32.mxu0 0.0
    %642 = vmatmul.mubr.f32.gmra.mrb[0].mxu0 %v536
    %v643 = vpop.f32.mrb[0].mxu0
    %v644 = vadd.f32 0.0, %v643
    %v645 = vpop.f32.mrb[0].mxu0
    %v646 = vadd.f32 0.0, %v645
    %647 = vmatprep.mubr.f32.mxu0 0.0
    %648 = vmatmul.mubr.f32.gmra.mrb[0].mxu0 %v537
    %v649 = vpop.f32.mrb[0].mxu0
    %v650 = vadd.f32 0.0, %v649
    %v651 = vpop.f32.mrb[0].mxu0
    %v652 = vadd.f32 0.0, %v651
    %653 = vmatprep.mubr.f32.mxu0 0.0
    %654 = vmatmul.mubr.f32.gmra.mrb[0].mxu0 %v538
    %v655 = vpop.f32.mrb[0].mxu0
    %v656 = vadd.f32 0.0, %v655
    %v657 = vpop.f32.mrb[0].mxu0
    %v658 = vadd.f32 0.0, %v657
    %659 = vdwg.mxu0
    %v660 = vadd.f32 %v638, %v644
    %v661 = vadd.f32 %v660, %v650
    %v662 = vadd.f32 %v661, %v656
    %v663 = vrot.slane %v662, 4
    %v664 = vadd.f32 %v662, %v663
    %v665 = vrot.slane %v664, 2
    %v666 = vadd.f32 %v664, %v665
    %v667 = vrot.slane %v666, 1
    %v668 = vadd.f32 %v666, %v667
    %v669 = vadd.f32 %v640, %v646
    %v670 = vadd.f32 %v669, %v652
    %v671 = vadd.f32 %v670, %v658
    %v672 = vrot.slane %v671, 4
    %v673 = vadd.f32 %v671, %v672
    %v674 = vrot.slane %v673, 2
    %v675 = vadd.f32 %v673, %v674
    %v676 = vrot.slane %v675, 1
    %v677 = vadd.f32 %v675, %v676
    %v678 = vadd.f32 %v668, %v677
    %v679 = vmul.f32 %v678, 0.00390625
    %v680 = vmul.f32 %v638, %v638
    %v681 = vmul.f32 %v644, %v644
    %v682 = vmul.f32 %v650, %v650
    %v683 = vmul.f32 %v656, %v656
    %v684 = vadd.f32 %v680, %v681
    %v685 = vadd.f32 %v684, %v682
    %v686 = vadd.f32 %v685, %v683
    %v687 = vrot.slane %v686, 4
    %v688 = vadd.f32 %v686, %v687
    %v689 = vrot.slane %v688, 2
    %v690 = vadd.f32 %v688, %v689
    %v691 = vrot.slane %v690, 1
    %v692 = vadd.f32 %v690, %v691
    %v693 = vmul.f32 %v640, %v640
    %v694 = vmul.f32 %v646, %v646
    %v695 = vmul.f32 %v652, %v652
    %v696 = vmul.f32 %v658, %v658
    %v697 = vadd.f32 %v693, %v694
    %v698 = vadd.f32 %v697, %v695
    %v699 = vadd.f32 %v698, %v696
    %v700 = vrot.slane %v699, 4
    %v701 = vadd.f32 %v699, %v700
    %v702 = vrot.slane %v701, 2
    %v703 = vadd.f32 %v701, %v702
    %v704 = vrot.slane %v703, 1
    %v705 = vadd.f32 %v703, %v704
    %v706 = vadd.f32 %v692, %v705
    %v707 = vmul.f32 %v706, 0.00390625
    %v708 = vld [vmem:[#allocation9] sm:$0xff]
    %v709 = vld [vmem:[#allocation9 + $0x8] sm:$0xff]
    %v710 = vld [vmem:[#allocation9 + $0x10] sm:$0xff]
    %v711 = vld [vmem:[#allocation9 + $0x18] sm:$0xff]
    %v712 = vld [vmem:[#allocation9 + $0x20] sm:$0xff]
    %v713 = vld [vmem:[#allocation9 + $0x28] sm:$0xff]
    %v714 = vld [vmem:[#allocation9 + $0x30] sm:$0xff]
    %v715 = vld [vmem:[#allocation9 + $0x38] sm:$0xff]
    %v716 = vld [vmem:[#allocation9 + $0x40] sm:$0xff]
    %v717 = vld [vmem:[#allocation9 + $0x48] sm:$0xff]
    %v718 = vld [vmem:[#allocation9 + $0x50] sm:$0xff]
    %v719 = vld [vmem:[#allocation9 + $0x58] sm:$0xff]
    %v720 = vld [vmem:[#allocation9 + $0x60] sm:$0xff]
    %v721 = vld [vmem:[#allocation9 + $0x68] sm:$0xff]
    %v722 = vld [vmem:[#allocation9 + $0x70] sm:$0xff]
    %v723 = vld [vmem:[#allocation9 + $0x78] sm:$0xff]
    %724 = vmatprep.subr.mxu0 0.0
    %725 = vmatpush1.msra.mxu0 %v708
    %726 = vmatprep.subr.mxu0 0.0
    %727 = vmatpush1.msra.mxu0 %v709
    %728 = vmatprep.subr.mxu0 0.0
    %729 = vmatpush1.msra.mxu0 %v710
    %730 = vmatprep.subr.mxu0 0.0
    %731 = vmatpush1.msra.mxu0 %v711
    %732 = vmatprep.subr.mxu0 0.0
    %733 = vmatpush1.msra.mxu0 %v712
    %734 = vmatprep.subr.mxu0 0.0
    %735 = vmatpush1.msra.mxu0 %v713
    %736 = vmatprep.subr.mxu0 0.0
    %737 = vmatpush1.msra.mxu0 %v714
    %738 = vmatprep.subr.mxu0 0.0
    %739 = vmatpush1.msra.mxu0 %v715
    %740 = vmatprep.subr.mxu0 0.0
    %741 = vmatpush1.msra.mxu0 %v716
    %742 = vmatprep.subr.mxu0 0.0
    %743 = vmatpush1.msra.mxu0 %v717
    %744 = vmatprep.subr.mxu0 0.0
    %745 = vmatpush1.msra.mxu0 %v718
    %746 = vmatprep.subr.mxu0 0.0
    %747 = vmatpush1.msra.mxu0 %v719
    %748 = vmatprep.subr.mxu0 0.0
    %749 = vmatpush1.msra.mxu0 %v720
    %750 = vmatprep.subr.mxu0 0.0
    %751 = vmatpush1.msra.mxu0 %v721
    %752 = vmatprep.subr.mxu0 0.0
    %753 = vmatpush1.msra.mxu0 %v722
    %754 = vmatprep.subr.mxu0 0.0
    %755 = vmatpush1.msra.mxu0 %v723
    %756 = vmatprep.subr.mxu0 0.0
    %757 = vmatpush1.msra.mxu0 0.0
    %758 = vmatprep.subr.mxu0 0.0
    %759 = vmatpush1.msra.mxu0 0.0
    %760 = vmatprep.subr.mxu0 0.0
    %761 = vmatpush1.msra.mxu0 0.0
    %762 = vmatprep.subr.mxu0 0.0
    %763 = vmatpush1.msra.mxu0 0.0
    %764 = vmatprep.subr.mxu0 0.0
    %765 = vmatpush1.msra.mxu0 0.0
    %766 = vmatprep.subr.mxu0 0.0
    %767 = vmatpush1.msra.mxu0 0.0
    %768 = vmatprep.subr.mxu0 0.0
    %769 = vmatpush1.msra.mxu0 0.0
    %770 = vmatprep.subr.mxu0 0.0
    %771 = vmatpush1.msra.mxu0 0.0
    %772 = vmatprep.subr.mxu0 0.0
    %773 = vmatpush1.msra.mxu0 0.0
    %774 = vmatprep.subr.mxu0 0.0
    %775 = vmatpush1.msra.mxu0 0.0
    %776 = vmatprep.subr.mxu0 0.0
    %777 = vmatpush1.msra.mxu0 0.0
    %778 = vmatprep.subr.mxu0 0.0
    %779 = vmatpush1.msra.mxu0 0.0
    %780 = vmatprep.subr.mxu0 0.0
    %781 = vmatpush1.msra.mxu0 0.0
    %782 = vmatprep.subr.mxu0 0.0
    %783 = vmatpush1.msra.mxu0 0.0
    %784 = vmatprep.subr.mxu0 0.0
    %785 = vmatpush1.msra.mxu0 0.0
    %786 = vmatprep.subr.mxu0 0.0
    %787 = vmatpush1.msra.mxu0 0.0
    %788 = vmatprep.mubr.f32.mxu0 0.0
    %789 = vmatmul.mubr.f32.gmra.mrb[0].mxu0 %v679
    %v790 = vpop.f32.mrb[0].mxu0
    %v791 = vadd.f32 0.0, %v790
    %v792 = vpop.f32.mrb[0].mxu0
    %793 = vdwg.mxu0
    %794 = vmatprep.subr.mxu0 0.0
    %795 = vmatpush1.msra.mxu0 %v708
    %796 = vmatprep.subr.mxu0 0.0
    %797 = vmatpush1.msra.mxu0 %v709
    %798 = vmatprep.subr.mxu0 0.0
    %799 = vmatpush1.msra.mxu0 %v710
    %800 = vmatprep.subr.mxu0 0.0
    %801 = vmatpush1.msra.mxu0 %v711
    %802 = vmatprep.subr.mxu0 0.0
    %803 = vmatpush1.msra.mxu0 %v712
    %804 = vmatprep.subr.mxu0 0.0
    %805 = vmatpush1.msra.mxu0 %v713
    %806 = vmatprep.subr.mxu0 0.0
    %807 = vmatpush1.msra.mxu0 %v714
    %808 = vmatprep.subr.mxu0 0.0
    %809 = vmatpush1.msra.mxu0 %v715
    %810 = vmatprep.subr.mxu0 0.0
    %811 = vmatpush1.msra.mxu0 %v716
    %812 = vmatprep.subr.mxu0 0.0
    %813 = vmatpush1.msra.mxu0 %v717
    %814 = vmatprep.subr.mxu0 0.0
    %815 = vmatpush1.msra.mxu0 %v718
    %816 = vmatprep.subr.mxu0 0.0
    %817 = vmatpush1.msra.mxu0 %v719
    %818 = vmatprep.subr.mxu0 0.0
    %819 = vmatpush1.msra.mxu0 %v720
    %820 = vmatprep.subr.mxu0 0.0
    %821 = vmatpush1.msra.mxu0 %v721
    %822 = vmatprep.subr.mxu0 0.0
    %823 = vmatpush1.msra.mxu0 %v722
    %824 = vmatprep.subr.mxu0 0.0
    %825 = vmatpush1.msra.mxu0 %v723
    %826 = vmatprep.subr.mxu0 0.0
    %827 = vmatpush1.msra.mxu0 0.0
    %828 = vmatprep.subr.mxu0 0.0
    %829 = vmatpush1.msra.mxu0 0.0
    %830 = vmatprep.subr.mxu0 0.0
    %831 = vmatpush1.msra.mxu0 0.0
    %832 = vmatprep.subr.mxu0 0.0
    %833 = vmatpush1.msra.mxu0 0.0
    %834 = vmatprep.subr.mxu0 0.0
    %835 = vmatpush1.msra.mxu0 0.0
    %836 = vmatprep.subr.mxu0 0.0
    %837 = vmatpush1.msra.mxu0 0.0
    %838 = vmatprep.subr.mxu0 0.0
    %839 = vmatpush1.msra.mxu0 0.0
    %840 = vmatprep.subr.mxu0 0.0
    %841 = vmatpush1.msra.mxu0 0.0
    %842 = vmatprep.subr.mxu0 0.0
    %843 = vmatpush1.msra.mxu0 0.0
    %844 = vmatprep.subr.mxu0 0.0
    %845 = vmatpush1.msra.mxu0 0.0
    %846 = vmatprep.subr.mxu0 0.0
    %847 = vmatpush1.msra.mxu0 0.0
    %848 = vmatprep.subr.mxu0 0.0
    %849 = vmatpush1.msra.mxu0 0.0
    %850 = vmatprep.subr.mxu0 0.0
    %851 = vmatpush1.msra.mxu0 0.0
    %852 = vmatprep.subr.mxu0 0.0
    %853 = vmatpush1.msra.mxu0 0.0
    %854 = vmatprep.subr.mxu0 0.0
    %855 = vmatpush1.msra.mxu0 0.0
    %856 = vmatprep.subr.mxu0 0.0
    %857 = vmatpush1.msra.mxu0 0.0
    %858 = vmatprep.mubr.f32.mxu0 0.0
    %859 = vmatmul.mubr.f32.gmra.mrb[0].mxu0 %v707
    %v860 = vpop.f32.mrb[0].mxu0
    %v861 = vadd.f32 0.0, %v860
    %v862 = vpop.f32.mrb[0].mxu0
    %863 = vdwg.mxu0
    %v864 = vmul.f32 %v791, %v791
    %v865 = vsub.f32 %v861, %v864
    %v866 = vmax.f32 %v865, 0.0
    %v867 = vadd.f32 %v866, 1e-05
    %v868 = vrsqrt.pop %v867
    %v869 = vld [vmem:[%s6] sm:$0x1]
    %v870 = vmul.f32 %v868, %v869
    %v871 = vld [vmem:[%s7] sm:$0x1]
    %v872 = vmul.f32 %v791, %v870
    %v873 = vsub.f32 %v871, %v872
    %v874 = vlaneseq
    %v875 = vshrl.u32 %v874, 7
    %v876 = vsub.s32 0, %v875
    %v877 = vrot.slane %v870, %v876
    %v878 = vmul.f32 %v638, %v877
    %v879 = vmul.f32 %v644, %v877
    %v880 = vmul.f32 %v650, %v877
    %v881 = vmul.f32 %v656, %v877
    %v883 = vlaneseq
    %v884 = vshrl.u32 %v883, 7
    %v885 = vsub.s32 0, %v884
    %v886 = vrot.slane %v873, %v885
    %v888 = vadd.f32 %v878, %v886
    %v889 = vadd.f32 %v879, %v886
    %v890 = vadd.f32 %v880, %v886
    %v891 = vadd.f32 %v881, %v886
    %v892 = vmul.f32 %v640, %v877
    %v893 = vmul.f32 %v646, %v877
    %v894 = vmul.f32 %v652, %v877
    %v895 = vmul.f32 %v658, %v877
    %v896 = vadd.f32 %v892, %v886
    %v897 = vadd.f32 %v893, %v886
    %v898 = vadd.f32 %v894, %v886
    %v899 = vadd.f32 %v895, %v886
    %vm900 = vcmp.ge.f32.partialorder %v888, 0.0
    %vm901 = vcmp.ge.f32.partialorder %v889, 0.0
    %vm902 = vcmp.ge.f32.partialorder %v890, 0.0
    %vm903 = vcmp.ge.f32.partialorder %v891, 0.0
    %v904 = vmul.f32 %v888, 0.01
    %v905 = vmul.f32 %v889, 0.01
    %v906 = vmul.f32 %v890, 0.01
    %v907 = vmul.f32 %v891, 0.01
    %v908 = vsel %vm900, %v888, %v904
    %v909 = vsel %vm901, %v889, %v905
    %v910 = vsel %vm902, %v890, %v906
    %v911 = vsel %vm903, %v891, %v907
    %vm912 = vcmp.ge.f32.partialorder %v896, 0.0
    %vm913 = vcmp.ge.f32.partialorder %v897, 0.0
    %vm914 = vcmp.ge.f32.partialorder %v898, 0.0
    %vm915 = vcmp.ge.f32.partialorder %v899, 0.0
    %v916 = vmul.f32 %v896, 0.01
    %v917 = vmul.f32 %v897, 0.01
    %v918 = vmul.f32 %v898, 0.01
    %v919 = vmul.f32 %v899, 0.01
    %v920 = vsel %vm912, %v896, %v916
    %v921 = vsel %vm913, %v897, %v917
    %v922 = vsel %vm914, %v898, %v918
    %v923 = vsel %vm915, %v899, %v919
    %924 = vst [vmem:[#allocation3] sm:$0xff] %v908
    %925 = vst [vmem:[#allocation3 + $0x8] sm:$0xff] %v909
    %926 = vst [vmem:[#allocation3 + $0x10] sm:$0xff] %v910
    %927 = vst [vmem:[#allocation3 + $0x18] sm:$0xff] %v911
    %928 = vst [vmem:[#allocation3 + $0x20] sm:$0xff] %v920
    %929 = vst [vmem:[#allocation3 + $0x28] sm:$0xff] %v921
    %930 = vst [vmem:[#allocation3 + $0x30] sm:$0xff] %v922
    %931 = vst [vmem:[#allocation3 + $0x38] sm:$0xff] %v923
    %v932 = vld [vmem:[#allocation3] sm:$0xff]
    %v933 = vld [vmem:[#allocation3 + $0x8] sm:$0xff]
    %v934 = vld [vmem:[#allocation3 + $0x10] sm:$0xff]
    %v935 = vld [vmem:[#allocation3 + $0x18] sm:$0xff]
    %v936 = vld [vmem:[#allocation3 + $0x20] sm:$0xff]
    %v937 = vld [vmem:[#allocation3 + $0x28] sm:$0xff]
    %v938 = vld [vmem:[#allocation3 + $0x30] sm:$0xff]
    %v939 = vld [vmem:[#allocation3 + $0x38] sm:$0xff]
    %s940 = scalar_lea.vmem [#allocation8], 256
    %v941 = vld [vmem:[%s940] sm:$0xff]
    %v942 = vld [vmem:[%s940 + $0x8] sm:$0xff]
    %v943 = vld [vmem:[%s940 + $0x10] sm:$0xff]
    %v944 = vld [vmem:[%s940 + $0x18] sm:$0xff]
    %v945 = vld [vmem:[%s940 + $0x20] sm:$0xff]
    %v946 = vld [vmem:[%s940 + $0x28] sm:$0xff]
    %v947 = vld [vmem:[%s940 + $0x30] sm:$0xff]
    %v948 = vld [vmem:[%s940 + $0x38] sm:$0xff]
    %v949 = vld [vmem:[%s940 + $0x40] sm:$0xff]
    %v950 = vld [vmem:[%s940 + $0x48] sm:$0xff]
    %v951 = vld [vmem:[%s940 + $0x50] sm:$0xff]
    %v952 = vld [vmem:[%s940 + $0x58] sm:$0xff]
    %v953 = vld [vmem:[%s940 + $0x60] sm:$0xff]
    %v954 = vld [vmem:[%s940 + $0x68] sm:$0xff]
    %v955 = vld [vmem:[%s940 + $0x70] sm:$0xff]
    %v956 = vld [vmem:[%s940 + $0x78] sm:$0xff]
    %v957 = vld [vmem:[%s940 + $0x80] sm:$0xff]
    %v958 = vld [vmem:[%s940 + $0x88] sm:$0xff]
    %v959 = vld [vmem:[%s940 + $0x90] sm:$0xff]
    %v960 = vld [vmem:[%s940 + $0x98] sm:$0xff]
    %v961 = vld [vmem:[%s940 + $0xa0] sm:$0xff]
    %v962 = vld [vmem:[%s940 + $0xa8] sm:$0xff]
    %v963 = vld [vmem:[%s940 + $0xb0] sm:$0xff]
    %v964 = vld [vmem:[%s940 + $0xb8] sm:$0xff]
    %v965 = vld [vmem:[%s940 + $0xc0] sm:$0xff]
    %v966 = vld [vmem:[%s940 + $0xc8] sm:$0xff]
    %v967 = vld [vmem:[%s940 + $0xd0] sm:$0xff]
    %v968 = vld [vmem:[%s940 + $0xd8] sm:$0xff]
    %v969 = vld [vmem:[%s940 + $0xe0] sm:$0xff]
    %v970 = vld [vmem:[%s940 + $0xe8] sm:$0xff]
    %v971 = vld [vmem:[%s940 + $0xf0] sm:$0xff]
    %v972 = vld [vmem:[%s940 + $0xf8] sm:$0xff]
    %973 = vmatprep.subr.mxu0 %v942
    %974 = vmatpush1.msra.mxu0 %v941
    %975 = vmatprep.subr.mxu0 %v944
    %976 = vmatpush1.msra.mxu0 %v943
    %977 = vmatprep.subr.mxu0 %v946
    %978 = vmatpush1.msra.mxu0 %v945
    %979 = vmatprep.subr.mxu0 %v948
    %980 = vmatpush1.msra.mxu0 %v947
    %981 = vmatprep.subr.mxu0 %v950
    %982 = vmatpush1.msra.mxu0 %v949
    %983 = vmatprep.subr.mxu0 %v952
    %984 = vmatpush1.msra.mxu0 %v951
    %985 = vmatprep.subr.mxu0 %v954
    %986 = vmatpush1.msra.mxu0 %v953
    %987 = vmatprep.subr.mxu0 %v956
    %988 = vmatpush1.msra.mxu0 %v955
    %989 = vmatprep.subr.mxu0 %v958
    %990 = vmatpush1.msra.mxu0 %v957
    %991 = vmatprep.subr.mxu0 %v960
    %992 = vmatpush1.msra.mxu0 %v959
    %993 = vmatprep.subr.mxu0 %v962
    %994 = vmatpush1.msra.mxu0 %v961
    %995 = vmatprep.subr.mxu0 %v964
    %996 = vmatpush1.msra.mxu0 %v963
    %997 = vmatprep.subr.mxu0 %v966
    %998 = vmatpush1.msra.mxu0 %v965
    %999 = vmatprep.subr.mxu0 %v968
    %1000 = vmatpush1.msra.mxu0 %v967
    %1001 = vmatprep.subr.mxu0 %v970
    %1002 = vmatpush1.msra.mxu0 %v969
    %1003 = vmatprep.subr.mxu0 %v972
    %1004 = vmatpush1.msra.mxu0 %v971
    %1005 = vmatprep.subr.mxu0 0.0
    %1006 = vmatpush1.msra.mxu0 0.0
    %1007 = vmatprep.subr.mxu0 0.0
    %1008 = vmatpush1.msra.mxu0 0.0
    %1009 = vmatprep.subr.mxu0 0.0
    %1010 = vmatpush1.msra.mxu0 0.0
    %1011 = vmatprep.subr.mxu0 0.0
    %1012 = vmatpush1.msra.mxu0 0.0
    %1013 = vmatprep.subr.mxu0 0.0
    %1014 = vmatpush1.msra.mxu0 0.0
    %1015 = vmatprep.subr.mxu0 0.0
    %1016 = vmatpush1.msra.mxu0 0.0
    %1017 = vmatprep.subr.mxu0 0.0
    %1018 = vmatpush1.msra.mxu0 0.0
    %1019 = vmatprep.subr.mxu0 0.0
    %1020 = vmatpush1.msra.mxu0 0.0
    %1021 = vmatprep.subr.mxu0 0.0
    %1022 = vmatpush1.msra.mxu0 0.0
    %1023 = vmatprep.subr.mxu0 0.0
    %1024 = vmatpush1.msra.mxu0 0.0
    %1025 = vmatprep.subr.mxu0 0.0
    %1026 = vmatpush1.msra.mxu0 0.0
    %1027 = vmatprep.subr.mxu0 0.0
    %1028 = vmatpush1.msra.mxu0 0.0
    %1029 = vmatprep.subr.mxu0 0.0
    %1030 = vmatpush1.msra.mxu0 0.0
    %1031 = vmatprep.subr.mxu0 0.0
    %1032 = vmatpush1.msra.mxu0 0.0
    %1033 = vmatprep.subr.mxu0 0.0
    %1034 = vmatpush1.msra.mxu0 0.0
    %1035 = vmatprep.subr.mxu0 0.0
    %1036 = vmatpush1.msra.mxu0 0.0
    %1037 = vmatprep.mubr.f32.mxu0 0.0
    %1038 = vmatmul.mubr.f32.gmra.mrb[0].mxu0 %v932
    %v1039 = vpop.f32.mrb[0].mxu0
    %v1040 = vadd.f32 0.0, %v1039
    %v1041 = vpop.f32.mrb[0].mxu0
    %v1042 = vadd.f32 0.0, %v1041
    %1043 = vmatprep.mubr.f32.mxu0 0.0
    %1044 = vmatmul.mubr.f32.gmra.mrb[0].mxu0 %v933
    %v1045 = vpop.f32.mrb[0].mxu0
    %v1046 = vadd.f32 0.0, %v1045
    %v1047 = vpop.f32.mrb[0].mxu0
    %v1048 = vadd.f32 0.0, %v1047
    %1049 = vmatprep.mubr.f32.mxu0 0.0
    %1050 = vmatmul.mubr.f32.gmra.mrb[0].mxu0 %v934
    %v1051 = vpop.f32.mrb[0].mxu0
    %v1052 = vadd.f32 0.0, %v1051
    %v1053 = vpop.f32.mrb[0].mxu0
    %v1054 = vadd.f32 0.0, %v1053
    %1055 = vmatprep.mubr.f32.mxu0 0.0
    %1056 = vmatmul.mubr.f32.gmra.mrb[0].mxu0 %v935
    %v1057 = vpop.f32.mrb[0].mxu0
    %v1058 = vadd.f32 0.0, %v1057
    %v1059 = vpop.f32.mrb[0].mxu0
    %v1060 = vadd.f32 0.0, %v1059
    %1061 = vmatprep.mubr.f32.mxu0 0.0
    %1062 = vmatmul.mubr.f32.gmra.mrb[0].mxu0 %v936
    %v1063 = vpop.f32.mrb[0].mxu0
    %v1064 = vadd.f32 0.0, %v1063
    %v1065 = vpop.f32.mrb[0].mxu0
    %v1066 = vadd.f32 0.0, %v1065
    %1067 = vmatprep.mubr.f32.mxu0 0.0
    %1068 = vmatmul.mubr.f32.gmra.mrb[0].mxu0 %v937
    %v1069 = vpop.f32.mrb[0].mxu0
    %v1070 = vadd.f32 0.0, %v1069
    %v1071 = vpop.f32.mrb[0].mxu0
    %v1072 = vadd.f32 0.0, %v1071
    %1073 = vmatprep.mubr.f32.mxu0 0.0
    %1074 = vmatmul.mubr.f32.gmra.mrb[0].mxu0 %v938
    %v1075 = vpop.f32.mrb[0].mxu0
    %v1076 = vadd.f32 0.0, %v1075
    %v1077 = vpop.f32.mrb[0].mxu0
    %v1078 = vadd.f32 0.0, %v1077
    %1079 = vmatprep.mubr.f32.mxu0 0.0
    %1080 = vmatmul.mubr.f32.gmra.mrb[0].mxu0 %v939
    %v1081 = vpop.f32.mrb[0].mxu0
    %v1082 = vadd.f32 0.0, %v1081
    %v1083 = vpop.f32.mrb[0].mxu0
    %v1084 = vadd.f32 0.0, %v1083
    %1085 = vdwg.mxu0
    %v1086 = vadd.f32 %v1040, %v1046
    %v1087 = vadd.f32 %v1086, %v1052
    %v1088 = vadd.f32 %v1087, %v1058
    %v1089 = vadd.f32 %v1088, %v1064
    %v1090 = vadd.f32 %v1089, %v1070
    %v1091 = vadd.f32 %v1090, %v1076
    %v1092 = vadd.f32 %v1091, %v1082
    %v1093 = vrot.slane %v1092, 4
    %v1094 = vadd.f32 %v1092, %v1093
    %v1095 = vrot.slane %v1094, 2
    %v1096 = vadd.f32 %v1094, %v1095
    %v1097 = vrot.slane %v1096, 1
    %v1098 = vadd.f32 %v1096, %v1097
    %v1099 = vadd.f32 %v1042, %v1048
    %v1100 = vadd.f32 %v1099, %v1054
    %v1101 = vadd.f32 %v1100, %v1060
    %v1102 = vadd.f32 %v1101, %v1066
    %v1103 = vadd.f32 %v1102, %v1072
    %v1104 = vadd.f32 %v1103, %v1078
    %v1105 = vadd.f32 %v1104, %v1084
    %v1106 = vrot.slane %v1105, 4
    %v1107 = vadd.f32 %v1105, %v1106
    %v1108 = vrot.slane %v1107, 2
    %v1109 = vadd.f32 %v1107, %v1108
    %v1110 = vrot.slane %v1109, 1
    %v1111 = vadd.f32 %v1109, %v1110
    %v1112 = vadd.f32 %v1098, %v1111
    %v1113 = vmul.f32 %v1112, 0.0009765625
    %v1114 = vmul.f32 %v1040, %v1040
    %v1115 = vmul.f32 %v1046, %v1046
    %v1116 = vmul.f32 %v1052, %v1052
    %v1117 = vmul.f32 %v1058, %v1058
    %v1118 = vmul.f32 %v1064, %v1064
    %v1119 = vmul.f32 %v1070, %v1070
    %v1120 = vmul.f32 %v1076, %v1076
    %v1121 = vmul.f32 %v1082, %v1082
    %v1122 = vadd.f32 %v1114, %v1115
    %v1123 = vadd.f32 %v1122, %v1116
    %v1124 = vadd.f32 %v1123, %v1117
    %v1125 = vadd.f32 %v1124, %v1118
    %v1126 = vadd.f32 %v1125, %v1119
    %v1127 = vadd.f32 %v1126, %v1120
    %v1128 = vadd.f32 %v1127, %v1121
    %v1129 = vrot.slane %v1128, 4
    %v1130 = vadd.f32 %v1128, %v1129
    %v1131 = vrot.slane %v1130, 2
    %v1132 = vadd.f32 %v1130, %v1131
    %v1133 = vrot.slane %v1132, 1
    %v1134 = vadd.f32 %v1132, %v1133
    %v1135 = vmul.f32 %v1042, %v1042
    %v1136 = vmul.f32 %v1048, %v1048
    %v1137 = vmul.f32 %v1054, %v1054
    %v1138 = vmul.f32 %v1060, %v1060
    %v1139 = vmul.f32 %v1066, %v1066
    %v1140 = vmul.f32 %v1072, %v1072
    %v1141 = vmul.f32 %v1078, %v1078
    %v1142 = vmul.f32 %v1084, %v1084
    %v1143 = vadd.f32 %v1135, %v1136
    %v1144 = vadd.f32 %v1143, %v1137
    %v1145 = vadd.f32 %v1144, %v1138
    %v1146 = vadd.f32 %v1145, %v1139
    %v1147 = vadd.f32 %v1146, %v1140
    %v1148 = vadd.f32 %v1147, %v1141
    %v1149 = vadd.f32 %v1148, %v1142
    %v1150 = vrot.slane %v1149, 4
    %v1151 = vadd.f32 %v1149, %v1150
    %v1152 = vrot.slane %v1151, 2
    %v1153 = vadd.f32 %v1151, %v1152
    %v1154 = vrot.slane %v1153, 1
    %v1155 = vadd.f32 %v1153, %v1154
    %v1156 = vadd.f32 %v1134, %v1155
    %v1157 = vmul.f32 %v1156, 0.0009765625
    %s1158 = scalar_lea.vmem [#allocation9], 128
    %v1159 = vld [vmem:[%s1158] sm:$0xff]
    %v1160 = vld [vmem:[%s1158 + $0x8] sm:$0xff]
    %v1161 = vld [vmem:[%s1158 + $0x10] sm:$0xff]
    %v1162 = vld [vmem:[%s1158 + $0x18] sm:$0xff]
    %v1163 = vld [vmem:[%s1158 + $0x20] sm:$0xff]
    %v1164 = vld [vmem:[%s1158 + $0x28] sm:$0xff]
    %v1165 = vld [vmem:[%s1158 + $0x30] sm:$0xff]
    %v1166 = vld [vmem:[%s1158 + $0x38] sm:$0xff]
    %v1167 = vld [vmem:[%s1158 + $0x40] sm:$0xff]
    %v1168 = vld [vmem:[%s1158 + $0x48] sm:$0xff]
    %v1169 = vld [vmem:[%s1158 + $0x50] sm:$0xff]
    %v1170 = vld [vmem:[%s1158 + $0x58] sm:$0xff]
    %v1171 = vld [vmem:[%s1158 + $0x60] sm:$0xff]
    %v1172 = vld [vmem:[%s1158 + $0x68] sm:$0xff]
    %v1173 = vld [vmem:[%s1158 + $0x70] sm:$0xff]
    %v1174 = vld [vmem:[%s1158 + $0x78] sm:$0xff]
    %1175 = vmatprep.subr.mxu0 0.0
    %1176 = vmatpush1.msra.mxu0 %v1159
    %1177 = vmatprep.subr.mxu0 0.0
    %1178 = vmatpush1.msra.mxu0 %v1160
    %1179 = vmatprep.subr.mxu0 0.0
    %1180 = vmatpush1.msra.mxu0 %v1161
    %1181 = vmatprep.subr.mxu0 0.0
    %1182 = vmatpush1.msra.mxu0 %v1162
    %1183 = vmatprep.subr.mxu0 0.0
    %1184 = vmatpush1.msra.mxu0 %v1163
    %1185 = vmatprep.subr.mxu0 0.0
    %1186 = vmatpush1.msra.mxu0 %v1164
    %1187 = vmatprep.subr.mxu0 0.0
    %1188 = vmatpush1.msra.mxu0 %v1165
    %1189 = vmatprep.subr.mxu0 0.0
    %1190 = vmatpush1.msra.mxu0 %v1166
    %1191 = vmatprep.subr.mxu0 0.0
    %1192 = vmatpush1.msra.mxu0 %v1167
    %1193 = vmatprep.subr.mxu0 0.0
    %1194 = vmatpush1.msra.mxu0 %v1168
    %1195 = vmatprep.subr.mxu0 0.0
    %1196 = vmatpush1.msra.mxu0 %v1169
    %1197 = vmatprep.subr.mxu0 0.0
    %1198 = vmatpush1.msra.mxu0 %v1170
    %1199 = vmatprep.subr.mxu0 0.0
    %1200 = vmatpush1.msra.mxu0 %v1171
    %1201 = vmatprep.subr.mxu0 0.0
    %1202 = vmatpush1.msra.mxu0 %v1172
    %1203 = vmatprep.subr.mxu0 0.0
    %1204 = vmatpush1.msra.mxu0 %v1173
    %1205 = vmatprep.subr.mxu0 0.0
    %1206 = vmatpush1.msra.mxu0 %v1174
    %1207 = vmatprep.subr.mxu0 0.0
    %1208 = vmatpush1.msra.mxu0 0.0
    %1209 = vmatprep.subr.mxu0 0.0
    %1210 = vmatpush1.msra.mxu0 0.0
    %1211 = vmatprep.subr.mxu0 0.0
    %1212 = vmatpush1.msra.mxu0 0.0
    %1213 = vmatprep.subr.mxu0 0.0
    %1214 = vmatpush1.msra.mxu0 0.0
    %1215 = vmatprep.subr.mxu0 0.0
    %1216 = vmatpush1.msra.mxu0 0.0
    %1217 = vmatprep.subr.mxu0 0.0
    %1218 = vmatpush1.msra.mxu0 0.0
    %1219 = vmatprep.subr.mxu0 0.0
    %1220 = vmatpush1.msra.mxu0 0.0
    %1221 = vmatprep.subr.mxu0 0.0
    %1222 = vmatpush1.msra.mxu0 0.0
    %1223 = vmatprep.subr.mxu0 0.0
    %1224 = vmatpush1.msra.mxu0 0.0
    %1225 = vmatprep.subr.mxu0 0.0
    %1226 = vmatpush1.msra.mxu0 0.0
    %1227 = vmatprep.subr.mxu0 0.0
    %1228 = vmatpush1.msra.mxu0 0.0
    %1229 = vmatprep.subr.mxu0 0.0
    %1230 = vmatpush1.msra.mxu0 0.0
    %1231 = vmatprep.subr.mxu0 0.0
    %1232 = vmatpush1.msra.mxu0 0.0
    %1233 = vmatprep.subr.mxu0 0.0
    %1234 = vmatpush1.msra.mxu0 0.0
    %1235 = vmatprep.subr.mxu0 0.0
    %1236 = vmatpush1.msra.mxu0 0.0
    %1237 = vmatprep.subr.mxu0 0.0
    %1238 = vmatpush1.msra.mxu0 0.0
    %1239 = vmatprep.mubr.f32.mxu0 0.0
    %1240 = vmatmul.mubr.f32.gmra.mrb[0].mxu0 %v1113
    %v1241 = vpop.f32.mrb[0].mxu0
    %v1242 = vadd.f32 0.0, %v1241
    %v1243 = vpop.f32.mrb[0].mxu0
    %1244 = vdwg.mxu0
    %1245 = vmatprep.subr.mxu0 0.0
    %1246 = vmatpush1.msra.mxu0 %v1159
    %1247 = vmatprep.subr.mxu0 0.0
    %1248 = vmatpush1.msra.mxu0 %v1160
    %1249 = vmatprep.subr.mxu0 0.0
    %1250 = vmatpush1.msra.mxu0 %v1161
    %1251 = vmatprep.subr.mxu0 0.0
    %1252 = vmatpush1.msra.mxu0 %v1162
    %1253 = vmatprep.subr.mxu0 0.0
    %1254 = vmatpush1.msra.mxu0 %v1163
    %1255 = vmatprep.subr.mxu0 0.0
    %1256 = vmatpush1.msra.mxu0 %v1164
    %1257 = vmatprep.subr.mxu0 0.0
    %1258 = vmatpush1.msra.mxu0 %v1165
    %1259 = vmatprep.subr.mxu0 0.0
    %1260 = vmatpush1.msra.mxu0 %v1166
    %1261 = vmatprep.subr.mxu0 0.0
    %1262 = vmatpush1.msra.mxu0 %v1167
    %1263 = vmatprep.subr.mxu0 0.0
    %1264 = vmatpush1.msra.mxu0 %v1168
    %1265 = vmatprep.subr.mxu0 0.0
    %1266 = vmatpush1.msra.mxu0 %v1169
    %1267 = vmatprep.subr.mxu0 0.0
    %1268 = vmatpush1.msra.mxu0 %v1170
    %1269 = vmatprep.subr.mxu0 0.0
    %1270 = vmatpush1.msra.mxu0 %v1171
    %1271 = vmatprep.subr.mxu0 0.0
    %1272 = vmatpush1.msra.mxu0 %v1172
    %1273 = vmatprep.subr.mxu0 0.0
    %1274 = vmatpush1.msra.mxu0 %v1173
    %1275 = vmatprep.subr.mxu0 0.0
    %1276 = vmatpush1.msra.mxu0 %v1174
    %1277 = vmatprep.subr.mxu0 0.0
    %1278 = vmatpush1.msra.mxu0 0.0
    %1279 = vmatprep.subr.mxu0 0.0
    %1280 = vmatpush1.msra.mxu0 0.0
    %1281 = vmatprep.subr.mxu0 0.0
    %1282 = vmatpush1.msra.mxu0 0.0
    %1283 = vmatprep.subr.mxu0 0.0
    %1284 = vmatpush1.msra.mxu0 0.0
    %1285 = vmatprep.subr.mxu0 0.0
    %1286 = vmatpush1.msra.mxu0 0.0
    %1287 = vmatprep.subr.mxu0 0.0
    %1288 = vmatpush1.msra.mxu0 0.0
    %1289 = vmatprep.subr.mxu0 0.0
    %1290 = vmatpush1.msra.mxu0 0.0
    %1291 = vmatprep.subr.mxu0 0.0
    %1292 = vmatpush1.msra.mxu0 0.0
    %1293 = vmatprep.subr.mxu0 0.0
    %1294 = vmatpush1.msra.mxu0 0.0
    %1295 = vmatprep.subr.mxu0 0.0
    %1296 = vmatpush1.msra.mxu0 0.0
    %1297 = vmatprep.subr.mxu0 0.0
    %1298 = vmatpush1.msra.mxu0 0.0
    %1299 = vmatprep.subr.mxu0 0.0
    %1300 = vmatpush1.msra.mxu0 0.0
    %1301 = vmatprep.subr.mxu0 0.0
    %1302 = vmatpush1.msra.mxu0 0.0
    %1303 = vmatprep.subr.mxu0 0.0
    %1304 = vmatpush1.msra.mxu0 0.0
    %1305 = vmatprep.subr.mxu0 0.0
    %1306 = vmatpush1.msra.mxu0 0.0
    %1307 = vmatprep.subr.mxu0 0.0
    %1308 = vmatpush1.msra.mxu0 0.0
    %1309 = vmatprep.mubr.f32.mxu0 0.0
    %1310 = vmatmul.mubr.f32.gmra.mrb[0].mxu0 %v1157
    %v1311 = vpop.f32.mrb[0].mxu0
    %v1312 = vadd.f32 0.0, %v1311
    %v1313 = vpop.f32.mrb[0].mxu0
    %1314 = vdwg.mxu0
    %v1315 = vmul.f32 %v1242, %v1242
    %v1316 = vsub.f32 %v1312, %v1315
    %v1317 = vmax.f32 %v1316, 0.0
    %v1318 = vadd.f32 %v1317, 1e-05
    %v1319 = vrsqrt.pop %v1318
    %s1320 = scalar_lea.vmem %s6, 1
    %v1321 = vld [vmem:[%s1320] sm:$0x1]
    %v1322 = vmul.f32 %v1319, %v1321
    %s1323 = scalar_lea.vmem %s7, 1
    %v1324 = vld [vmem:[%s1323] sm:$0x1]
    %v1325 = vmul.f32 %v1242, %v1322
    %v1326 = vsub.f32 %v1324, %v1325
    %v1327 = vlaneseq
    %v1328 = vshrl.u32 %v1327, 7
    %v1329 = vsub.s32 0, %v1328
    %v1330 = vrot.slane %v1322, %v1329
    %v1331 = vmul.f32 %v1040, %v1330
    %v1332 = vmul.f32 %v1046, %v1330
    %v1333 = vmul.f32 %v1052, %v1330
    %v1334 = vmul.f32 %v1058, %v1330
    %v1335 = vmul.f32 %v1064, %v1330
    %v1336 = vmul.f32 %v1070, %v1330
    %v1337 = vmul.f32 %v1076, %v1330
    %v1338 = vmul.f32 %v1082, %v1330
    %v1340 = vlaneseq
    %v1341 = vshrl.u32 %v1340, 7
    %v1342 = vsub.s32 0, %v1341
    %v1343 = vrot.slane %v1326, %v1342
    %v1345 = vadd.f32 %v1331, %v1343
    %v1346 = vadd.f32 %v1332, %v1343
    %v1347 = vadd.f32 %v1333, %v1343
    %v1348 = vadd.f32 %v1334, %v1343
    %v1349 = vadd.f32 %v1335, %v1343
    %v1350 = vadd.f32 %v1336, %v1343
    %v1351 = vadd.f32 %v1337, %v1343
    %v1352 = vadd.f32 %v1338, %v1343
    %v1353 = vmul.f32 %v1042, %v1330
    %v1354 = vmul.f32 %v1048, %v1330
    %v1355 = vmul.f32 %v1054, %v1330
    %v1356 = vmul.f32 %v1060, %v1330
    %v1357 = vmul.f32 %v1066, %v1330
    %v1358 = vmul.f32 %v1072, %v1330
    %v1359 = vmul.f32 %v1078, %v1330
    %v1360 = vmul.f32 %v1084, %v1330
    %v1361 = vadd.f32 %v1353, %v1343
    %v1362 = vadd.f32 %v1354, %v1343
    %v1363 = vadd.f32 %v1355, %v1343
    %v1364 = vadd.f32 %v1356, %v1343
    %v1365 = vadd.f32 %v1357, %v1343
    %v1366 = vadd.f32 %v1358, %v1343
    %v1367 = vadd.f32 %v1359, %v1343
    %v1368 = vadd.f32 %v1360, %v1343
    %vm1369 = vcmp.ge.f32.partialorder %v1345, 0.0
    %vm1370 = vcmp.ge.f32.partialorder %v1346, 0.0
    %vm1371 = vcmp.ge.f32.partialorder %v1347, 0.0
    %vm1372 = vcmp.ge.f32.partialorder %v1348, 0.0
    %vm1373 = vcmp.ge.f32.partialorder %v1349, 0.0
    %vm1374 = vcmp.ge.f32.partialorder %v1350, 0.0
    %vm1375 = vcmp.ge.f32.partialorder %v1351, 0.0
    %vm1376 = vcmp.ge.f32.partialorder %v1352, 0.0
    %v1377 = vmul.f32 %v1345, 0.01
    %v1378 = vmul.f32 %v1346, 0.01
    %v1379 = vmul.f32 %v1347, 0.01
    %v1380 = vmul.f32 %v1348, 0.01
    %v1381 = vmul.f32 %v1349, 0.01
    %v1382 = vmul.f32 %v1350, 0.01
    %v1383 = vmul.f32 %v1351, 0.01
    %v1384 = vmul.f32 %v1352, 0.01
    %v1385 = vsel %vm1369, %v1345, %v1377
    %v1386 = vsel %vm1370, %v1346, %v1378
    %v1387 = vsel %vm1371, %v1347, %v1379
    %v1388 = vsel %vm1372, %v1348, %v1380
    %v1389 = vsel %vm1373, %v1349, %v1381
    %v1390 = vsel %vm1374, %v1350, %v1382
    %v1391 = vsel %vm1375, %v1351, %v1383
    %v1392 = vsel %vm1376, %v1352, %v1384
    %vm1393 = vcmp.ge.f32.partialorder %v1361, 0.0
    %vm1394 = vcmp.ge.f32.partialorder %v1362, 0.0
    %vm1395 = vcmp.ge.f32.partialorder %v1363, 0.0
    %vm1396 = vcmp.ge.f32.partialorder %v1364, 0.0
    %vm1397 = vcmp.ge.f32.partialorder %v1365, 0.0
    %vm1398 = vcmp.ge.f32.partialorder %v1366, 0.0
    %vm1399 = vcmp.ge.f32.partialorder %v1367, 0.0
    %vm1400 = vcmp.ge.f32.partialorder %v1368, 0.0
    %v1401 = vmul.f32 %v1361, 0.01
    %v1402 = vmul.f32 %v1362, 0.01
    %v1403 = vmul.f32 %v1363, 0.01
    %v1404 = vmul.f32 %v1364, 0.01
    %v1405 = vmul.f32 %v1365, 0.01
    %v1406 = vmul.f32 %v1366, 0.01
    %v1407 = vmul.f32 %v1367, 0.01
    %v1408 = vmul.f32 %v1368, 0.01
    %v1409 = vsel %vm1393, %v1361, %v1401
    %v1410 = vsel %vm1394, %v1362, %v1402
    %v1411 = vsel %vm1395, %v1363, %v1403
    %v1412 = vsel %vm1396, %v1364, %v1404
    %v1413 = vsel %vm1397, %v1365, %v1405
    %v1414 = vsel %vm1398, %v1366, %v1406
    %v1415 = vsel %vm1399, %v1367, %v1407
    %v1416 = vsel %vm1400, %v1368, %v1408
    %1417 = vst [vmem:[#allocation2] sm:$0xff] %v1385
    %1418 = vst [vmem:[#allocation2 + $0x8] sm:$0xff] %v1386
    %1419 = vst [vmem:[#allocation2 + $0x10] sm:$0xff] %v1387
    %1420 = vst [vmem:[#allocation2 + $0x18] sm:$0xff] %v1388
    %1421 = vst [vmem:[#allocation2 + $0x20] sm:$0xff] %v1389
    %1422 = vst [vmem:[#allocation2 + $0x28] sm:$0xff] %v1390
    %1423 = vst [vmem:[#allocation2 + $0x30] sm:$0xff] %v1391
    %1424 = vst [vmem:[#allocation2 + $0x38] sm:$0xff] %v1392
    %1425 = vst [vmem:[#allocation2 + $0x40] sm:$0xff] %v1409
    %1426 = vst [vmem:[#allocation2 + $0x48] sm:$0xff] %v1410
    %1427 = vst [vmem:[#allocation2 + $0x50] sm:$0xff] %v1411
    %1428 = vst [vmem:[#allocation2 + $0x58] sm:$0xff] %v1412
    %1429 = vst [vmem:[#allocation2 + $0x60] sm:$0xff] %v1413
    %1430 = vst [vmem:[#allocation2 + $0x68] sm:$0xff] %v1414
    %1431 = vst [vmem:[#allocation2 + $0x70] sm:$0xff] %v1415
    %1432 = vst [vmem:[#allocation2 + $0x78] sm:$0xff] %v1416
    %v1433 = vld [vmem:[#allocation2] sm:$0xff]
    %v1434 = vld [vmem:[#allocation2 + $0x8] sm:$0xff]
    %v1435 = vld [vmem:[#allocation2 + $0x10] sm:$0xff]
    %v1436 = vld [vmem:[#allocation2 + $0x18] sm:$0xff]
    %v1437 = vld [vmem:[#allocation2 + $0x20] sm:$0xff]
    %v1438 = vld [vmem:[#allocation2 + $0x28] sm:$0xff]
    %v1439 = vld [vmem:[#allocation2 + $0x30] sm:$0xff]
    %v1440 = vld [vmem:[#allocation2 + $0x38] sm:$0xff]
    %v1441 = vld [vmem:[#allocation2 + $0x40] sm:$0xff]
    %v1442 = vld [vmem:[#allocation2 + $0x48] sm:$0xff]
    %v1443 = vld [vmem:[#allocation2 + $0x50] sm:$0xff]
    %v1444 = vld [vmem:[#allocation2 + $0x58] sm:$0xff]
    %v1445 = vld [vmem:[#allocation2 + $0x60] sm:$0xff]
    %v1446 = vld [vmem:[#allocation2 + $0x68] sm:$0xff]
    %v1447 = vld [vmem:[#allocation2 + $0x70] sm:$0xff]
    %v1448 = vld [vmem:[#allocation2 + $0x78] sm:$0xff]
    %s1449 = scalar_lea.vmem [#allocation8], 512
    %v1450 = vld [vmem:[%s1449] sm:$0xff]
    %v1451 = vld [vmem:[%s1449 + $0x8] sm:$0xff]
    %v1452 = vld [vmem:[%s1449 + $0x10] sm:$0xff]
    %v1453 = vld [vmem:[%s1449 + $0x18] sm:$0xff]
    %v1454 = vld [vmem:[%s1449 + $0x20] sm:$0xff]
    %v1455 = vld [vmem:[%s1449 + $0x28] sm:$0xff]
    %v1456 = vld [vmem:[%s1449 + $0x30] sm:$0xff]
    %v1457 = vld [vmem:[%s1449 + $0x38] sm:$0xff]
    %v1458 = vld [vmem:[%s1449 + $0x40] sm:$0xff]
    %v1459 = vld [vmem:[%s1449 + $0x48] sm:$0xff]
    %v1460 = vld [vmem:[%s1449 + $0x50] sm:$0xff]
    %v1461 = vld [vmem:[%s1449 + $0x58] sm:$0xff]
    %v1462 = vld [vmem:[%s1449 + $0x60] sm:$0xff]
    %v1463 = vld [vmem:[%s1449 + $0x68] sm:$0xff]
    %v1464 = vld [vmem:[%s1449 + $0x70] sm:$0xff]
    %v1465 = vld [vmem:[%s1449 + $0x78] sm:$0xff]
    %v1466 = vld [vmem:[%s1449 + $0x80] sm:$0xff]
    %v1467 = vld [vmem:[%s1449 + $0x88] sm:$0xff]
    %v1468 = vld [vmem:[%s1449 + $0x90] sm:$0xff]
    %v1469 = vld [vmem:[%s1449 + $0x98] sm:$0xff]
    %v1470 = vld [vmem:[%s1449 + $0xa0] sm:$0xff]
    %v1471 = vld [vmem:[%s1449 + $0xa8] sm:$0xff]
    %v1472 = vld [vmem:[%s1449 + $0xb0] sm:$0xff]
    %v1473 = vld [vmem:[%s1449 + $0xb8] sm:$0xff]
    %v1474 = vld [vmem:[%s1449 + $0xc0] sm:$0xff]
    %v1475 = vld [vmem:[%s1449 + $0xc8] sm:$0xff]
    %v1476 = vld [vmem:[%s1449 + $0xd0] sm:$0xff]
    %v1477 = vld [vmem:[%s1449 + $0xd8] sm:$0xff]
    %v1478 = vld [vmem:[%s1449 + $0xe0] sm:$0xff]
    %v1479 = vld [vmem:[%s1449 + $0xe8] sm:$0xff]
    %v1480 = vld [vmem:[%s1449 + $0xf0] sm:$0xff]
    %v1481 = vld [vmem:[%s1449 + $0xf8] sm:$0xff]
    %1482 = vmatprep.subr.mxu0 %v1451
    %1483 = vmatpush1.msra.mxu0 %v1450
    %1484 = vmatprep.subr.mxu0 %v1453
    %1485 = vmatpush1.msra.mxu0 %v1452
    %1486 = vmatprep.subr.mxu0 %v1455
    %1487 = vmatpush1.msra.mxu0 %v1454
    %1488 = vmatprep.subr.mxu0 %v1457
    %1489 = vmatpush1.msra.mxu0 %v1456
    %1490 = vmatprep.subr.mxu0 %v1459
    %1491 = vmatpush1.msra.mxu0 %v1458
    %1492 = vmatprep.subr.mxu0 %v1461
    %1493 = vmatpush1.msra.mxu0 %v1460
    %1494 = vmatprep.subr.mxu0 %v1463
    %1495 = vmatpush1.msra.mxu0 %v1462
    %1496 = vmatprep.subr.mxu0 %v1465
    %1497 = vmatpush1.msra.mxu0 %v1464
    %1498 = vmatprep.subr.mxu0 %v1467
    %1499 = vmatpush1.msra.mxu0 %v1466
    %1500 = vmatprep.subr.mxu0 %v1469
    %1501 = vmatpush1.msra.mxu0 %v1468
    %1502 = vmatprep.subr.mxu0 %v1471
    %1503 = vmatpush1.msra.mxu0 %v1470
    %1504 = vmatprep.subr.mxu0 %v1473
    %1505 = vmatpush1.msra.mxu0 %v1472
    %1506 = vmatprep.subr.mxu0 %v1475
    %1507 = vmatpush1.msra.mxu0 %v1474
    %1508 = vmatprep.subr.mxu0 %v1477
    %1509 = vmatpush1.msra.mxu0 %v1476
    %1510 = vmatprep.subr.mxu0 %v1479
    %1511 = vmatpush1.msra.mxu0 %v1478
    %1512 = vmatprep.subr.mxu0 %v1481
    %1513 = vmatpush1.msra.mxu0 %v1480
    %1514 = vmatprep.subr.mxu0 0.0
    %1515 = vmatpush1.msra.mxu0 0.0
    %1516 = vmatprep.subr.mxu0 0.0
    %1517 = vmatpush1.msra.mxu0 0.0
    %1518 = vmatprep.subr.mxu0 0.0
    %1519 = vmatpush1.msra.mxu0 0.0
    %1520 = vmatprep.subr.mxu0 0.0
    %1521 = vmatpush1.msra.mxu0 0.0
    %1522 = vmatprep.subr.mxu0 0.0
    %1523 = vmatpush1.msra.mxu0 0.0
    %1524 = vmatprep.subr.mxu0 0.0
    %1525 = vmatpush1.msra.mxu0 0.0
    %1526 = vmatprep.subr.mxu0 0.0
    %1527 = vmatpush1.msra.mxu0 0.0
    %1528 = vmatprep.subr.mxu0 0.0
    %1529 = vmatpush1.msra.mxu0 0.0
    %1530 = vmatprep.subr.mxu0 0.0
    %1531 = vmatpush1.msra.mxu0 0.0
    %1532 = vmatprep.subr.mxu0 0.0
    %1533 = vmatpush1.msra.mxu0 0.0
    %1534 = vmatprep.subr.mxu0 0.0
    %1535 = vmatpush1.msra.mxu0 0.0
    %1536 = vmatprep.subr.mxu0 0.0
    %1537 = vmatpush1.msra.mxu0 0.0
    %1538 = vmatprep.subr.mxu0 0.0
    %1539 = vmatpush1.msra.mxu0 0.0
    %1540 = vmatprep.subr.mxu0 0.0
    %1541 = vmatpush1.msra.mxu0 0.0
    %1542 = vmatprep.subr.mxu0 0.0
    %1543 = vmatpush1.msra.mxu0 0.0
    %1544 = vmatprep.subr.mxu0 0.0
    %1545 = vmatpush1.msra.mxu0 0.0
    %1546 = vmatprep.mubr.f32.mxu0 0.0
    %1547 = vmatmul.mubr.f32.gmra.mrb[0].mxu0 %v1433
    %v1548 = vpop.f32.mrb[0].mxu0
    %v1549 = vadd.f32 0.0, %v1548
    %v1550 = vpop.f32.mrb[0].mxu0
    %v1551 = vadd.f32 0.0, %v1550
    %1552 = vmatprep.mubr.f32.mxu0 0.0
    %1553 = vmatmul.mubr.f32.gmra.mrb[0].mxu0 %v1434
    %v1554 = vpop.f32.mrb[0].mxu0
    %v1555 = vadd.f32 0.0, %v1554
    %v1556 = vpop.f32.mrb[0].mxu0
    %v1557 = vadd.f32 0.0, %v1556
    %1558 = vmatprep.mubr.f32.mxu0 0.0
    %1559 = vmatmul.mubr.f32.gmra.mrb[0].mxu0 %v1435
    %v1560 = vpop.f32.mrb[0].mxu0
    %v1561 = vadd.f32 0.0, %v1560
    %v1562 = vpop.f32.mrb[0].mxu0
    %v1563 = vadd.f32 0.0, %v1562
    %1564 = vmatprep.mubr.f32.mxu0 0.0
    %1565 = vmatmul.mubr.f32.gmra.mrb[0].mxu0 %v1436
    %v1566 = vpop.f32.mrb[0].mxu0
    %v1567 = vadd.f32 0.0, %v1566
    %v1568 = vpop.f32.mrb[0].mxu0
    %v1569 = vadd.f32 0.0, %v1568
    %1570 = vmatprep.mubr.f32.mxu0 0.0
    %1571 = vmatmul.mubr.f32.gmra.mrb[0].mxu0 %v1437
    %v1572 = vpop.f32.mrb[0].mxu0
    %v1573 = vadd.f32 0.0, %v1572
    %v1574 = vpop.f32.mrb[0].mxu0
    %v1575 = vadd.f32 0.0, %v1574
    %1576 = vmatprep.mubr.f32.mxu0 0.0
    %1577 = vmatmul.mubr.f32.gmra.mrb[0].mxu0 %v1438
    %v1578 = vpop.f32.mrb[0].mxu0
    %v1579 = vadd.f32 0.0, %v1578
    %v1580 = vpop.f32.mrb[0].mxu0
    %v1581 = vadd.f32 0.0, %v1580
    %1582 = vmatprep.mubr.f32.mxu0 0.0
    %1583 = vmatmul.mubr.f32.gmra.mrb[0].mxu0 %v1439
    %v1584 = vpop.f32.mrb[0].mxu0
    %v1585 = vadd.f32 0.0, %v1584
    %v1586 = vpop.f32.mrb[0].mxu0
    %v1587 = vadd.f32 0.0, %v1586
    %1588 = vmatprep.mubr.f32.mxu0 0.0
    %1589 = vmatmul.mubr.f32.gmra.mrb[0].mxu0 %v1440
    %v1590 = vpop.f32.mrb[0].mxu0
    %v1591 = vadd.f32 0.0, %v1590
    %v1592 = vpop.f32.mrb[0].mxu0
    %v1593 = vadd.f32 0.0, %v1592
    %1594 = vmatprep.mubr.f32.mxu0 0.0
    %1595 = vmatmul.mubr.f32.gmra.mrb[0].mxu0 %v1441
    %v1596 = vpop.f32.mrb[0].mxu0
    %v1597 = vadd.f32 0.0, %v1596
    %v1598 = vpop.f32.mrb[0].mxu0
    %v1599 = vadd.f32 0.0, %v1598
    %1600 = vmatprep.mubr.f32.mxu0 0.0
    %1601 = vmatmul.mubr.f32.gmra.mrb[0].mxu0 %v1442
    %v1602 = vpop.f32.mrb[0].mxu0
    %v1603 = vadd.f32 0.0, %v1602
    %v1604 = vpop.f32.mrb[0].mxu0
    %v1605 = vadd.f32 0.0, %v1604
    %1606 = vmatprep.mubr.f32.mxu0 0.0
    %1607 = vmatmul.mubr.f32.gmra.mrb[0].mxu0 %v1443
    %v1608 = vpop.f32.mrb[0].mxu0
    %v1609 = vadd.f32 0.0, %v1608
    %v1610 = vpop.f32.mrb[0].mxu0
    %v1611 = vadd.f32 0.0, %v1610
    %1612 = vmatprep.mubr.f32.mxu0 0.0
    %1613 = vmatmul.mubr.f32.gmra.mrb[0].mxu0 %v1444
    %v1614 = vpop.f32.mrb[0].mxu0
    %v1615 = vadd.f32 0.0, %v1614
    %v1616 = vpop.f32.mrb[0].mxu0
    %v1617 = vadd.f32 0.0, %v1616
    %1618 = vmatprep.mubr.f32.mxu0 0.0
    %1619 = vmatmul.mubr.f32.gmra.mrb[0].mxu0 %v1445
    %v1620 = vpop.f32.mrb[0].mxu0
    %v1621 = vadd.f32 0.0, %v1620
    %v1622 = vpop.f32.mrb[0].mxu0
    %v1623 = vadd.f32 0.0, %v1622
    %1624 = vmatprep.mubr.f32.mxu0 0.0
    %1625 = vmatmul.mubr.f32.gmra.mrb[0].mxu0 %v1446
    %v1626 = vpop.f32.mrb[0].mxu0
    %v1627 = vadd.f32 0.0, %v1626
    %v1628 = vpop.f32.mrb[0].mxu0
    %v1629 = vadd.f32 0.0, %v1628
    %1630 = vmatprep.mubr.f32.mxu0 0.0
    %1631 = vmatmul.mubr.f32.gmra.mrb[0].mxu0 %v1447
    %v1632 = vpop.f32.mrb[0].mxu0
    %v1633 = vadd.f32 0.0, %v1632
    %v1634 = vpop.f32.mrb[0].mxu0
    %v1635 = vadd.f32 0.0, %v1634
    %1636 = vmatprep.mubr.f32.mxu0 0.0
    %1637 = vmatmul.mubr.f32.gmra.mrb[0].mxu0 %v1448
    %v1638 = vpop.f32.mrb[0].mxu0
    %v1639 = vadd.f32 0.0, %v1638
    %v1640 = vpop.f32.mrb[0].mxu0
    %v1641 = vadd.f32 0.0, %v1640
    %1642 = vdwg.mxu0
    %v1643 = vadd.f32 %v1549, %v1555
    %v1644 = vadd.f32 %v1643, %v1561
    %v1645 = vadd.f32 %v1644, %v1567
    %v1646 = vadd.f32 %v1645, %v1573
    %v1647 = vadd.f32 %v1646, %v1579
    %v1648 = vadd.f32 %v1647, %v1585
    %v1649 = vadd.f32 %v1648, %v1591
    %v1650 = vadd.f32 %v1649, %v1597
    %v1651 = vadd.f32 %v1650, %v1603
    %v1652 = vadd.f32 %v1651, %v1609
    %v1653 = vadd.f32 %v1652, %v1615
    %v1654 = vadd.f32 %v1653, %v1621
    %v1655 = vadd.f32 %v1654, %v1627
    %v1656 = vadd.f32 %v1655, %v1633
    %v1657 = vadd.f32 %v1656, %v1639
    %v1658 = vrot.slane %v1657, 4
    %v1659 = vadd.f32 %v1657, %v1658
    %v1660 = vrot.slane %v1659, 2
    %v1661 = vadd.f32 %v1659, %v1660
    %v1662 = vrot.slane %v1661, 1
    %v1663 = vadd.f32 %v1661, %v1662
    %v1664 = vadd.f32 %v1551, %v1557
    %v1665 = vadd.f32 %v1664, %v1563
    %v1666 = vadd.f32 %v1665, %v1569
    %v1667 = vadd.f32 %v1666, %v1575
    %v1668 = vadd.f32 %v1667, %v1581
    %v1669 = vadd.f32 %v1668, %v1587
    %v1670 = vadd.f32 %v1669, %v1593
    %v1671 = vadd.f32 %v1670, %v1599
    %v1672 = vadd.f32 %v1671, %v1605
    %v1673 = vadd.f32 %v1672, %v1611
    %v1674 = vadd.f32 %v1673, %v1617
    %v1675 = vadd.f32 %v1674, %v1623
    %v1676 = vadd.f32 %v1675, %v1629
    %v1677 = vadd.f32 %v1676, %v1635
    %v1678 = vadd.f32 %v1677, %v1641
    %v1679 = vrot.slane %v1678, 4
    %v1680 = vadd.f32 %v1678, %v1679
    %v1681 = vrot.slane %v1680, 2
    %v1682 = vadd.f32 %v1680, %v1681
    %v1683 = vrot.slane %v1682, 1
    %v1684 = vadd.f32 %v1682, %v1683
    %v1685 = vadd.f32 %v1663, %v1684
    %v1686 = vmul.f32 %v1685, 0.00024414063
    %v1687 = vmul.f32 %v1549, %v1549
    %v1688 = vmul.f32 %v1555, %v1555
    %v1689 = vmul.f32 %v1561, %v1561
    %v1690 = vmul.f32 %v1567, %v1567
    %v1691 = vmul.f32 %v1573, %v1573
    %v1692 = vmul.f32 %v1579, %v1579
    %v1693 = vmul.f32 %v1585, %v1585
    %v1694 = vmul.f32 %v1591, %v1591
    %v1695 = vmul.f32 %v1597, %v1597
    %v1696 = vmul.f32 %v1603, %v1603
    %v1697 = vmul.f32 %v1609, %v1609
    %v1698 = vmul.f32 %v1615, %v1615
    %v1699 = vmul.f32 %v1621, %v1621
    %v1700 = vmul.f32 %v1627, %v1627
    %v1701 = vmul.f32 %v1633, %v1633
    %v1702 = vmul.f32 %v1639, %v1639
    %v1703 = vadd.f32 %v1687, %v1688
    %v1704 = vadd.f32 %v1703, %v1689
    %v1705 = vadd.f32 %v1704, %v1690
    %v1706 = vadd.f32 %v1705, %v1691
    %v1707 = vadd.f32 %v1706, %v1692
    %v1708 = vadd.f32 %v1707, %v1693
    %v1709 = vadd.f32 %v1708, %v1694
    %v1710 = vadd.f32 %v1709, %v1695
    %v1711 = vadd.f32 %v1710, %v1696
    %v1712 = vadd.f32 %v1711, %v1697
    %v1713 = vadd.f32 %v1712, %v1698
    %v1714 = vadd.f32 %v1713, %v1699
    %v1715 = vadd.f32 %v1714, %v1700
    %v1716 = vadd.f32 %v1715, %v1701
    %v1717 = vadd.f32 %v1716, %v1702
    %v1718 = vrot.slane %v1717, 4
    %v1719 = vadd.f32 %v1717, %v1718
    %v1720 = vrot.slane %v1719, 2
    %v1721 = vadd.f32 %v1719, %v1720
    %v1722 = vrot.slane %v1721, 1
    %v1723 = vadd.f32 %v1721, %v1722
    %v1724 = vmul.f32 %v1551, %v1551
    %v1725 = vmul.f32 %v1557, %v1557
    %v1726 = vmul.f32 %v1563, %v1563
    %v1727 = vmul.f32 %v1569, %v1569
    %v1728 = vmul.f32 %v1575, %v1575
    %v1729 = vmul.f32 %v1581, %v1581
    %v1730 = vmul.f32 %v1587, %v1587
    %v1731 = vmul.f32 %v1593, %v1593
    %v1732 = vmul.f32 %v1599, %v1599
    %v1733 = vmul.f32 %v1605, %v1605
    %v1734 = vmul.f32 %v1611, %v1611
    %v1735 = vmul.f32 %v1617, %v1617
    %v1736 = vmul.f32 %v1623, %v1623
    %v1737 = vmul.f32 %v1629, %v1629
    %v1738 = vmul.f32 %v1635, %v1635
    %v1739 = vmul.f32 %v1641, %v1641
    %v1740 = vadd.f32 %v1724, %v1725
    %v1741 = vadd.f32 %v1740, %v1726
    %v1742 = vadd.f32 %v1741, %v1727
    %v1743 = vadd.f32 %v1742, %v1728
    %v1744 = vadd.f32 %v1743, %v1729
    %v1745 = vadd.f32 %v1744, %v1730
    %v1746 = vadd.f32 %v1745, %v1731
    %v1747 = vadd.f32 %v1746, %v1732
    %v1748 = vadd.f32 %v1747, %v1733
    %v1749 = vadd.f32 %v1748, %v1734
    %v1750 = vadd.f32 %v1749, %v1735
    %v1751 = vadd.f32 %v1750, %v1736
    %v1752 = vadd.f32 %v1751, %v1737
    %v1753 = vadd.f32 %v1752, %v1738
    %v1754 = vadd.f32 %v1753, %v1739
    %v1755 = vrot.slane %v1754, 4
    %v1756 = vadd.f32 %v1754, %v1755
    %v1757 = vrot.slane %v1756, 2
    %v1758 = vadd.f32 %v1756, %v1757
    %v1759 = vrot.slane %v1758, 1
    %v1760 = vadd.f32 %v1758, %v1759
    %v1761 = vadd.f32 %v1723, %v1760
    %v1762 = vmul.f32 %v1761, 0.00024414063
    %s1763 = scalar_lea.vmem [#allocation9], 256
    %v1764 = vld [vmem:[%s1763] sm:$0xff]
    %v1765 = vld [vmem:[%s1763 + $0x8] sm:$0xff]
    %v1766 = vld [vmem:[%s1763 + $0x10] sm:$0xff]
    %v1767 = vld [vmem:[%s1763 + $0x18] sm:$0xff]
    %v1768 = vld [vmem:[%s1763 + $0x20] sm:$0xff]
    %v1769 = vld [vmem:[%s1763 + $0x28] sm:$0xff]
    %v1770 = vld [vmem:[%s1763 + $0x30] sm:$0xff]
    %v1771 = vld [vmem:[%s1763 + $0x38] sm:$0xff]
    %v1772 = vld [vmem:[%s1763 + $0x40] sm:$0xff]
    %v1773 = vld [vmem:[%s1763 + $0x48] sm:$0xff]
    %v1774 = vld [vmem:[%s1763 + $0x50] sm:$0xff]
    %v1775 = vld [vmem:[%s1763 + $0x58] sm:$0xff]
    %v1776 = vld [vmem:[%s1763 + $0x60] sm:$0xff]
    %v1777 = vld [vmem:[%s1763 + $0x68] sm:$0xff]
    %v1778 = vld [vmem:[%s1763 + $0x70] sm:$0xff]
    %v1779 = vld [vmem:[%s1763 + $0x78] sm:$0xff]
    %1780 = vmatprep.subr.mxu0 0.0
    %1781 = vmatpush1.msra.mxu0 %v1764
    %1782 = vmatprep.subr.mxu0 0.0
    %1783 = vmatpush1.msra.mxu0 %v1765
    %1784 = vmatprep.subr.mxu0 0.0
    %1785 = vmatpush1.msra.mxu0 %v1766
    %1786 = vmatprep.subr.mxu0 0.0
    %1787 = vmatpush1.msra.mxu0 %v1767
    %1788 = vmatprep.subr.mxu0 0.0
    %1789 = vmatpush1.msra.mxu0 %v1768
    %1790 = vmatprep.subr.mxu0 0.0
    %1791 = vmatpush1.msra.mxu0 %v1769
    %1792 = vmatprep.subr.mxu0 0.0
    %1793 = vmatpush1.msra.mxu0 %v1770
    %1794 = vmatprep.subr.mxu0 0.0
    %1795 = vmatpush1.msra.mxu0 %v1771
    %1796 = vmatprep.subr.mxu0 0.0
    %1797 = vmatpush1.msra.mxu0 %v1772
    %1798 = vmatprep.subr.mxu0 0.0
    %1799 = vmatpush1.msra.mxu0 %v1773
    %1800 = vmatprep.subr.mxu0 0.0
    %1801 = vmatpush1.msra.mxu0 %v1774
    %1802 = vmatprep.subr.mxu0 0.0
    %1803 = vmatpush1.msra.mxu0 %v1775
    %1804 = vmatprep.subr.mxu0 0.0
    %1805 = vmatpush1.msra.mxu0 %v1776
    %1806 = vmatprep.subr.mxu0 0.0
    %1807 = vmatpush1.msra.mxu0 %v1777
    %1808 = vmatprep.subr.mxu0 0.0
    %1809 = vmatpush1.msra.mxu0 %v1778
    %1810 = vmatprep.subr.mxu0 0.0
    %1811 = vmatpush1.msra.mxu0 %v1779
    %1812 = vmatprep.subr.mxu0 0.0
    %1813 = vmatpush1.msra.mxu0 0.0
    %1814 = vmatprep.subr.mxu0 0.0
    %1815 = vmatpush1.msra.mxu0 0.0
    %1816 = vmatprep.subr.mxu0 0.0
    %1817 = vmatpush1.msra.mxu0 0.0
    %1818 = vmatprep.subr.mxu0 0.0
    %1819 = vmatpush1.msra.mxu0 0.0
    %1820 = vmatprep.subr.mxu0 0.0
    %1821 = vmatpush1.msra.mxu0 0.0
    %1822 = vmatprep.subr.mxu0 0.0
    %1823 = vmatpush1.msra.mxu0 0.0
    %1824 = vmatprep.subr.mxu0 0.0
    %1825 = vmatpush1.msra.mxu0 0.0
    %1826 = vmatprep.subr.mxu0 0.0
    %1827 = vmatpush1.msra.mxu0 0.0
    %1828 = vmatprep.subr.mxu0 0.0
    %1829 = vmatpush1.msra.mxu0 0.0
    %1830 = vmatprep.subr.mxu0 0.0
    %1831 = vmatpush1.msra.mxu0 0.0
    %1832 = vmatprep.subr.mxu0 0.0
    %1833 = vmatpush1.msra.mxu0 0.0
    %1834 = vmatprep.subr.mxu0 0.0
    %1835 = vmatpush1.msra.mxu0 0.0
    %1836 = vmatprep.subr.mxu0 0.0
    %1837 = vmatpush1.msra.mxu0 0.0
    %1838 = vmatprep.subr.mxu0 0.0
    %1839 = vmatpush1.msra.mxu0 0.0
    %1840 = vmatprep.subr.mxu0 0.0
    %1841 = vmatpush1.msra.mxu0 0.0
    %1842 = vmatprep.subr.mxu0 0.0
    %1843 = vmatpush1.msra.mxu0 0.0
    %1844 = vmatprep.mubr.f32.mxu0 0.0
    %1845 = vmatmul.mubr.f32.gmra.mrb[0].mxu0 %v1686
    %v1846 = vpop.f32.mrb[0].mxu0
    %v1847 = vadd.f32 0.0, %v1846
    %v1848 = vpop.f32.mrb[0].mxu0
    %1849 = vdwg.mxu0
    %1850 = vmatprep.subr.mxu0 0.0
    %1851 = vmatpush1.msra.mxu0 %v1764
    %1852 = vmatprep.subr.mxu0 0.0
    %1853 = vmatpush1.msra.mxu0 %v1765
    %1854 = vmatprep.subr.mxu0 0.0
    %1855 = vmatpush1.msra.mxu0 %v1766
    %1856 = vmatprep.subr.mxu0 0.0
    %1857 = vmatpush1.msra.mxu0 %v1767
    %1858 = vmatprep.subr.mxu0 0.0
    %1859 = vmatpush1.msra.mxu0 %v1768
    %1860 = vmatprep.subr.mxu0 0.0
    %1861 = vmatpush1.msra.mxu0 %v1769
    %1862 = vmatprep.subr.mxu0 0.0
    %1863 = vmatpush1.msra.mxu0 %v1770
    %1864 = vmatprep.subr.mxu0 0.0
    %1865 = vmatpush1.msra.mxu0 %v1771
    %1866 = vmatprep.subr.mxu0 0.0
    %1867 = vmatpush1.msra.mxu0 %v1772
    %1868 = vmatprep.subr.mxu0 0.0
    %1869 = vmatpush1.msra.mxu0 %v1773
    %1870 = vmatprep.subr.mxu0 0.0
    %1871 = vmatpush1.msra.mxu0 %v1774
    %1872 = vmatprep.subr.mxu0 0.0
    %1873 = vmatpush1.msra.mxu0 %v1775
    %1874 = vmatprep.subr.mxu0 0.0
    %1875 = vmatpush1.msra.mxu0 %v1776
    %1876 = vmatprep.subr.mxu0 0.0
    %1877 = vmatpush1.msra.mxu0 %v1777
    %1878 = vmatprep.subr.mxu0 0.0
    %1879 = vmatpush1.msra.mxu0 %v1778
    %1880 = vmatprep.subr.mxu0 0.0
    %1881 = vmatpush1.msra.mxu0 %v1779
    %1882 = vmatprep.subr.mxu0 0.0
    %1883 = vmatpush1.msra.mxu0 0.0
    %1884 = vmatprep.subr.mxu0 0.0
    %1885 = vmatpush1.msra.mxu0 0.0
    %1886 = vmatprep.subr.mxu0 0.0
    %1887 = vmatpush1.msra.mxu0 0.0
    %1888 = vmatprep.subr.mxu0 0.0
    %1889 = vmatpush1.msra.mxu0 0.0
    %1890 = vmatprep.subr.mxu0 0.0
    %1891 = vmatpush1.msra.mxu0 0.0
    %1892 = vmatprep.subr.mxu0 0.0
    %1893 = vmatpush1.msra.mxu0 0.0
    %1894 = vmatprep.subr.mxu0 0.0
    %1895 = vmatpush1.msra.mxu0 0.0
    %1896 = vmatprep.subr.mxu0 0.0
    %1897 = vmatpush1.msra.mxu0 0.0
    %1898 = vmatprep.subr.mxu0 0.0
    %1899 = vmatpush1.msra.mxu0 0.0
    %1900 = vmatprep.subr.mxu0 0.0
    %1901 = vmatpush1.msra.mxu0 0.0
    %1902 = vmatprep.subr.mxu0 0.0
    %1903 = vmatpush1.msra.mxu0 0.0
    %1904 = vmatprep.subr.mxu0 0.0
    %1905 = vmatpush1.msra.mxu0 0.0
    %1906 = vmatprep.subr.mxu0 0.0
    %1907 = vmatpush1.msra.mxu0 0.0
    %1908 = vmatprep.subr.mxu0 0.0
    %1909 = vmatpush1.msra.mxu0 0.0
    %1910 = vmatprep.subr.mxu0 0.0
    %1911 = vmatpush1.msra.mxu0 0.0
    %1912 = vmatprep.subr.mxu0 0.0
    %1913 = vmatpush1.msra.mxu0 0.0
    %1914 = vmatprep.mubr.f32.mxu0 0.0
    %1915 = vmatmul.mubr.f32.gmra.mrb[0].mxu0 %v1762
    %v1916 = vpop.f32.mrb[0].mxu0
    %v1917 = vadd.f32 0.0, %v1916
    %v1918 = vpop.f32.mrb[0].mxu0
    %1919 = vdwg.mxu0
    %v1920 = vmul.f32 %v1847, %v1847
    %v1921 = vsub.f32 %v1917, %v1920
    %v1922 = vmax.f32 %v1921, 0.0
    %v1923 = vadd.f32 %v1922, 1e-05
    %v1924 = vrsqrt.pop %v1923
    %s1925 = scalar_lea.vmem %s6, 2
    %v1926 = vld [vmem:[%s1925] sm:$0x1]
    %v1927 = vmul.f32 %v1924, %v1926
    %s1928 = scalar_lea.vmem %s7, 2
    %v1929 = vld [vmem:[%s1928] sm:$0x1]
    %v1930 = vmul.f32 %v1847, %v1927
    %v1931 = vsub.f32 %v1929, %v1930
    %v1932 = vlaneseq
    %v1933 = vshrl.u32 %v1932, 7
    %v1934 = vsub.s32 0, %v1933
    %v1935 = vrot.slane %v1927, %v1934
    %v1936 = vmul.f32 %v1549, %v1935
    %v1937 = vmul.f32 %v1555, %v1935
    %v1938 = vmul.f32 %v1561, %v1935
    %v1939 = vmul.f32 %v1567, %v1935
    %v1940 = vmul.f32 %v1573, %v1935
    %v1941 = vmul.f32 %v1579, %v1935
    %v1942 = vmul.f32 %v1585, %v1935
    %v1943 = vmul.f32 %v1591, %v1935
    %v1944 = vmul.f32 %v1597, %v1935
    %v1945 = vmul.f32 %v1603, %v1935
    %v1946 = vmul.f32 %v1609, %v1935
    %v1947 = vmul.f32 %v1615, %v1935
    %v1948 = vmul.f32 %v1621, %v1935
    %v1949 = vmul.f32 %v1627, %v1935
    %v1950 = vmul.f32 %v1633, %v1935
    %v1951 = vmul.f32 %v1639, %v1935
    %v1953 = vlaneseq
    %v1954 = vshrl.u32 %v1953, 7
    %v1955 = vsub.s32 0, %v1954
    %v1956 = vrot.slane %v1931, %v1955
    %v1958 = vadd.f32 %v1936, %v1956
    %v1959 = vadd.f32 %v1937, %v1956
    %v1960 = vadd.f32 %v1938, %v1956
    %v1961 = vadd.f32 %v1939, %v1956
    %v1962 = vadd.f32 %v1940, %v1956
    %v1963 = vadd.f32 %v1941, %v1956
    %v1964 = vadd.f32 %v1942, %v1956
    %v1965 = vadd.f32 %v1943, %v1956
    %v1966 = vadd.f32 %v1944, %v1956
    %v1967 = vadd.f32 %v1945, %v1956
    %v1968 = vadd.f32 %v1946, %v1956
    %v1969 = vadd.f32 %v1947, %v1956
    %v1970 = vadd.f32 %v1948, %v1956
    %v1971 = vadd.f32 %v1949, %v1956
    %v1972 = vadd.f32 %v1950, %v1956
    %v1973 = vadd.f32 %v1951, %v1956
    %v1974 = vmul.f32 %v1551, %v1935
    %v1975 = vmul.f32 %v1557, %v1935
    %v1976 = vmul.f32 %v1563, %v1935
    %v1977 = vmul.f32 %v1569, %v1935
    %v1978 = vmul.f32 %v1575, %v1935
    %v1979 = vmul.f32 %v1581, %v1935
    %v1980 = vmul.f32 %v1587, %v1935
    %v1981 = vmul.f32 %v1593, %v1935
    %v1982 = vmul.f32 %v1599, %v1935
    %v1983 = vmul.f32 %v1605, %v1935
    %v1984 = vmul.f32 %v1611, %v1935
    %v1985 = vmul.f32 %v1617, %v1935
    %v1986 = vmul.f32 %v1623, %v1935
    %v1987 = vmul.f32 %v1629, %v1935
    %v1988 = vmul.f32 %v1635, %v1935
    %v1989 = vmul.f32 %v1641, %v1935
    %v1990 = vadd.f32 %v1974, %v1956
    %v1991 = vadd.f32 %v1975, %v1956
    %v1992 = vadd.f32 %v1976, %v1956
    %v1993 = vadd.f32 %v1977, %v1956
    %v1994 = vadd.f32 %v1978, %v1956
    %v1995 = vadd.f32 %v1979, %v1956
    %v1996 = vadd.f32 %v1980, %v1956
    %v1997 = vadd.f32 %v1981, %v1956
    %v1998 = vadd.f32 %v1982, %v1956
    %v1999 = vadd.f32 %v1983, %v1956
    %v2000 = vadd.f32 %v1984, %v1956
    %v2001 = vadd.f32 %v1985, %v1956
    %v2002 = vadd.f32 %v1986, %v1956
    %v2003 = vadd.f32 %v1987, %v1956
    %v2004 = vadd.f32 %v1988, %v1956
    %v2005 = vadd.f32 %v1989, %v1956
    %vm2006 = vcmp.ge.f32.partialorder %v1958, 0.0
    %vm2007 = vcmp.ge.f32.partialorder %v1959, 0.0
    %vm2008 = vcmp.ge.f32.partialorder %v1960, 0.0
    %vm2009 = vcmp.ge.f32.partialorder %v1961, 0.0
    %vm2010 = vcmp.ge.f32.partialorder %v1962, 0.0
    %vm2011 = vcmp.ge.f32.partialorder %v1963, 0.0
    %vm2012 = vcmp.ge.f32.partialorder %v1964, 0.0
    %vm2013 = vcmp.ge.f32.partialorder %v1965, 0.0
    %vm2014 = vcmp.ge.f32.partialorder %v1966, 0.0
    %vm2015 = vcmp.ge.f32.partialorder %v1967, 0.0
    %vm2016 = vcmp.ge.f32.partialorder %v1968, 0.0
    %vm2017 = vcmp.ge.f32.partialorder %v1969, 0.0
    %vm2018 = vcmp.ge.f32.partialorder %v1970, 0.0
    %vm2019 = vcmp.ge.f32.partialorder %v1971, 0.0
    %vm2020 = vcmp.ge.f32.partialorder %v1972, 0.0
    %vm2021 = vcmp.ge.f32.partialorder %v1973, 0.0
    %v2022 = vmul.f32 %v1958, 0.01
    %v2023 = vmul.f32 %v1959, 0.01
    %v2024 = vmul.f32 %v1960, 0.01
    %v2025 = vmul.f32 %v1961, 0.01
    %v2026 = vmul.f32 %v1962, 0.01
    %v2027 = vmul.f32 %v1963, 0.01
    %v2028 = vmul.f32 %v1964, 0.01
    %v2029 = vmul.f32 %v1965, 0.01
    %v2030 = vmul.f32 %v1966, 0.01
    %v2031 = vmul.f32 %v1967, 0.01
    %v2032 = vmul.f32 %v1968, 0.01
    %v2033 = vmul.f32 %v1969, 0.01
    %v2034 = vmul.f32 %v1970, 0.01
    %v2035 = vmul.f32 %v1971, 0.01
    %v2036 = vmul.f32 %v1972, 0.01
    %v2037 = vmul.f32 %v1973, 0.01
    %v2038 = vsel %vm2006, %v1958, %v2022
    %v2039 = vsel %vm2007, %v1959, %v2023
    %v2040 = vsel %vm2008, %v1960, %v2024
    %v2041 = vsel %vm2009, %v1961, %v2025
    %v2042 = vsel %vm2010, %v1962, %v2026
    %v2043 = vsel %vm2011, %v1963, %v2027
    %v2044 = vsel %vm2012, %v1964, %v2028
    %v2045 = vsel %vm2013, %v1965, %v2029
    %v2046 = vsel %vm2014, %v1966, %v2030
    %v2047 = vsel %vm2015, %v1967, %v2031
    %v2048 = vsel %vm2016, %v1968, %v2032
    %v2049 = vsel %vm2017, %v1969, %v2033
    %v2050 = vsel %vm2018, %v1970, %v2034
    %v2051 = vsel %vm2019, %v1971, %v2035
    %v2052 = vsel %vm2020, %v1972, %v2036
    %v2053 = vsel %vm2021, %v1973, %v2037
    %vm2054 = vcmp.ge.f32.partialorder %v1990, 0.0
    %vm2055 = vcmp.ge.f32.partialorder %v1991, 0.0
    %vm2056 = vcmp.ge.f32.partialorder %v1992, 0.0
    %vm2057 = vcmp.ge.f32.partialorder %v1993, 0.0
    %vm2058 = vcmp.ge.f32.partialorder %v1994, 0.0
    %vm2059 = vcmp.ge.f32.partialorder %v1995, 0.0
    %vm2060 = vcmp.ge.f32.partialorder %v1996, 0.0
    %vm2061 = vcmp.ge.f32.partialorder %v1997, 0.0
    %vm2062 = vcmp.ge.f32.partialorder %v1998, 0.0
    %vm2063 = vcmp.ge.f32.partialorder %v1999, 0.0
    %vm2064 = vcmp.ge.f32.partialorder %v2000, 0.0
    %vm2065 = vcmp.ge.f32.partialorder %v2001, 0.0
    %vm2066 = vcmp.ge.f32.partialorder %v2002, 0.0
    %vm2067 = vcmp.ge.f32.partialorder %v2003, 0.0
    %vm2068 = vcmp.ge.f32.partialorder %v2004, 0.0
    %vm2069 = vcmp.ge.f32.partialorder %v2005, 0.0
    %v2070 = vmul.f32 %v1990, 0.01
    %v2071 = vmul.f32 %v1991, 0.01
    %v2072 = vmul.f32 %v1992, 0.01
    %v2073 = vmul.f32 %v1993, 0.01
    %v2074 = vmul.f32 %v1994, 0.01
    %v2075 = vmul.f32 %v1995, 0.01
    %v2076 = vmul.f32 %v1996, 0.01
    %v2077 = vmul.f32 %v1997, 0.01
    %v2078 = vmul.f32 %v1998, 0.01
    %v2079 = vmul.f32 %v1999, 0.01
    %v2080 = vmul.f32 %v2000, 0.01
    %v2081 = vmul.f32 %v2001, 0.01
    %v2082 = vmul.f32 %v2002, 0.01
    %v2083 = vmul.f32 %v2003, 0.01
    %v2084 = vmul.f32 %v2004, 0.01
    %v2085 = vmul.f32 %v2005, 0.01
    %v2086 = vsel %vm2054, %v1990, %v2070
    %v2087 = vsel %vm2055, %v1991, %v2071
    %v2088 = vsel %vm2056, %v1992, %v2072
    %v2089 = vsel %vm2057, %v1993, %v2073
    %v2090 = vsel %vm2058, %v1994, %v2074
    %v2091 = vsel %vm2059, %v1995, %v2075
    %v2092 = vsel %vm2060, %v1996, %v2076
    %v2093 = vsel %vm2061, %v1997, %v2077
    %v2094 = vsel %vm2062, %v1998, %v2078
    %v2095 = vsel %vm2063, %v1999, %v2079
    %v2096 = vsel %vm2064, %v2000, %v2080
    %v2097 = vsel %vm2065, %v2001, %v2081
    %v2098 = vsel %vm2066, %v2002, %v2082
    %v2099 = vsel %vm2067, %v2003, %v2083
    %v2100 = vsel %vm2068, %v2004, %v2084
    %v2101 = vsel %vm2069, %v2005, %v2085
    %2102 = vst [vmem:[#allocation3] sm:$0xff] %v2038
    %2103 = vst [vmem:[#allocation3 + $0x8] sm:$0xff] %v2039
    %2104 = vst [vmem:[#allocation3 + $0x10] sm:$0xff] %v2040
    %2105 = vst [vmem:[#allocation3 + $0x18] sm:$0xff] %v2041
    %2106 = vst [vmem:[#allocation3 + $0x20] sm:$0xff] %v2042
    %2107 = vst [vmem:[#allocation3 + $0x28] sm:$0xff] %v2043
    %2108 = vst [vmem:[#allocation3 + $0x30] sm:$0xff] %v2044
    %2109 = vst [vmem:[#allocation3 + $0x38] sm:$0xff] %v2045
    %2110 = vst [vmem:[#allocation3 + $0x40] sm:$0xff] %v2046
    %2111 = vst [vmem:[#allocation3 + $0x48] sm:$0xff] %v2047
    %2112 = vst [vmem:[#allocation3 + $0x50] sm:$0xff] %v2048
    %2113 = vst [vmem:[#allocation3 + $0x58] sm:$0xff] %v2049
    %2114 = vst [vmem:[#allocation3 + $0x60] sm:$0xff] %v2050
    %2115 = vst [vmem:[#allocation3 + $0x68] sm:$0xff] %v2051
    %2116 = vst [vmem:[#allocation3 + $0x70] sm:$0xff] %v2052
    %2117 = vst [vmem:[#allocation3 + $0x78] sm:$0xff] %v2053
    %2118 = vst [vmem:[#allocation3 + $0x80] sm:$0xff] %v2086
    %2119 = vst [vmem:[#allocation3 + $0x88] sm:$0xff] %v2087
    %2120 = vst [vmem:[#allocation3 + $0x90] sm:$0xff] %v2088
    %2121 = vst [vmem:[#allocation3 + $0x98] sm:$0xff] %v2089
    %2122 = vst [vmem:[#allocation3 + $0xa0] sm:$0xff] %v2090
    %2123 = vst [vmem:[#allocation3 + $0xa8] sm:$0xff] %v2091
    %2124 = vst [vmem:[#allocation3 + $0xb0] sm:$0xff] %v2092
    %2125 = vst [vmem:[#allocation3 + $0xb8] sm:$0xff] %v2093
    %2126 = vst [vmem:[#allocation3 + $0xc0] sm:$0xff] %v2094
    %2127 = vst [vmem:[#allocation3 + $0xc8] sm:$0xff] %v2095
    %2128 = vst [vmem:[#allocation3 + $0xd0] sm:$0xff] %v2096
    %2129 = vst [vmem:[#allocation3 + $0xd8] sm:$0xff] %v2097
    %2130 = vst [vmem:[#allocation3 + $0xe0] sm:$0xff] %v2098
    %2131 = vst [vmem:[#allocation3 + $0xe8] sm:$0xff] %v2099
    %2132 = vst [vmem:[#allocation3 + $0xf0] sm:$0xff] %v2100
    %2133 = vst [vmem:[#allocation3 + $0xf8] sm:$0xff] %v2101
    %v2134 = vld [vmem:[#allocation3] sm:$0xff]
    %v2135 = vld [vmem:[#allocation3 + $0x8] sm:$0xff]
    %v2136 = vld [vmem:[#allocation3 + $0x10] sm:$0xff]
    %v2137 = vld [vmem:[#allocation3 + $0x18] sm:$0xff]
    %v2138 = vld [vmem:[#allocation3 + $0x20] sm:$0xff]
    %v2139 = vld [vmem:[#allocation3 + $0x28] sm:$0xff]
    %v2140 = vld [vmem:[#allocation3 + $0x30] sm:$0xff]
    %v2141 = vld [vmem:[#allocation3 + $0x38] sm:$0xff]
    %v2142 = vld [vmem:[#allocation3 + $0x40] sm:$0xff]
    %v2143 = vld [vmem:[#allocation3 + $0x48] sm:$0xff]
    %v2144 = vld [vmem:[#allocation3 + $0x50] sm:$0xff]
    %v2145 = vld [vmem:[#allocation3 + $0x58] sm:$0xff]
    %v2146 = vld [vmem:[#allocation3 + $0x60] sm:$0xff]
    %v2147 = vld [vmem:[#allocation3 + $0x68] sm:$0xff]
    %v2148 = vld [vmem:[#allocation3 + $0x70] sm:$0xff]
    %v2149 = vld [vmem:[#allocation3 + $0x78] sm:$0xff]
    %v2150 = vld [vmem:[#allocation3 + $0x80] sm:$0xff]
    %v2151 = vld [vmem:[#allocation3 + $0x88] sm:$0xff]
    %v2152 = vld [vmem:[#allocation3 + $0x90] sm:$0xff]
    %v2153 = vld [vmem:[#allocation3 + $0x98] sm:$0xff]
    %v2154 = vld [vmem:[#allocation3 + $0xa0] sm:$0xff]
    %v2155 = vld [vmem:[#allocation3 + $0xa8] sm:$0xff]
    %v2156 = vld [vmem:[#allocation3 + $0xb0] sm:$0xff]
    %v2157 = vld [vmem:[#allocation3 + $0xb8] sm:$0xff]
    %v2158 = vld [vmem:[#allocation3 + $0xc0] sm:$0xff]
    %v2159 = vld [vmem:[#allocation3 + $0xc8] sm:$0xff]
    %v2160 = vld [vmem:[#allocation3 + $0xd0] sm:$0xff]
    %v2161 = vld [vmem:[#allocation3 + $0xd8] sm:$0xff]
    %v2162 = vld [vmem:[#allocation3 + $0xe0] sm:$0xff]
    %v2163 = vld [vmem:[#allocation3 + $0xe8] sm:$0xff]
    %v2164 = vld [vmem:[#allocation3 + $0xf0] sm:$0xff]
    %v2165 = vld [vmem:[#allocation3 + $0xf8] sm:$0xff]
    %s2166 = scalar_lea.vmem [#allocation8], 768
    %v2167 = vld [vmem:[%s2166] sm:$0xff]
    %v2168 = vld [vmem:[%s2166 + $0x8] sm:$0xff]
    %v2169 = vld [vmem:[%s2166 + $0x10] sm:$0xff]
    %v2170 = vld [vmem:[%s2166 + $0x18] sm:$0xff]
    %v2171 = vld [vmem:[%s2166 + $0x20] sm:$0xff]
    %v2172 = vld [vmem:[%s2166 + $0x28] sm:$0xff]
    %v2173 = vld [vmem:[%s2166 + $0x30] sm:$0xff]
    %v2174 = vld [vmem:[%s2166 + $0x38] sm:$0xff]
    %v2175 = vld [vmem:[%s2166 + $0x40] sm:$0xff]
    %v2176 = vld [vmem:[%s2166 + $0x48] sm:$0xff]
    %v2177 = vld [vmem:[%s2166 + $0x50] sm:$0xff]
    %v2178 = vld [vmem:[%s2166 + $0x58] sm:$0xff]
    %v2179 = vld [vmem:[%s2166 + $0x60] sm:$0xff]
    %v2180 = vld [vmem:[%s2166 + $0x68] sm:$0xff]
    %v2181 = vld [vmem:[%s2166 + $0x70] sm:$0xff]
    %v2182 = vld [vmem:[%s2166 + $0x78] sm:$0xff]
    %v2183 = vld [vmem:[%s2166 + $0x80] sm:$0xff]
    %v2184 = vld [vmem:[%s2166 + $0x88] sm:$0xff]
    %v2185 = vld [vmem:[%s2166 + $0x90] sm:$0xff]
    %v2186 = vld [vmem:[%s2166 + $0x98] sm:$0xff]
    %v2187 = vld [vmem:[%s2166 + $0xa0] sm:$0xff]
    %v2188 = vld [vmem:[%s2166 + $0xa8] sm:$0xff]
    %v2189 = vld [vmem:[%s2166 + $0xb0] sm:$0xff]
    %v2190 = vld [vmem:[%s2166 + $0xb8] sm:$0xff]
    %v2191 = vld [vmem:[%s2166 + $0xc0] sm:$0xff]
    %v2192 = vld [vmem:[%s2166 + $0xc8] sm:$0xff]
    %v2193 = vld [vmem:[%s2166 + $0xd0] sm:$0xff]
    %v2194 = vld [vmem:[%s2166 + $0xd8] sm:$0xff]
    %v2195 = vld [vmem:[%s2166 + $0xe0] sm:$0xff]
    %v2196 = vld [vmem:[%s2166 + $0xe8] sm:$0xff]
    %v2197 = vld [vmem:[%s2166 + $0xf0] sm:$0xff]
    %v2198 = vld [vmem:[%s2166 + $0xf8] sm:$0xff]
    %2199 = vmatprep.subr.mxu0 %v2168
    %2200 = vmatpush1.msra.mxu0 %v2167
    %2201 = vmatprep.subr.mxu0 %v2170
    %2202 = vmatpush1.msra.mxu0 %v2169
    %2203 = vmatprep.subr.mxu0 %v2172
    %2204 = vmatpush1.msra.mxu0 %v2171
    %2205 = vmatprep.subr.mxu0 %v2174
    %2206 = vmatpush1.msra.mxu0 %v2173
    %2207 = vmatprep.subr.mxu0 %v2176
    %2208 = vmatpush1.msra.mxu0 %v2175
    %2209 = vmatprep.subr.mxu0 %v2178
    %2210 = vmatpush1.msra.mxu0 %v2177
    %2211 = vmatprep.subr.mxu0 %v2180
    %2212 = vmatpush1.msra.mxu0 %v2179
    %2213 = vmatprep.subr.mxu0 %v2182
    %2214 = vmatpush1.msra.mxu0 %v2181
    %2215 = vmatprep.subr.mxu0 %v2184
    %2216 = vmatpush1.msra.mxu0 %v2183
    %2217 = vmatprep.subr.mxu0 %v2186
    %2218 = vmatpush1.msra.mxu0 %v2185
    %2219 = vmatprep.subr.mxu0 %v2188
    %2220 = vmatpush1.msra.mxu0 %v2187
    %2221 = vmatprep.subr.mxu0 %v2190
    %2222 = vmatpush1.msra.mxu0 %v2189
    %2223 = vmatprep.subr.mxu0 %v2192
    %2224 = vmatpush1.msra.mxu0 %v2191
    %2225 = vmatprep.subr.mxu0 %v2194
    %2226 = vmatpush1.msra.mxu0 %v2193
    %2227 = vmatprep.subr.mxu0 %v2196
    %2228 = vmatpush1.msra.mxu0 %v2195
    %2229 = vmatprep.subr.mxu0 %v2198
    %2230 = vmatpush1.msra.mxu0 %v2197
    %2231 = vmatprep.subr.mxu0 0.0
    %2232 = vmatpush1.msra.mxu0 0.0
    %2233 = vmatprep.subr.mxu0 0.0
    %2234 = vmatpush1.msra.mxu0 0.0
    %2235 = vmatprep.subr.mxu0 0.0
    %2236 = vmatpush1.msra.mxu0 0.0
    %2237 = vmatprep.subr.mxu0 0.0
    %2238 = vmatpush1.msra.mxu0 0.0
    %2239 = vmatprep.subr.mxu0 0.0
    %2240 = vmatpush1.msra.mxu0 0.0
    %2241 = vmatprep.subr.mxu0 0.0
    %2242 = vmatpush1.msra.mxu0 0.0
    %2243 = vmatprep.subr.mxu0 0.0
    %2244 = vmatpush1.msra.mxu0 0.0
    %2245 = vmatprep.subr.mxu0 0.0
    %2246 = vmatpush1.msra.mxu0 0.0
    %2247 = vmatprep.subr.mxu0 0.0
    %2248 = vmatpush1.msra.mxu0 0.0
    %2249 = vmatprep.subr.mxu0 0.0
    %2250 = vmatpush1.msra.mxu0 0.0
    %2251 = vmatprep.subr.mxu0 0.0
    %2252 = vmatpush1.msra.mxu0 0.0
    %2253 = vmatprep.subr.mxu0 0.0
    %2254 = vmatpush1.msra.mxu0 0.0
    %2255 = vmatprep.subr.mxu0 0.0
    %2256 = vmatpush1.msra.mxu0 0.0
    %2257 = vmatprep.subr.mxu0 0.0
    %2258 = vmatpush1.msra.mxu0 0.0
    %2259 = vmatprep.subr.mxu0 0.0
    %2260 = vmatpush1.msra.mxu0 0.0
    %2261 = vmatprep.subr.mxu0 0.0
    %2262 = vmatpush1.msra.mxu0 0.0
    %2263 = vmatprep.mubr.f32.mxu0 0.0
    %2264 = vmatmul.mubr.f32.gmra.mrb[0].mxu0 %v2134
    %v2265 = vpop.f32.mrb[0].mxu0
    %v2266 = vadd.f32 0.0, %v2265
    %v2267 = vpop.f32.mrb[0].mxu0
    %v2268 = vadd.f32 0.0, %v2267
    %2269 = vmatprep.mubr.f32.mxu0 0.0
    %2270 = vmatmul.mubr.f32.gmra.mrb[0].mxu0 %v2135
    %v2271 = vpop.f32.mrb[0].mxu0
    %v2272 = vadd.f32 0.0, %v2271
    %v2273 = vpop.f32.mrb[0].mxu0
    %v2274 = vadd.f32 0.0, %v2273
    %2275 = vmatprep.mubr.f32.mxu0 0.0
    %2276 = vmatmul.mubr.f32.gmra.mrb[0].mxu0 %v2136
    %v2277 = vpop.f32.mrb[0].mxu0
    %v2278 = vadd.f32 0.0, %v2277
    %v2279 = vpop.f32.mrb[0].mxu0
    %v2280 = vadd.f32 0.0, %v2279
    %2281 = vmatprep.mubr.f32.mxu0 0.0
    %2282 = vmatmul.mubr.f32.gmra.mrb[0].mxu0 %v2137
    %v2283 = vpop.f32.mrb[0].mxu0
    %v2284 = vadd.f32 0.0, %v2283
    %v2285 = vpop.f32.mrb[0].mxu0
    %v2286 = vadd.f32 0.0, %v2285
    %2287 = vmatprep.mubr.f32.mxu0 0.0
    %2288 = vmatmul.mubr.f32.gmra.mrb[0].mxu0 %v2138
    %v2289 = vpop.f32.mrb[0].mxu0
    %v2290 = vadd.f32 0.0, %v2289
    %v2291 = vpop.f32.mrb[0].mxu0
    %v2292 = vadd.f32 0.0, %v2291
    %2293 = vmatprep.mubr.f32.mxu0 0.0
    %2294 = vmatmul.mubr.f32.gmra.mrb[0].mxu0 %v2139
    %v2295 = vpop.f32.mrb[0].mxu0
    %v2296 = vadd.f32 0.0, %v2295
    %v2297 = vpop.f32.mrb[0].mxu0
    %v2298 = vadd.f32 0.0, %v2297
    %2299 = vmatprep.mubr.f32.mxu0 0.0
    %2300 = vmatmul.mubr.f32.gmra.mrb[0].mxu0 %v2140
    %v2301 = vpop.f32.mrb[0].mxu0
    %v2302 = vadd.f32 0.0, %v2301
    %v2303 = vpop.f32.mrb[0].mxu0
    %v2304 = vadd.f32 0.0, %v2303
    %2305 = vmatprep.mubr.f32.mxu0 0.0
    %2306 = vmatmul.mubr.f32.gmra.mrb[0].mxu0 %v2141
    %v2307 = vpop.f32.mrb[0].mxu0
    %v2308 = vadd.f32 0.0, %v2307
    %v2309 = vpop.f32.mrb[0].mxu0
    %v2310 = vadd.f32 0.0, %v2309
    %2311 = vmatprep.mubr.f32.mxu0 0.0
    %2312 = vmatmul.mubr.f32.gmra.mrb[0].mxu0 %v2142
    %v2313 = vpop.f32.mrb[0].mxu0
    %v2314 = vadd.f32 0.0, %v2313
    %v2315 = vpop.f32.mrb[0].mxu0
    %v2316 = vadd.f32 0.0, %v2315
    %2317 = vmatprep.mubr.f32.mxu0 0.0
    %2318 = vmatmul.mubr.f32.gmra.mrb[0].mxu0 %v2143
    %v2319 = vpop.f32.mrb[0].mxu0
    %v2320 = vadd.f32 0.0, %v2319
    %v2321 = vpop.f32.mrb[0].mxu0
    %v2322 = vadd.f32 0.0, %v2321
    %2323 = vmatprep.mubr.f32.mxu0 0.0
    %2324 = vmatmul.mubr.f32.gmra.mrb[0].mxu0 %v2144
    %v2325 = vpop.f32.mrb[0].mxu0
    %v2326 = vadd.f32 0.0, %v2325
    %v2327 = vpop.f32.mrb[0].mxu0
    %v2328 = vadd.f32 0.0, %v2327
    %2329 = vmatprep.mubr.f32.mxu0 0.0
    %2330 = vmatmul.mubr.f32.gmra.mrb[0].mxu0 %v2145
    %v2331 = vpop.f32.mrb[0].mxu0
    %v2332 = vadd.f32 0.0, %v2331
    %v2333 = vpop.f32.mrb[0].mxu0
    %v2334 = vadd.f32 0.0, %v2333
    %2335 = vmatprep.mubr.f32.mxu0 0.0
    %2336 = vmatmul.mubr.f32.gmra.mrb[0].mxu0 %v2146
    %v2337 = vpop.f32.mrb[0].mxu0
    %v2338 = vadd.f32 0.0, %v2337
    %v2339 = vpop.f32.mrb[0].mxu0
    %v2340 = vadd.f32 0.0, %v2339
    %2341 = vmatprep.mubr.f32.mxu0 0.0
    %2342 = vmatmul.mubr.f32.gmra.mrb[0].mxu0 %v2147
    %v2343 = vpop.f32.mrb[0].mxu0
    %v2344 = vadd.f32 0.0, %v2343
    %v2345 = vpop.f32.mrb[0].mxu0
    %v2346 = vadd.f32 0.0, %v2345
    %2347 = vmatprep.mubr.f32.mxu0 0.0
    %2348 = vmatmul.mubr.f32.gmra.mrb[0].mxu0 %v2148
    %v2349 = vpop.f32.mrb[0].mxu0
    %v2350 = vadd.f32 0.0, %v2349
    %v2351 = vpop.f32.mrb[0].mxu0
    %v2352 = vadd.f32 0.0, %v2351
    %2353 = vmatprep.mubr.f32.mxu0 0.0
    %2354 = vmatmul.mubr.f32.gmra.mrb[0].mxu0 %v2149
    %v2355 = vpop.f32.mrb[0].mxu0
    %v2356 = vadd.f32 0.0, %v2355
    %v2357 = vpop.f32.mrb[0].mxu0
    %v2358 = vadd.f32 0.0, %v2357
    %2359 = vmatprep.mubr.f32.mxu0 0.0
    %2360 = vmatmul.mubr.f32.gmra.mrb[0].mxu0 %v2150
    %v2361 = vpop.f32.mrb[0].mxu0
    %v2362 = vadd.f32 0.0, %v2361
    %v2363 = vpop.f32.mrb[0].mxu0
    %v2364 = vadd.f32 0.0, %v2363
    %2365 = vmatprep.mubr.f32.mxu0 0.0
    %2366 = vmatmul.mubr.f32.gmra.mrb[0].mxu0 %v2151
    %v2367 = vpop.f32.mrb[0].mxu0
    %v2368 = vadd.f32 0.0, %v2367
    %v2369 = vpop.f32.mrb[0].mxu0
    %v2370 = vadd.f32 0.0, %v2369
    %2371 = vmatprep.mubr.f32.mxu0 0.0
    %2372 = vmatmul.mubr.f32.gmra.mrb[0].mxu0 %v2152
    %v2373 = vpop.f32.mrb[0].mxu0
    %v2374 = vadd.f32 0.0, %v2373
    %v2375 = vpop.f32.mrb[0].mxu0
    %v2376 = vadd.f32 0.0, %v2375
    %2377 = vmatprep.mubr.f32.mxu0 0.0
    %2378 = vmatmul.mubr.f32.gmra.mrb[0].mxu0 %v2153
    %v2379 = vpop.f32.mrb[0].mxu0
    %v2380 = vadd.f32 0.0, %v2379
    %v2381 = vpop.f32.mrb[0].mxu0
    %v2382 = vadd.f32 0.0, %v2381
    %2383 = vmatprep.mubr.f32.mxu0 0.0
    %2384 = vmatmul.mubr.f32.gmra.mrb[0].mxu0 %v2154
    %v2385 = vpop.f32.mrb[0].mxu0
    %v2386 = vadd.f32 0.0, %v2385
    %v2387 = vpop.f32.mrb[0].mxu0
    %v2388 = vadd.f32 0.0, %v2387
    %2389 = vmatprep.mubr.f32.mxu0 0.0
    %2390 = vmatmul.mubr.f32.gmra.mrb[0].mxu0 %v2155
    %v2391 = vpop.f32.mrb[0].mxu0
    %v2392 = vadd.f32 0.0, %v2391
    %v2393 = vpop.f32.mrb[0].mxu0
    %v2394 = vadd.f32 0.0, %v2393
    %2395 = vmatprep.mubr.f32.mxu0 0.0
    %2396 = vmatmul.mubr.f32.gmra.mrb[0].mxu0 %v2156
    %v2397 = vpop.f32.mrb[0].mxu0
    %v2398 = vadd.f32 0.0, %v2397
    %v2399 = vpop.f32.mrb[0].mxu0
    %v2400 = vadd.f32 0.0, %v2399
    %2401 = vmatprep.mubr.f32.mxu0 0.0
    %2402 = vmatmul.mubr.f32.gmra.mrb[0].mxu0 %v2157
    %v2403 = vpop.f32.mrb[0].mxu0
    %v2404 = vadd.f32 0.0, %v2403
    %v2405 = vpop.f32.mrb[0].mxu0
    %v2406 = vadd.f32 0.0, %v2405
    %2407 = vmatprep.mubr.f32.mxu0 0.0
    %2408 = vmatmul.mubr.f32.gmra.mrb[0].mxu0 %v2158
    %v2409 = vpop.f32.mrb[0].mxu0
    %v2410 = vadd.f32 0.0, %v2409
    %v2411 = vpop.f32.mrb[0].mxu0
    %v2412 = vadd.f32 0.0, %v2411
    %2413 = vmatprep.mubr.f32.mxu0 0.0
    %2414 = vmatmul.mubr.f32.gmra.mrb[0].mxu0 %v2159
    %v2415 = vpop.f32.mrb[0].mxu0
    %v2416 = vadd.f32 0.0, %v2415
    %v2417 = vpop.f32.mrb[0].mxu0
    %v2418 = vadd.f32 0.0, %v2417
    %2419 = vmatprep.mubr.f32.mxu0 0.0
    %2420 = vmatmul.mubr.f32.gmra.mrb[0].mxu0 %v2160
    %v2421 = vpop.f32.mrb[0].mxu0
    %v2422 = vadd.f32 0.0, %v2421
    %v2423 = vpop.f32.mrb[0].mxu0
    %v2424 = vadd.f32 0.0, %v2423
    %2425 = vmatprep.mubr.f32.mxu0 0.0
    %2426 = vmatmul.mubr.f32.gmra.mrb[0].mxu0 %v2161
    %v2427 = vpop.f32.mrb[0].mxu0
    %v2428 = vadd.f32 0.0, %v2427
    %v2429 = vpop.f32.mrb[0].mxu0
    %v2430 = vadd.f32 0.0, %v2429
    %2431 = vmatprep.mubr.f32.mxu0 0.0
    %2432 = vmatmul.mubr.f32.gmra.mrb[0].mxu0 %v2162
    %v2433 = vpop.f32.mrb[0].mxu0
    %v2434 = vadd.f32 0.0, %v2433
    %v2435 = vpop.f32.mrb[0].mxu0
    %v2436 = vadd.f32 0.0, %v2435
    %2437 = vmatprep.mubr.f32.mxu0 0.0
    %2438 = vmatmul.mubr.f32.gmra.mrb[0].mxu0 %v2163
    %v2439 = vpop.f32.mrb[0].mxu0
    %v2440 = vadd.f32 0.0, %v2439
    %v2441 = vpop.f32.mrb[0].mxu0
    %v2442 = vadd.f32 0.0, %v2441
    %2443 = vmatprep.mubr.f32.mxu0 0.0
    %2444 = vmatmul.mubr.f32.gmra.mrb[0].mxu0 %v2164
    %v2445 = vpop.f32.mrb[0].mxu0
    %v2446 = vadd.f32 0.0, %v2445
    %v2447 = vpop.f32.mrb[0].mxu0
    %v2448 = vadd.f32 0.0, %v2447
    %2449 = vmatprep.mubr.f32.mxu0 0.0
    %2450 = vmatmul.mubr.f32.gmra.mrb[0].mxu0 %v2165
    %v2451 = vpop.f32.mrb[0].mxu0
    %v2452 = vadd.f32 0.0, %v2451
    %v2453 = vpop.f32.mrb[0].mxu0
    %v2454 = vadd.f32 0.0, %v2453
    %2455 = vdwg.mxu0
    %v2456 = vadd.f32 %v2266, %v2272
    %v2457 = vadd.f32 %v2456, %v2278
    %v2458 = vadd.f32 %v2457, %v2284
    %v2459 = vadd.f32 %v2458, %v2290
    %v2460 = vadd.f32 %v2459, %v2296
    %v2461 = vadd.f32 %v2460, %v2302
    %v2462 = vadd.f32 %v2461, %v2308
    %v2463 = vadd.f32 %v2462, %v2314
    %v2464 = vadd.f32 %v2463, %v2320
    %v2465 = vadd.f32 %v2464, %v2326
    %v2466 = vadd.f32 %v2465, %v2332
    %v2467 = vadd.f32 %v2466, %v2338
    %v2468 = vadd.f32 %v2467, %v2344
    %v2469 = vadd.f32 %v2468, %v2350
    %v2470 = vadd.f32 %v2469, %v2356
    %v2471 = vadd.f32 %v2470, %v2362
    %v2472 = vadd.f32 %v2471, %v2368
    %v2473 = vadd.f32 %v2472, %v2374
    %v2474 = vadd.f32 %v2473, %v2380
    %v2475 = vadd.f32 %v2474, %v2386
    %v2476 = vadd.f32 %v2475, %v2392
    %v2477 = vadd.f32 %v2476, %v2398
    %v2478 = vadd.f32 %v2477, %v2404
    %v2479 = vadd.f32 %v2478, %v2410
    %v2480 = vadd.f32 %v2479, %v2416
    %v2481 = vadd.f32 %v2480, %v2422
    %v2482 = vadd.f32 %v2481, %v2428
    %v2483 = vadd.f32 %v2482, %v2434
    %v2484 = vadd.f32 %v2483, %v2440
    %v2485 = vadd.f32 %v2484, %v2446
    %v2486 = vadd.f32 %v2485, %v2452
    %v2487 = vrot.slane %v2486, 4
    %v2488 = vadd.f32 %v2486, %v2487
    %v2489 = vrot.slane %v2488, 2
    %v2490 = vadd.f32 %v2488, %v2489
    %v2491 = vrot.slane %v2490, 1
    %v2492 = vadd.f32 %v2490, %v2491
    %v2493 = vadd.f32 %v2268, %v2274
    %v2494 = vadd.f32 %v2493, %v2280
    %v2495 = vadd.f32 %v2494, %v2286
    %v2496 = vadd.f32 %v2495, %v2292
    %v2497 = vadd.f32 %v2496, %v2298
    %v2498 = vadd.f32 %v2497, %v2304
    %v2499 = vadd.f32 %v2498, %v2310
    %v2500 = vadd.f32 %v2499, %v2316
    %v2501 = vadd.f32 %v2500, %v2322
    %v2502 = vadd.f32 %v2501, %v2328
    %v2503 = vadd.f32 %v2502, %v2334
    %v2504 = vadd.f32 %v2503, %v2340
    %v2505 = vadd.f32 %v2504, %v2346
    %v2506 = vadd.f32 %v2505, %v2352
    %v2507 = vadd.f32 %v2506, %v2358
    %v2508 = vadd.f32 %v2507, %v2364
    %v2509 = vadd.f32 %v2508, %v2370
    %v2510 = vadd.f32 %v2509, %v2376
    %v2511 = vadd.f32 %v2510, %v2382
    %v2512 = vadd.f32 %v2511, %v2388
    %v2513 = vadd.f32 %v2512, %v2394
    %v2514 = vadd.f32 %v2513, %v2400
    %v2515 = vadd.f32 %v2514, %v2406
    %v2516 = vadd.f32 %v2515, %v2412
    %v2517 = vadd.f32 %v2516, %v2418
    %v2518 = vadd.f32 %v2517, %v2424
    %v2519 = vadd.f32 %v2518, %v2430
    %v2520 = vadd.f32 %v2519, %v2436
    %v2521 = vadd.f32 %v2520, %v2442
    %v2522 = vadd.f32 %v2521, %v2448
    %v2523 = vadd.f32 %v2522, %v2454
    %v2524 = vrot.slane %v2523, 4
    %v2525 = vadd.f32 %v2523, %v2524
    %v2526 = vrot.slane %v2525, 2
    %v2527 = vadd.f32 %v2525, %v2526
    %v2528 = vrot.slane %v2527, 1
    %v2529 = vadd.f32 %v2527, %v2528
    %v2530 = vadd.f32 %v2492, %v2529
    %v2531 = vmul.f32 %v2530, 6.1035156e-05
    %v2532 = vmul.f32 %v2266, %v2266
    %v2533 = vmul.f32 %v2272, %v2272
    %v2534 = vmul.f32 %v2278, %v2278
    %v2535 = vmul.f32 %v2284, %v2284
    %v2536 = vmul.f32 %v2290, %v2290
    %v2537 = vmul.f32 %v2296, %v2296
    %v2538 = vmul.f32 %v2302, %v2302
    %v2539 = vmul.f32 %v2308, %v2308
    %v2540 = vmul.f32 %v2314, %v2314
    %v2541 = vmul.f32 %v2320, %v2320
    %v2542 = vmul.f32 %v2326, %v2326
    %v2543 = vmul.f32 %v2332, %v2332
    %v2544 = vmul.f32 %v2338, %v2338
    %v2545 = vmul.f32 %v2344, %v2344
    %v2546 = vmul.f32 %v2350, %v2350
    %v2547 = vmul.f32 %v2356, %v2356
    %v2548 = vmul.f32 %v2362, %v2362
    %v2549 = vmul.f32 %v2368, %v2368
    %v2550 = vmul.f32 %v2374, %v2374
    %v2551 = vmul.f32 %v2380, %v2380
    %v2552 = vmul.f32 %v2386, %v2386
    %v2553 = vmul.f32 %v2392, %v2392
    %v2554 = vmul.f32 %v2398, %v2398
    %v2555 = vmul.f32 %v2404, %v2404
    %v2556 = vmul.f32 %v2410, %v2410
    %v2557 = vmul.f32 %v2416, %v2416
    %v2558 = vmul.f32 %v2422, %v2422
    %v2559 = vmul.f32 %v2428, %v2428
    %v2560 = vmul.f32 %v2434, %v2434
    %v2561 = vmul.f32 %v2440, %v2440
    %v2562 = vmul.f32 %v2446, %v2446
    %v2563 = vmul.f32 %v2452, %v2452
    %v2564 = vadd.f32 %v2532, %v2533
    %v2565 = vadd.f32 %v2564, %v2534
    %v2566 = vadd.f32 %v2565, %v2535
    %v2567 = vadd.f32 %v2566, %v2536
    %v2568 = vadd.f32 %v2567, %v2537
    %v2569 = vadd.f32 %v2568, %v2538
    %v2570 = vadd.f32 %v2569, %v2539
    %v2571 = vadd.f32 %v2570, %v2540
    %v2572 = vadd.f32 %v2571, %v2541
    %v2573 = vadd.f32 %v2572, %v2542
    %v2574 = vadd.f32 %v2573, %v2543
    %v2575 = vadd.f32 %v2574, %v2544
    %v2576 = vadd.f32 %v2575, %v2545
    %v2577 = vadd.f32 %v2576, %v2546
    %v2578 = vadd.f32 %v2577, %v2547
    %v2579 = vadd.f32 %v2578, %v2548
    %v2580 = vadd.f32 %v2579, %v2549
    %v2581 = vadd.f32 %v2580, %v2550
    %v2582 = vadd.f32 %v2581, %v2551
    %v2583 = vadd.f32 %v2582, %v2552
    %v2584 = vadd.f32 %v2583, %v2553
    %v2585 = vadd.f32 %v2584, %v2554
    %v2586 = vadd.f32 %v2585, %v2555
    %v2587 = vadd.f32 %v2586, %v2556
    %v2588 = vadd.f32 %v2587, %v2557
    %v2589 = vadd.f32 %v2588, %v2558
    %v2590 = vadd.f32 %v2589, %v2559
    %v2591 = vadd.f32 %v2590, %v2560
    %v2592 = vadd.f32 %v2591, %v2561
    %v2593 = vadd.f32 %v2592, %v2562
    %v2594 = vadd.f32 %v2593, %v2563
    %v2595 = vrot.slane %v2594, 4
    %v2596 = vadd.f32 %v2594, %v2595
    %v2597 = vrot.slane %v2596, 2
    %v2598 = vadd.f32 %v2596, %v2597
    %v2599 = vrot.slane %v2598, 1
    %v2600 = vadd.f32 %v2598, %v2599
    %v2601 = vmul.f32 %v2268, %v2268
    %v2602 = vmul.f32 %v2274, %v2274
    %v2603 = vmul.f32 %v2280, %v2280
    %v2604 = vmul.f32 %v2286, %v2286
    %v2605 = vmul.f32 %v2292, %v2292
    %v2606 = vmul.f32 %v2298, %v2298
    %v2607 = vmul.f32 %v2304, %v2304
    %v2608 = vmul.f32 %v2310, %v2310
    %v2609 = vmul.f32 %v2316, %v2316
    %v2610 = vmul.f32 %v2322, %v2322
    %v2611 = vmul.f32 %v2328, %v2328
    %v2612 = vmul.f32 %v2334, %v2334
    %v2613 = vmul.f32 %v2340, %v2340
    %v2614 = vmul.f32 %v2346, %v2346
    %v2615 = vmul.f32 %v2352, %v2352
    %v2616 = vmul.f32 %v2358, %v2358
    %v2617 = vmul.f32 %v2364, %v2364
    %v2618 = vmul.f32 %v2370, %v2370
    %v2619 = vmul.f32 %v2376, %v2376
    %v2620 = vmul.f32 %v2382, %v2382
    %v2621 = vmul.f32 %v2388, %v2388
    %v2622 = vmul.f32 %v2394, %v2394
    %v2623 = vmul.f32 %v2400, %v2400
    %v2624 = vmul.f32 %v2406, %v2406
    %v2625 = vmul.f32 %v2412, %v2412
    %v2626 = vmul.f32 %v2418, %v2418
    %v2627 = vmul.f32 %v2424, %v2424
    %v2628 = vmul.f32 %v2430, %v2430
    %v2629 = vmul.f32 %v2436, %v2436
    %v2630 = vmul.f32 %v2442, %v2442
    %v2631 = vmul.f32 %v2448, %v2448
    %v2632 = vmul.f32 %v2454, %v2454
    %v2633 = vadd.f32 %v2601, %v2602
    %v2634 = vadd.f32 %v2633, %v2603
    %v2635 = vadd.f32 %v2634, %v2604
    %v2636 = vadd.f32 %v2635, %v2605
    %v2637 = vadd.f32 %v2636, %v2606
    %v2638 = vadd.f32 %v2637, %v2607
    %v2639 = vadd.f32 %v2638, %v2608
    %v2640 = vadd.f32 %v2639, %v2609
    %v2641 = vadd.f32 %v2640, %v2610
    %v2642 = vadd.f32 %v2641, %v2611
    %v2643 = vadd.f32 %v2642, %v2612
    %v2644 = vadd.f32 %v2643, %v2613
    %v2645 = vadd.f32 %v2644, %v2614
    %v2646 = vadd.f32 %v2645, %v2615
    %v2647 = vadd.f32 %v2646, %v2616
    %v2648 = vadd.f32 %v2647, %v2617
    %v2649 = vadd.f32 %v2648, %v2618
    %v2650 = vadd.f32 %v2649, %v2619
    %v2651 = vadd.f32 %v2650, %v2620
    %v2652 = vadd.f32 %v2651, %v2621
    %v2653 = vadd.f32 %v2652, %v2622
    %v2654 = vadd.f32 %v2653, %v2623
    %v2655 = vadd.f32 %v2654, %v2624
    %v2656 = vadd.f32 %v2655, %v2625
    %v2657 = vadd.f32 %v2656, %v2626
    %v2658 = vadd.f32 %v2657, %v2627
    %v2659 = vadd.f32 %v2658, %v2628
    %v2660 = vadd.f32 %v2659, %v2629
    %v2661 = vadd.f32 %v2660, %v2630
    %v2662 = vadd.f32 %v2661, %v2631
    %v2663 = vadd.f32 %v2662, %v2632
    %v2664 = vrot.slane %v2663, 4
    %v2665 = vadd.f32 %v2663, %v2664
    %v2666 = vrot.slane %v2665, 2
    %v2667 = vadd.f32 %v2665, %v2666
    %v2668 = vrot.slane %v2667, 1
    %v2669 = vadd.f32 %v2667, %v2668
    %v2670 = vadd.f32 %v2600, %v2669
    %v2671 = vmul.f32 %v2670, 6.1035156e-05
    %s2672 = scalar_lea.vmem [#allocation9], 384
    %v2673 = vld [vmem:[%s2672] sm:$0xff]
    %v2674 = vld [vmem:[%s2672 + $0x8] sm:$0xff]
    %v2675 = vld [vmem:[%s2672 + $0x10] sm:$0xff]
    %v2676 = vld [vmem:[%s2672 + $0x18] sm:$0xff]
    %v2677 = vld [vmem:[%s2672 + $0x20] sm:$0xff]
    %v2678 = vld [vmem:[%s2672 + $0x28] sm:$0xff]
    %v2679 = vld [vmem:[%s2672 + $0x30] sm:$0xff]
    %v2680 = vld [vmem:[%s2672 + $0x38] sm:$0xff]
    %v2681 = vld [vmem:[%s2672 + $0x40] sm:$0xff]
    %v2682 = vld [vmem:[%s2672 + $0x48] sm:$0xff]
    %v2683 = vld [vmem:[%s2672 + $0x50] sm:$0xff]
    %v2684 = vld [vmem:[%s2672 + $0x58] sm:$0xff]
    %v2685 = vld [vmem:[%s2672 + $0x60] sm:$0xff]
    %v2686 = vld [vmem:[%s2672 + $0x68] sm:$0xff]
    %v2687 = vld [vmem:[%s2672 + $0x70] sm:$0xff]
    %v2688 = vld [vmem:[%s2672 + $0x78] sm:$0xff]
    %2689 = vmatprep.subr.mxu0 0.0
    %2690 = vmatpush1.msra.mxu0 %v2673
    %2691 = vmatprep.subr.mxu0 0.0
    %2692 = vmatpush1.msra.mxu0 %v2674
    %2693 = vmatprep.subr.mxu0 0.0
    %2694 = vmatpush1.msra.mxu0 %v2675
    %2695 = vmatprep.subr.mxu0 0.0
    %2696 = vmatpush1.msra.mxu0 %v2676
    %2697 = vmatprep.subr.mxu0 0.0
    %2698 = vmatpush1.msra.mxu0 %v2677
    %2699 = vmatprep.subr.mxu0 0.0
    %2700 = vmatpush1.msra.mxu0 %v2678
    %2701 = vmatprep.subr.mxu0 0.0
    %2702 = vmatpush1.msra.mxu0 %v2679
    %2703 = vmatprep.subr.mxu0 0.0
    %2704 = vmatpush1.msra.mxu0 %v2680
    %2705 = vmatprep.subr.mxu0 0.0
    %2706 = vmatpush1.msra.mxu0 %v2681
    %2707 = vmatprep.subr.mxu0 0.0
    %2708 = vmatpush1.msra.mxu0 %v2682
    %2709 = vmatprep.subr.mxu0 0.0
    %2710 = vmatpush1.msra.mxu0 %v2683
    %2711 = vmatprep.subr.mxu0 0.0
    %2712 = vmatpush1.msra.mxu0 %v2684
    %2713 = vmatprep.subr.mxu0 0.0
    %2714 = vmatpush1.msra.mxu0 %v2685
    %2715 = vmatprep.subr.mxu0 0.0
    %2716 = vmatpush1.msra.mxu0 %v2686
    %2717 = vmatprep.subr.mxu0 0.0
    %2718 = vmatpush1.msra.mxu0 %v2687
    %2719 = vmatprep.subr.mxu0 0.0
    %2720 = vmatpush1.msra.mxu0 %v2688
    %2721 = vmatprep.subr.mxu0 0.0
    %2722 = vmatpush1.msra.mxu0 0.0
    %2723 = vmatprep.subr.mxu0 0.0
    %2724 = vmatpush1.msra.mxu0 0.0
    %2725 = vmatprep.subr.mxu0 0.0
    %2726 = vmatpush1.msra.mxu0 0.0
    %2727 = vmatprep.subr.mxu0 0.0
    %2728 = vmatpush1.msra.mxu0 0.0
    %2729 = vmatprep.subr.mxu0 0.0
    %2730 = vmatpush1.msra.mxu0 0.0
    %2731 = vmatprep.subr.mxu0 0.0
    %2732 = vmatpush1.msra.mxu0 0.0
    %2733 = vmatprep.subr.mxu0 0.0
    %2734 = vmatpush1.msra.mxu0 0.0
    %2735 = vmatprep.subr.mxu0 0.0
    %2736 = vmatpush1.msra.mxu0 0.0
    %2737 = vmatprep.subr.mxu0 0.0
    %2738 = vmatpush1.msra.mxu0 0.0
    %2739 = vmatprep.subr.mxu0 0.0
    %2740 = vmatpush1.msra.mxu0 0.0
    %2741 = vmatprep.subr.mxu0 0.0
    %2742 = vmatpush1.msra.mxu0 0.0
    %2743 = vmatprep.subr.mxu0 0.0
    %2744 = vmatpush1.msra.mxu0 0.0
    %2745 = vmatprep.subr.mxu0 0.0
    %2746 = vmatpush1.msra.mxu0 0.0
    %2747 = vmatprep.subr.mxu0 0.0
    %2748 = vmatpush1.msra.mxu0 0.0
    %2749 = vmatprep.subr.mxu0 0.0
    %2750 = vmatpush1.msra.mxu0 0.0
    %2751 = vmatprep.subr.mxu0 0.0
    %2752 = vmatpush1.msra.mxu0 0.0
    %2753 = vmatprep.mubr.f32.mxu0 0.0
    %2754 = vmatmul.mubr.f32.gmra.mrb[0].mxu0 %v2531
    %v2755 = vpop.f32.mrb[0].mxu0
    %v2756 = vadd.f32 0.0, %v2755
    %v2757 = vpop.f32.mrb[0].mxu0
    %2758 = vdwg.mxu0
    %2759 = vmatprep.subr.mxu0 0.0
    %2760 = vmatpush1.msra.mxu0 %v2673
    %2761 = vmatprep.subr.mxu0 0.0
    %2762 = vmatpush1.msra.mxu0 %v2674
    %2763 = vmatprep.subr.mxu0 0.0
    %2764 = vmatpush1.msra.mxu0 %v2675
    %2765 = vmatprep.subr.mxu0 0.0
    %2766 = vmatpush1.msra.mxu0 %v2676
    %2767 = vmatprep.subr.mxu0 0.0
    %2768 = vmatpush1.msra.mxu0 %v2677
    %2769 = vmatprep.subr.mxu0 0.0
    %2770 = vmatpush1.msra.mxu0 %v2678
    %2771 = vmatprep.subr.mxu0 0.0
    %2772 = vmatpush1.msra.mxu0 %v2679
    %2773 = vmatprep.subr.mxu0 0.0
    %2774 = vmatpush1.msra.mxu0 %v2680
    %2775 = vmatprep.subr.mxu0 0.0
    %2776 = vmatpush1.msra.mxu0 %v2681
    %2777 = vmatprep.subr.mxu0 0.0
    %2778 = vmatpush1.msra.mxu0 %v2682
    %2779 = vmatprep.subr.mxu0 0.0
    %2780 = vmatpush1.msra.mxu0 %v2683
    %2781 = vmatprep.subr.mxu0 0.0
    %2782 = vmatpush1.msra.mxu0 %v2684
    %2783 = vmatprep.subr.mxu0 0.0
    %2784 = vmatpush1.msra.mxu0 %v2685
    %2785 = vmatprep.subr.mxu0 0.0
    %2786 = vmatpush1.msra.mxu0 %v2686
    %2787 = vmatprep.subr.mxu0 0.0
    %2788 = vmatpush1.msra.mxu0 %v2687
    %2789 = vmatprep.subr.mxu0 0.0
    %2790 = vmatpush1.msra.mxu0 %v2688
    %2791 = vmatprep.subr.mxu0 0.0
    %2792 = vmatpush1.msra.mxu0 0.0
    %2793 = vmatprep.subr.mxu0 0.0
    %2794 = vmatpush1.msra.mxu0 0.0
    %2795 = vmatprep.subr.mxu0 0.0
    %2796 = vmatpush1.msra.mxu0 0.0
    %2797 = vmatprep.subr.mxu0 0.0
    %2798 = vmatpush1.msra.mxu0 0.0
    %2799 = vmatprep.subr.mxu0 0.0
    %2800 = vmatpush1.msra.mxu0 0.0
    %2801 = vmatprep.subr.mxu0 0.0
    %2802 = vmatpush1.msra.mxu0 0.0
    %2803 = vmatprep.subr.mxu0 0.0
    %2804 = vmatpush1.msra.mxu0 0.0
    %2805 = vmatprep.subr.mxu0 0.0
    %2806 = vmatpush1.msra.mxu0 0.0
    %2807 = vmatprep.subr.mxu0 0.0
    %2808 = vmatpush1.msra.mxu0 0.0
    %2809 = vmatprep.subr.mxu0 0.0
    %2810 = vmatpush1.msra.mxu0 0.0
    %2811 = vmatprep.subr.mxu0 0.0
    %2812 = vmatpush1.msra.mxu0 0.0
    %2813 = vmatprep.subr.mxu0 0.0
    %2814 = vmatpush1.msra.mxu0 0.0
    %2815 = vmatprep.subr.mxu0 0.0
    %2816 = vmatpush1.msra.mxu0 0.0
    %2817 = vmatprep.subr.mxu0 0.0
    %2818 = vmatpush1.msra.mxu0 0.0
    %2819 = vmatprep.subr.mxu0 0.0
    %2820 = vmatpush1.msra.mxu0 0.0
    %2821 = vmatprep.subr.mxu0 0.0
    %2822 = vmatpush1.msra.mxu0 0.0
    %2823 = vmatprep.mubr.f32.mxu0 0.0
    %2824 = vmatmul.mubr.f32.gmra.mrb[0].mxu0 %v2671
    %v2825 = vpop.f32.mrb[0].mxu0
    %v2826 = vadd.f32 0.0, %v2825
    %v2827 = vpop.f32.mrb[0].mxu0
    %2828 = vdwg.mxu0
    %v2829 = vmul.f32 %v2756, %v2756
    %v2830 = vsub.f32 %v2826, %v2829
    %v2831 = vmax.f32 %v2830, 0.0
    %v2832 = vadd.f32 %v2831, 1e-05
    %v2833 = vrsqrt.pop %v2832
    %s2834 = scalar_lea.vmem %s6, 3
    %v2835 = vld [vmem:[%s2834] sm:$0x1]
    %v2836 = vmul.f32 %v2833, %v2835
    %s2837 = scalar_lea.vmem %s7, 3
    %v2838 = vld [vmem:[%s2837] sm:$0x1]
    %v2839 = vmul.f32 %v2756, %v2836
    %v2840 = vsub.f32 %v2838, %v2839
    %v2841 = vlaneseq
    %v2842 = vshrl.u32 %v2841, 7
    %v2843 = vsub.s32 0, %v2842
    %v2844 = vrot.slane %v2836, %v2843
    %v2845 = vmul.f32 %v2266, %v2844
    %v2846 = vmul.f32 %v2272, %v2844
    %v2847 = vmul.f32 %v2278, %v2844
    %v2848 = vmul.f32 %v2284, %v2844
    %v2849 = vmul.f32 %v2290, %v2844
    %v2850 = vmul.f32 %v2296, %v2844
    %v2851 = vmul.f32 %v2302, %v2844
    %v2852 = vmul.f32 %v2308, %v2844
    %v2853 = vmul.f32 %v2314, %v2844
    %v2854 = vmul.f32 %v2320, %v2844
    %v2855 = vmul.f32 %v2326, %v2844
    %v2856 = vmul.f32 %v2332, %v2844
    %v2857 = vmul.f32 %v2338, %v2844
    %v2858 = vmul.f32 %v2344, %v2844
    %v2859 = vmul.f32 %v2350, %v2844
    %v2860 = vmul.f32 %v2356, %v2844
    %v2861 = vmul.f32 %v2362, %v2844
    %v2862 = vmul.f32 %v2368, %v2844
    %v2863 = vmul.f32 %v2374, %v2844
    %v2864 = vmul.f32 %v2380, %v2844
    %v2865 = vmul.f32 %v2386, %v2844
    %v2866 = vmul.f32 %v2392, %v2844
    %v2867 = vmul.f32 %v2398, %v2844
    %v2868 = vmul.f32 %v2404, %v2844
    %v2869 = vmul.f32 %v2410, %v2844
    %v2870 = vmul.f32 %v2416, %v2844
    %v2871 = vmul.f32 %v2422, %v2844
    %v2872 = vmul.f32 %v2428, %v2844
    %v2873 = vmul.f32 %v2434, %v2844
    %v2874 = vmul.f32 %v2440, %v2844
    %v2875 = vmul.f32 %v2446, %v2844
    %v2876 = vmul.f32 %v2452, %v2844
    %v2878 = vlaneseq
    %v2879 = vshrl.u32 %v2878, 7
    %v2880 = vsub.s32 0, %v2879
    %v2881 = vrot.slane %v2840, %v2880
    %v2883 = vadd.f32 %v2845, %v2881
    %v2884 = vadd.f32 %v2846, %v2881
    %v2885 = vadd.f32 %v2847, %v2881
    %v2886 = vadd.f32 %v2848, %v2881
    %v2887 = vadd.f32 %v2849, %v2881
    %v2888 = vadd.f32 %v2850, %v2881
    %v2889 = vadd.f32 %v2851, %v2881
    %v2890 = vadd.f32 %v2852, %v2881
    %v2891 = vadd.f32 %v2853, %v2881
    %v2892 = vadd.f32 %v2854, %v2881
    %v2893 = vadd.f32 %v2855, %v2881
    %v2894 = vadd.f32 %v2856, %v2881
    %v2895 = vadd.f32 %v2857, %v2881
    %v2896 = vadd.f32 %v2858, %v2881
    %v2897 = vadd.f32 %v2859, %v2881
    %v2898 = vadd.f32 %v2860, %v2881
    %v2899 = vadd.f32 %v2861, %v2881
    %v2900 = vadd.f32 %v2862, %v2881
    %v2901 = vadd.f32 %v2863, %v2881
    %v2902 = vadd.f32 %v2864, %v2881
    %v2903 = vadd.f32 %v2865, %v2881
    %v2904 = vadd.f32 %v2866, %v2881
    %v2905 = vadd.f32 %v2867, %v2881
    %v2906 = vadd.f32 %v2868, %v2881
    %v2907 = vadd.f32 %v2869, %v2881
    %v2908 = vadd.f32 %v2870, %v2881
    %v2909 = vadd.f32 %v2871, %v2881
    %v2910 = vadd.f32 %v2872, %v2881
    %v2911 = vadd.f32 %v2873, %v2881
    %v2912 = vadd.f32 %v2874, %v2881
    %v2913 = vadd.f32 %v2875, %v2881
    %v2914 = vadd.f32 %v2876, %v2881
    %v2915 = vmul.f32 %v2268, %v2844
    %v2916 = vmul.f32 %v2274, %v2844
    %v2917 = vmul.f32 %v2280, %v2844
    %v2918 = vmul.f32 %v2286, %v2844
    %v2919 = vmul.f32 %v2292, %v2844
    %v2920 = vmul.f32 %v2298, %v2844
    %v2921 = vmul.f32 %v2304, %v2844
    %v2922 = vmul.f32 %v2310, %v2844
    %v2923 = vmul.f32 %v2316, %v2844
    %v2924 = vmul.f32 %v2322, %v2844
    %v2925 = vmul.f32 %v2328, %v2844
    %v2926 = vmul.f32 %v2334, %v2844
    %v2927 = vmul.f32 %v2340, %v2844
    %v2928 = vmul.f32 %v2346, %v2844
    %v2929 = vmul.f32 %v2352, %v2844
    %v2930 = vmul.f32 %v2358, %v2844
    %v2931 = vmul.f32 %v2364, %v2844
    %v2932 = vmul.f32 %v2370, %v2844
    %v2933 = vmul.f32 %v2376, %v2844
    %v2934 = vmul.f32 %v2382, %v2844
    %v2935 = vmul.f32 %v2388, %v2844
    %v2936 = vmul.f32 %v2394, %v2844
    %v2937 = vmul.f32 %v2400, %v2844
    %v2938 = vmul.f32 %v2406, %v2844
    %v2939 = vmul.f32 %v2412, %v2844
    %v2940 = vmul.f32 %v2418, %v2844
    %v2941 = vmul.f32 %v2424, %v2844
    %v2942 = vmul.f32 %v2430, %v2844
    %v2943 = vmul.f32 %v2436, %v2844
    %v2944 = vmul.f32 %v2442, %v2844
    %v2945 = vmul.f32 %v2448, %v2844
    %v2946 = vmul.f32 %v2454, %v2844
    %v2947 = vadd.f32 %v2915, %v2881
    %v2948 = vadd.f32 %v2916, %v2881
    %v2949 = vadd.f32 %v2917, %v2881
    %v2950 = vadd.f32 %v2918, %v2881
    %v2951 = vadd.f32 %v2919, %v2881
    %v2952 = vadd.f32 %v2920, %v2881
    %v2953 = vadd.f32 %v2921, %v2881
    %v2954 = vadd.f32 %v2922, %v2881
    %v2955 = vadd.f32 %v2923, %v2881
    %v2956 = vadd.f32 %v2924, %v2881
    %v2957 = vadd.f32 %v2925, %v2881
    %v2958 = vadd.f32 %v2926, %v2881
    %v2959 = vadd.f32 %v2927, %v2881
    %v2960 = vadd.f32 %v2928, %v2881
    %v2961 = vadd.f32 %v2929, %v2881
    %v2962 = vadd.f32 %v2930, %v2881
    %v2963 = vadd.f32 %v2931, %v2881
    %v2964 = vadd.f32 %v2932, %v2881
    %v2965 = vadd.f32 %v2933, %v2881
    %v2966 = vadd.f32 %v2934, %v2881
    %v2967 = vadd.f32 %v2935, %v2881
    %v2968 = vadd.f32 %v2936, %v2881
    %v2969 = vadd.f32 %v2937, %v2881
    %v2970 = vadd.f32 %v2938, %v2881
    %v2971 = vadd.f32 %v2939, %v2881
    %v2972 = vadd.f32 %v2940, %v2881
    %v2973 = vadd.f32 %v2941, %v2881
    %v2974 = vadd.f32 %v2942, %v2881
    %v2975 = vadd.f32 %v2943, %v2881
    %v2976 = vadd.f32 %v2944, %v2881
    %v2977 = vadd.f32 %v2945, %v2881
    %v2978 = vadd.f32 %v2946, %v2881
    %vm2979 = vcmp.ge.f32.partialorder %v2883, 0.0
    %vm2980 = vcmp.ge.f32.partialorder %v2884, 0.0
    %vm2981 = vcmp.ge.f32.partialorder %v2885, 0.0
    %vm2982 = vcmp.ge.f32.partialorder %v2886, 0.0
    %vm2983 = vcmp.ge.f32.partialorder %v2887, 0.0
    %vm2984 = vcmp.ge.f32.partialorder %v2888, 0.0
    %vm2985 = vcmp.ge.f32.partialorder %v2889, 0.0
    %vm2986 = vcmp.ge.f32.partialorder %v2890, 0.0
    %vm2987 = vcmp.ge.f32.partialorder %v2891, 0.0
    %vm2988 = vcmp.ge.f32.partialorder %v2892, 0.0
    %vm2989 = vcmp.ge.f32.partialorder %v2893, 0.0
    %vm2990 = vcmp.ge.f32.partialorder %v2894, 0.0
    %vm2991 = vcmp.ge.f32.partialorder %v2895, 0.0
    %vm2992 = vcmp.ge.f32.partialorder %v2896, 0.0
    %vm2993 = vcmp.ge.f32.partialorder %v2897, 0.0
    %vm2994 = vcmp.ge.f32.partialorder %v2898, 0.0
    %vm2995 = vcmp.ge.f32.partialorder %v2899, 0.0
    %vm2996 = vcmp.ge.f32.partialorder %v2900, 0.0
    %vm2997 = vcmp.ge.f32.partialorder %v2901, 0.0
    %vm2998 = vcmp.ge.f32.partialorder %v2902, 0.0
    %vm2999 = vcmp.ge.f32.partialorder %v2903, 0.0
    %vm3000 = vcmp.ge.f32.partialorder %v2904, 0.0
    %vm3001 = vcmp.ge.f32.partialorder %v2905, 0.0
    %vm3002 = vcmp.ge.f32.partialorder %v2906, 0.0
    %vm3003 = vcmp.ge.f32.partialorder %v2907, 0.0
    %vm3004 = vcmp.ge.f32.partialorder %v2908, 0.0
    %vm3005 = vcmp.ge.f32.partialorder %v2909, 0.0
    %vm3006 = vcmp.ge.f32.partialorder %v2910, 0.0
    %vm3007 = vcmp.ge.f32.partialorder %v2911, 0.0
    %vm3008 = vcmp.ge.f32.partialorder %v2912, 0.0
    %vm3009 = vcmp.ge.f32.partialorder %v2913, 0.0
    %vm3010 = vcmp.ge.f32.partialorder %v2914, 0.0
    %v3011 = vmul.f32 %v2883, 0.01
    %v3012 = vmul.f32 %v2884, 0.01
    %v3013 = vmul.f32 %v2885, 0.01
    %v3014 = vmul.f32 %v2886, 0.01
    %v3015 = vmul.f32 %v2887, 0.01
    %v3016 = vmul.f32 %v2888, 0.01
    %v3017 = vmul.f32 %v2889, 0.01
    %v3018 = vmul.f32 %v2890, 0.01
    %v3019 = vmul.f32 %v2891, 0.01
    %v3020 = vmul.f32 %v2892, 0.01
    %v3021 = vmul.f32 %v2893, 0.01
    %v3022 = vmul.f32 %v2894, 0.01
    %v3023 = vmul.f32 %v2895, 0.01
    %v3024 = vmul.f32 %v2896, 0.01
    %v3025 = vmul.f32 %v2897, 0.01
    %v3026 = vmul.f32 %v2898, 0.01
    %v3027 = vmul.f32 %v2899, 0.01
    %v3028 = vmul.f32 %v2900, 0.01
    %v3029 = vmul.f32 %v2901, 0.01
    %v3030 = vmul.f32 %v2902, 0.01
    %v3031 = vmul.f32 %v2903, 0.01
    %v3032 = vmul.f32 %v2904, 0.01
    %v3033 = vmul.f32 %v2905, 0.01
    %v3034 = vmul.f32 %v2906, 0.01
    %v3035 = vmul.f32 %v2907, 0.01
    %v3036 = vmul.f32 %v2908, 0.01
    %v3037 = vmul.f32 %v2909, 0.01
    %v3038 = vmul.f32 %v2910, 0.01
    %v3039 = vmul.f32 %v2911, 0.01
    %v3040 = vmul.f32 %v2912, 0.01
    %v3041 = vmul.f32 %v2913, 0.01
    %v3042 = vmul.f32 %v2914, 0.01
    %v3043 = vsel %vm2979, %v2883, %v3011
    %v3044 = vsel %vm2980, %v2884, %v3012
    %v3045 = vsel %vm2981, %v2885, %v3013
    %v3046 = vsel %vm2982, %v2886, %v3014
    %v3047 = vsel %vm2983, %v2887, %v3015
    %v3048 = vsel %vm2984, %v2888, %v3016
    %v3049 = vsel %vm2985, %v2889, %v3017
    %v3050 = vsel %vm2986, %v2890, %v3018
    %v3051 = vsel %vm2987, %v2891, %v3019
    %v3052 = vsel %vm2988, %v2892, %v3020
    %v3053 = vsel %vm2989, %v2893, %v3021
    %v3054 = vsel %vm2990, %v2894, %v3022
    %v3055 = vsel %vm2991, %v2895, %v3023
    %v3056 = vsel %vm2992, %v2896, %v3024
    %v3057 = vsel %vm2993, %v2897, %v3025
    %v3058 = vsel %vm2994, %v2898, %v3026
    %v3059 = vsel %vm2995, %v2899, %v3027
    %v3060 = vsel %vm2996, %v2900, %v3028
    %v3061 = vsel %vm2997, %v2901, %v3029
    %v3062 = vsel %vm2998, %v2902, %v3030
    %v3063 = vsel %vm2999, %v2903, %v3031
    %v3064 = vsel %vm3000, %v2904, %v3032
    %v3065 = vsel %vm3001, %v2905, %v3033
    %v3066 = vsel %vm3002, %v2906, %v3034
    %v3067 = vsel %vm3003, %v2907, %v3035
    %v3068 = vsel %vm3004, %v2908, %v3036
    %v3069 = vsel %vm3005, %v2909, %v3037
    %v3070 = vsel %vm3006, %v2910, %v3038
    %v3071 = vsel %vm3007, %v2911, %v3039
    %v3072 = vsel %vm3008, %v2912, %v3040
    %v3073 = vsel %vm3009, %v2913, %v3041
    %v3074 = vsel %vm3010, %v2914, %v3042
    %vm3075 = vcmp.ge.f32.partialorder %v2947, 0.0
    %vm3076 = vcmp.ge.f32.partialorder %v2948, 0.0
    %vm3077 = vcmp.ge.f32.partialorder %v2949, 0.0
    %vm3078 = vcmp.ge.f32.partialorder %v2950, 0.0
    %vm3079 = vcmp.ge.f32.partialorder %v2951, 0.0
    %vm3080 = vcmp.ge.f32.partialorder %v2952, 0.0
    %vm3081 = vcmp.ge.f32.partialorder %v2953, 0.0
    %vm3082 = vcmp.ge.f32.partialorder %v2954, 0.0
    %vm3083 = vcmp.ge.f32.partialorder %v2955, 0.0
    %vm3084 = vcmp.ge.f32.partialorder %v2956, 0.0
    %vm3085 = vcmp.ge.f32.partialorder %v2957, 0.0
    %vm3086 = vcmp.ge.f32.partialorder %v2958, 0.0
    %vm3087 = vcmp.ge.f32.partialorder %v2959, 0.0
    %vm3088 = vcmp.ge.f32.partialorder %v2960, 0.0
    %vm3089 = vcmp.ge.f32.partialorder %v2961, 0.0
    %vm3090 = vcmp.ge.f32.partialorder %v2962, 0.0
    %vm3091 = vcmp.ge.f32.partialorder %v2963, 0.0
    %vm3092 = vcmp.ge.f32.partialorder %v2964, 0.0
    %vm3093 = vcmp.ge.f32.partialorder %v2965, 0.0
    %vm3094 = vcmp.ge.f32.partialorder %v2966, 0.0
    %vm3095 = vcmp.ge.f32.partialorder %v2967, 0.0
    %vm3096 = vcmp.ge.f32.partialorder %v2968, 0.0
    %vm3097 = vcmp.ge.f32.partialorder %v2969, 0.0
    %vm3098 = vcmp.ge.f32.partialorder %v2970, 0.0
    %vm3099 = vcmp.ge.f32.partialorder %v2971, 0.0
    %vm3100 = vcmp.ge.f32.partialorder %v2972, 0.0
    %vm3101 = vcmp.ge.f32.partialorder %v2973, 0.0
    %vm3102 = vcmp.ge.f32.partialorder %v2974, 0.0
    %vm3103 = vcmp.ge.f32.partialorder %v2975, 0.0
    %vm3104 = vcmp.ge.f32.partialorder %v2976, 0.0
    %vm3105 = vcmp.ge.f32.partialorder %v2977, 0.0
    %vm3106 = vcmp.ge.f32.partialorder %v2978, 0.0
    %v3107 = vmul.f32 %v2947, 0.01
    %v3108 = vmul.f32 %v2948, 0.01
    %v3109 = vmul.f32 %v2949, 0.01
    %v3110 = vmul.f32 %v2950, 0.01
    %v3111 = vmul.f32 %v2951, 0.01
    %v3112 = vmul.f32 %v2952, 0.01
    %v3113 = vmul.f32 %v2953, 0.01
    %v3114 = vmul.f32 %v2954, 0.01
    %v3115 = vmul.f32 %v2955, 0.01
    %v3116 = vmul.f32 %v2956, 0.01
    %v3117 = vmul.f32 %v2957, 0.01
    %v3118 = vmul.f32 %v2958, 0.01
    %v3119 = vmul.f32 %v2959, 0.01
    %v3120 = vmul.f32 %v2960, 0.01
    %v3121 = vmul.f32 %v2961, 0.01
    %v3122 = vmul.f32 %v2962, 0.01
    %v3123 = vmul.f32 %v2963, 0.01
    %v3124 = vmul.f32 %v2964, 0.01
    %v3125 = vmul.f32 %v2965, 0.01
    %v3126 = vmul.f32 %v2966, 0.01
    %v3127 = vmul.f32 %v2967, 0.01
    %v3128 = vmul.f32 %v2968, 0.01
    %v3129 = vmul.f32 %v2969, 0.01
    %v3130 = vmul.f32 %v2970, 0.01
    %v3131 = vmul.f32 %v2971, 0.01
    %v3132 = vmul.f32 %v2972, 0.01
    %v3133 = vmul.f32 %v2973, 0.01
    %v3134 = vmul.f32 %v2974, 0.01
    %v3135 = vmul.f32 %v2975, 0.01
    %v3136 = vmul.f32 %v2976, 0.01
    %v3137 = vmul.f32 %v2977, 0.01
    %v3138 = vmul.f32 %v2978, 0.01
    %v3139 = vsel %vm3075, %v2947, %v3107
    %v3140 = vsel %vm3076, %v2948, %v3108
    %v3141 = vsel %vm3077, %v2949, %v3109
    %v3142 = vsel %vm3078, %v2950, %v3110
    %v3143 = vsel %vm3079, %v2951, %v3111
    %v3144 = vsel %vm3080, %v2952, %v3112
    %v3145 = vsel %vm3081, %v2953, %v3113
    %v3146 = vsel %vm3082, %v2954, %v3114
    %v3147 = vsel %vm3083, %v2955, %v3115
    %v3148 = vsel %vm3084, %v2956, %v3116
    %v3149 = vsel %vm3085, %v2957, %v3117
    %v3150 = vsel %vm3086, %v2958, %v3118
    %v3151 = vsel %vm3087, %v2959, %v3119
    %v3152 = vsel %vm3088, %v2960, %v3120
    %v3153 = vsel %vm3089, %v2961, %v3121
    %v3154 = vsel %vm3090, %v2962, %v3122
    %v3155 = vsel %vm3091, %v2963, %v3123
    %v3156 = vsel %vm3092, %v2964, %v3124
    %v3157 = vsel %vm3093, %v2965, %v3125
    %v3158 = vsel %vm3094, %v2966, %v3126
    %v3159 = vsel %vm3095, %v2967, %v3127
    %v3160 = vsel %vm3096, %v2968, %v3128
    %v3161 = vsel %vm3097, %v2969, %v3129
    %v3162 = vsel %vm3098, %v2970, %v3130
    %v3163 = vsel %vm3099, %v2971, %v3131
    %v3164 = vsel %vm3100, %v2972, %v3132
    %v3165 = vsel %vm3101, %v2973, %v3133
    %v3166 = vsel %vm3102, %v2974, %v3134
    %v3167 = vsel %vm3103, %v2975, %v3135
    %v3168 = vsel %vm3104, %v2976, %v3136
    %v3169 = vsel %vm3105, %v2977, %v3137
    %v3170 = vsel %vm3106, %v2978, %v3138
    %3171 = vst [vmem:[#allocation2] sm:$0xff] %v3043
    %3172 = vst [vmem:[#allocation2 + $0x8] sm:$0xff] %v3044
    %3173 = vst [vmem:[#allocation2 + $0x10] sm:$0xff] %v3045
    %3174 = vst [vmem:[#allocation2 + $0x18] sm:$0xff] %v3046
    %3175 = vst [vmem:[#allocation2 + $0x20] sm:$0xff] %v3047
    %3176 = vst [vmem:[#allocation2 + $0x28] sm:$0xff] %v3048
    %3177 = vst [vmem:[#allocation2 + $0x30] sm:$0xff] %v3049
    %3178 = vst [vmem:[#allocation2 + $0x38] sm:$0xff] %v3050
    %3179 = vst [vmem:[#allocation2 + $0x40] sm:$0xff] %v3051
    %3180 = vst [vmem:[#allocation2 + $0x48] sm:$0xff] %v3052
    %3181 = vst [vmem:[#allocation2 + $0x50] sm:$0xff] %v3053
    %3182 = vst [vmem:[#allocation2 + $0x58] sm:$0xff] %v3054
    %3183 = vst [vmem:[#allocation2 + $0x60] sm:$0xff] %v3055
    %3184 = vst [vmem:[#allocation2 + $0x68] sm:$0xff] %v3056
    %3185 = vst [vmem:[#allocation2 + $0x70] sm:$0xff] %v3057
    %3186 = vst [vmem:[#allocation2 + $0x78] sm:$0xff] %v3058
    %3187 = vst [vmem:[#allocation2 + $0x80] sm:$0xff] %v3059
    %3188 = vst [vmem:[#allocation2 + $0x88] sm:$0xff] %v3060
    %3189 = vst [vmem:[#allocation2 + $0x90] sm:$0xff] %v3061
    %3190 = vst [vmem:[#allocation2 + $0x98] sm:$0xff] %v3062
    %3191 = vst [vmem:[#allocation2 + $0xa0] sm:$0xff] %v3063
    %3192 = vst [vmem:[#allocation2 + $0xa8] sm:$0xff] %v3064
    %3193 = vst [vmem:[#allocation2 + $0xb0] sm:$0xff] %v3065
    %3194 = vst [vmem:[#allocation2 + $0xb8] sm:$0xff] %v3066
    %3195 = vst [vmem:[#allocation2 + $0xc0] sm:$0xff] %v3067
    %3196 = vst [vmem:[#allocation2 + $0xc8] sm:$0xff] %v3068
    %3197 = vst [vmem:[#allocation2 + $0xd0] sm:$0xff] %v3069
    %3198 = vst [vmem:[#allocation2 + $0xd8] sm:$0xff] %v3070
    %3199 = vst [vmem:[#allocation2 + $0xe0] sm:$0xff] %v3071
    %3200 = vst [vmem:[#allocation2 + $0xe8] sm:$0xff] %v3072
    %3201 = vst [vmem:[#allocation2 + $0xf0] sm:$0xff] %v3073
    %3202 = vst [vmem:[#allocation2 + $0xf8] sm:$0xff] %v3074
    %3203 = vst [vmem:[#allocation2 + $0x100] sm:$0xff] %v3139
    %3204 = vst [vmem:[#allocation2 + $0x108] sm:$0xff] %v3140
    %3205 = vst [vmem:[#allocation2 + $0x110] sm:$0xff] %v3141
    %3206 = vst [vmem:[#allocation2 + $0x118] sm:$0xff] %v3142
    %3207 = vst [vmem:[#allocation2 + $0x120] sm:$0xff] %v3143
    %3208 = vst [vmem:[#allocation2 + $0x128] sm:$0xff] %v3144
    %3209 = vst [vmem:[#allocation2 + $0x130] sm:$0xff] %v3145
    %3210 = vst [vmem:[#allocation2 + $0x138] sm:$0xff] %v3146
    %3211 = vst [vmem:[#allocation2 + $0x140] sm:$0xff] %v3147
    %3212 = vst [vmem:[#allocation2 + $0x148] sm:$0xff] %v3148
    %3213 = vst [vmem:[#allocation2 + $0x150] sm:$0xff] %v3149
    %3214 = vst [vmem:[#allocation2 + $0x158] sm:$0xff] %v3150
    %3215 = vst [vmem:[#allocation2 + $0x160] sm:$0xff] %v3151
    %3216 = vst [vmem:[#allocation2 + $0x168] sm:$0xff] %v3152
    %3217 = vst [vmem:[#allocation2 + $0x170] sm:$0xff] %v3153
    %3218 = vst [vmem:[#allocation2 + $0x178] sm:$0xff] %v3154
    %3219 = vst [vmem:[#allocation2 + $0x180] sm:$0xff] %v3155
    %3220 = vst [vmem:[#allocation2 + $0x188] sm:$0xff] %v3156
    %3221 = vst [vmem:[#allocation2 + $0x190] sm:$0xff] %v3157
    %3222 = vst [vmem:[#allocation2 + $0x198] sm:$0xff] %v3158
    %3223 = vst [vmem:[#allocation2 + $0x1a0] sm:$0xff] %v3159
    %3224 = vst [vmem:[#allocation2 + $0x1a8] sm:$0xff] %v3160
    %3225 = vst [vmem:[#allocation2 + $0x1b0] sm:$0xff] %v3161
    %3226 = vst [vmem:[#allocation2 + $0x1b8] sm:$0xff] %v3162
    %3227 = vst [vmem:[#allocation2 + $0x1c0] sm:$0xff] %v3163
    %3228 = vst [vmem:[#allocation2 + $0x1c8] sm:$0xff] %v3164
    %3229 = vst [vmem:[#allocation2 + $0x1d0] sm:$0xff] %v3165
    %3230 = vst [vmem:[#allocation2 + $0x1d8] sm:$0xff] %v3166
    %3231 = vst [vmem:[#allocation2 + $0x1e0] sm:$0xff] %v3167
    %3232 = vst [vmem:[#allocation2 + $0x1e8] sm:$0xff] %v3168
    %3233 = vst [vmem:[#allocation2 + $0x1f0] sm:$0xff] %v3169
    %3234 = vst [vmem:[#allocation2 + $0x1f8] sm:$0xff] %v3170
    %v3235 = vld [vmem:[#allocation11] sm:$0xff]
    %v3236 = vld [vmem:[#allocation11 + $0x8] sm:$0xff]
    %v3237 = vld [vmem:[#allocation11 + $0x10] sm:$0xff]
    %v3238 = vld [vmem:[#allocation11 + $0x18] sm:$0xff]
    %v3239 = vld [vmem:[#allocation11 + $0x20] sm:$0xff]
    %v3240 = vld [vmem:[#allocation11 + $0x28] sm:$0xff]
    %v3241 = vld [vmem:[#allocation11 + $0x30] sm:$0xff]
    %v3242 = vld [vmem:[#allocation11 + $0x38] sm:$0xff]
    %v3243 = vld [vmem:[#allocation11 + $0x40] sm:$0xff]
    %v3244 = vld [vmem:[#allocation11 + $0x48] sm:$0xff]
    %v3245 = vld [vmem:[#allocation11 + $0x50] sm:$0xff]
    %v3246 = vld [vmem:[#allocation11 + $0x58] sm:$0xff]
    %v3247 = vld [vmem:[#allocation11 + $0x60] sm:$0xff]
    %v3248 = vld [vmem:[#allocation11 + $0x68] sm:$0xff]
    %v3249 = vld [vmem:[#allocation11 + $0x70] sm:$0xff]
    %v3250 = vld [vmem:[#allocation11 + $0x78] sm:$0xff]
    %v3251 = vld [vmem:[%s10] sm:$0x1]
    %v3252 = vld [vmem:[#allocation2] sm:$0xff]
    %v3253 = vld [vmem:[#allocation2 + $0x8] sm:$0xff]
    %v3254 = vld [vmem:[#allocation2 + $0x10] sm:$0xff]
    %v3255 = vld [vmem:[#allocation2 + $0x18] sm:$0xff]
    %v3256 = vld [vmem:[#allocation2 + $0x20] sm:$0xff]
    %v3257 = vld [vmem:[#allocation2 + $0x28] sm:$0xff]
    %v3258 = vld [vmem:[#allocation2 + $0x30] sm:$0xff]
    %v3259 = vld [vmem:[#allocation2 + $0x38] sm:$0xff]
    %v3261 = vlaneseq
    %v3262 = vshrl.u32 %v3261, 7
    %v3263 = vsub.s32 0, %v3262
    %v3264 = vrot.slane %v3251, %v3263
    %3266 = vmatprep.subr.mxu0 0.0
    %3267 = vmatpush1.msra.mxu0 %v3235
    %3268 = vmatprep.subr.mxu0 0.0
    %3269 = vmatpush1.msra.mxu0 %v3236
    %3270 = vmatprep.subr.mxu0 0.0
    %3271 = vmatpush1.msra.mxu0 %v3237
    %3272 = vmatprep.subr.mxu0 0.0
    %3273 = vmatpush1.msra.mxu0 %v3238
    %3274 = vmatprep.subr.mxu0 0.0
    %3275 = vmatpush1.msra.mxu0 %v3239
    %3276 = vmatprep.subr.mxu0 0.0
    %3277 = vmatpush1.msra.mxu0 %v3240
    %3278 = vmatprep.subr.mxu0 0.0
    %3279 = vmatpush1.msra.mxu0 %v3241
    %3280 = vmatprep.subr.mxu0 0.0
    %3281 = vmatpush1.msra.mxu0 %v3242
    %3282 = vmatprep.subr.mxu0 0.0
    %3283 = vmatpush1.msra.mxu0 %v3243
    %3284 = vmatprep.subr.mxu0 0.0
    %3285 = vmatpush1.msra.mxu0 %v3244
    %3286 = vmatprep.subr.mxu0 0.0
    %3287 = vmatpush1.msra.mxu0 %v3245
    %3288 = vmatprep.subr.mxu0 0.0
    %3289 = vmatpush1.msra.mxu0 %v3246
    %3290 = vmatprep.subr.mxu0 0.0
    %3291 = vmatpush1.msra.mxu0 %v3247
    %3292 = vmatprep.subr.mxu0 0.0
    %3293 = vmatpush1.msra.mxu0 %v3248
    %3294 = vmatprep.subr.mxu0 0.0
    %3295 = vmatpush1.msra.mxu0 %v3249
    %3296 = vmatprep.subr.mxu0 0.0
    %3297 = vmatpush1.msra.mxu0 %v3250
    %3298 = vmatprep.subr.mxu0 0.0
    %3299 = vmatpush1.msra.mxu0 0.0
    %3300 = vmatprep.subr.mxu0 0.0
    %3301 = vmatpush1.msra.mxu0 0.0
    %3302 = vmatprep.subr.mxu0 0.0
    %3303 = vmatpush1.msra.mxu0 0.0
    %3304 = vmatprep.subr.mxu0 0.0
    %3305 = vmatpush1.msra.mxu0 0.0
    %3306 = vmatprep.subr.mxu0 0.0
    %3307 = vmatpush1.msra.mxu0 0.0
    %3308 = vmatprep.subr.mxu0 0.0
    %3309 = vmatpush1.msra.mxu0 0.0
    %3310 = vmatprep.subr.mxu0 0.0
    %3311 = vmatpush1.msra.mxu0 0.0
    %3312 = vmatprep.subr.mxu0 0.0
    %3313 = vmatpush1.msra.mxu0 0.0
    %3314 = vmatprep.subr.mxu0 0.0
    %3315 = vmatpush1.msra.mxu0 0.0
    %3316 = vmatprep.subr.mxu0 0.0
    %3317 = vmatpush1.msra.mxu0 0.0
    %3318 = vmatprep.subr.mxu0 0.0
    %3319 = vmatpush1.msra.mxu0 0.0
    %3320 = vmatprep.subr.mxu0 0.0
    %3321 = vmatpush1.msra.mxu0 0.0
    %3322 = vmatprep.subr.mxu0 0.0
    %3323 = vmatpush1.msra.mxu0 0.0
    %3324 = vmatprep.subr.mxu0 0.0
    %3325 = vmatpush1.msra.mxu0 0.0
    %3326 = vmatprep.subr.mxu0 0.0
    %3327 = vmatpush1.msra.mxu0 0.0
    %3328 = vmatprep.subr.mxu0 0.0
    %3329 = vmatpush1.msra.mxu0 0.0
    %3330 = vmatprep.mubr.f32.mxu0 0.0
    %3331 = vmatmul.mubr.f32.gmra.mrb[0].mxu0 %v3252
    %v3332 = vpop.f32.mrb[0].mxu0
    %v3333 = vadd.f32 %v3264, %v3332
    %v3334 = vpop.f32.mrb[0].mxu0
    %3335 = vmatprep.mubr.f32.mxu0 0.0
    %3336 = vmatmul.mubr.f32.gmra.mrb[0].mxu0 %v3253
    %v3337 = vpop.f32.mrb[0].mxu0
    %v3338 = vadd.f32 %v3264, %v3337
    %v3339 = vpop.f32.mrb[0].mxu0
    %3340 = vmatprep.mubr.f32.mxu0 0.0
    %3341 = vmatmul.mubr.f32.gmra.mrb[0].mxu0 %v3254
    %v3342 = vpop.f32.mrb[0].mxu0
    %v3343 = vadd.f32 %v3264, %v3342
    %v3344 = vpop.f32.mrb[0].mxu0
    %3345 = vmatprep.mubr.f32.mxu0 0.0
    %3346 = vmatmul.mubr.f32.gmra.mrb[0].mxu0 %v3255
    %v3347 = vpop.f32.mrb[0].mxu0
    %v3348 = vadd.f32 %v3264, %v3347
    %v3349 = vpop.f32.mrb[0].mxu0
    %3350 = vmatprep.mubr.f32.mxu0 0.0
    %3351 = vmatmul.mubr.f32.gmra.mrb[0].mxu0 %v3256
    %v3352 = vpop.f32.mrb[0].mxu0
    %v3353 = vadd.f32 %v3264, %v3352
    %v3354 = vpop.f32.mrb[0].mxu0
    %3355 = vmatprep.mubr.f32.mxu0 0.0
    %3356 = vmatmul.mubr.f32.gmra.mrb[0].mxu0 %v3257
    %v3357 = vpop.f32.mrb[0].mxu0
    %v3358 = vadd.f32 %v3264, %v3357
    %v3359 = vpop.f32.mrb[0].mxu0
    %3360 = vmatprep.mubr.f32.mxu0 0.0
    %3361 = vmatmul.mubr.f32.gmra.mrb[0].mxu0 %v3258
    %v3362 = vpop.f32.mrb[0].mxu0
    %v3363 = vadd.f32 %v3264, %v3362
    %v3364 = vpop.f32.mrb[0].mxu0
    %3365 = vmatprep.mubr.f32.mxu0 0.0
    %3366 = vmatmul.mubr.f32.gmra.mrb[0].mxu0 %v3259
    %v3367 = vpop.f32.mrb[0].mxu0
    %v3368 = vadd.f32 %v3264, %v3367
    %v3369 = vpop.f32.mrb[0].mxu0
    %3370 = vdwg.mxu0
    %v3371 = vtanh.pop %v3333
    %v3372 = vtanh.pop %v3338
    %v3373 = vtanh.pop %v3343
    %v3374 = vtanh.pop %v3348
    %v3375 = vtanh.pop %v3353
    %v3376 = vtanh.pop %v3358
    %v3377 = vtanh.pop %v3363
    %v3378 = vtanh.pop %v3368
    %3379 = vst [vmem:[%s11] sm:$0xff] %v3371
    %3380 = vst [vmem:[%s11 + $0x80] sm:$0xff] %v3372
    %3381 = vst [vmem:[%s11 + $0x100] sm:$0xff] %v3373
    %3382 = vst [vmem:[%s11 + $0x180] sm:$0xff] %v3374
    %3383 = vst [vmem:[%s11 + $0x40] sm:$0xff] %v3375
    %3384 = vst [vmem:[%s11 + $0xc0] sm:$0xff] %v3376
    %3385 = vst [vmem:[%s11 + $0x140] sm:$0xff] %v3377
    %3386 = vst [vmem:[%s11 + $0x1c0] sm:$0xff] %v3378
    %v3387 = vld [vmem:[#allocation2 + $0x40] sm:$0xff]
    %v3388 = vld [vmem:[#allocation2 + $0x48] sm:$0xff]
    %v3389 = vld [vmem:[#allocation2 + $0x50] sm:$0xff]
    %v3390 = vld [vmem:[#allocation2 + $0x58] sm:$0xff]
    %v3391 = vld [vmem:[#allocation2 + $0x60] sm:$0xff]
    %v3392 = vld [vmem:[#allocation2 + $0x68] sm:$0xff]
    %v3393 = vld [vmem:[#allocation2 + $0x70] sm:$0xff]
    %v3394 = vld [vmem:[#allocation2 + $0x78] sm:$0xff]
    %3395 = vmatprep.subr.mxu0 0.0
    %3396 = vmatpush1.msra.mxu0 %v3235
    %3397 = vmatprep.subr.mxu0 0.0
    %3398 = vmatpush1.msra.mxu0 %v3236
    %3399 = vmatprep.subr.mxu0 0.0
    %3400 = vmatpush1.msra.mxu0 %v3237
    %3401 = vmatprep.subr.mxu0 0.0
    %3402 = vmatpush1.msra.mxu0 %v3238
    %3403 = vmatprep.subr.mxu0 0.0
    %3404 = vmatpush1.msra.mxu0 %v3239
    %3405 = vmatprep.subr.mxu0 0.0
    %3406 = vmatpush1.msra.mxu0 %v3240
    %3407 = vmatprep.subr.mxu0 0.0
    %3408 = vmatpush1.msra.mxu0 %v3241
    %3409 = vmatprep.subr.mxu0 0.0
    %3410 = vmatpush1.msra.mxu0 %v3242
    %3411 = vmatprep.subr.mxu0 0.0
    %3412 = vmatpush1.msra.mxu0 %v3243
    %3413 = vmatprep.subr.mxu0 0.0
    %3414 = vmatpush1.msra.mxu0 %v3244
    %3415 = vmatprep.subr.mxu0 0.0
    %3416 = vmatpush1.msra.mxu0 %v3245
    %3417 = vmatprep.subr.mxu0 0.0
    %3418 = vmatpush1.msra.mxu0 %v3246
    %3419 = vmatprep.subr.mxu0 0.0
    %3420 = vmatpush1.msra.mxu0 %v3247
    %3421 = vmatprep.subr.mxu0 0.0
    %3422 = vmatpush1.msra.mxu0 %v3248
    %3423 = vmatprep.subr.mxu0 0.0
    %3424 = vmatpush1.msra.mxu0 %v3249
    %3425 = vmatprep.subr.mxu0 0.0
    %3426 = vmatpush1.msra.mxu0 %v3250
    %3427 = vmatprep.subr.mxu0 0.0
    %3428 = vmatpush1.msra.mxu0 0.0
    %3429 = vmatprep.subr.mxu0 0.0
    %3430 = vmatpush1.msra.mxu0 0.0
    %3431 = vmatprep.subr.mxu0 0.0
    %3432 = vmatpush1.msra.mxu0 0.0
    %3433 = vmatprep.subr.mxu0 0.0
    %3434 = vmatpush1.msra.mxu0 0.0
    %3435 = vmatprep.subr.mxu0 0.0
    %3436 = vmatpush1.msra.mxu0 0.0
    %3437 = vmatprep.subr.mxu0 0.0
    %3438 = vmatpush1.msra.mxu0 0.0
    %3439 = vmatprep.subr.mxu0 0.0
    %3440 = vmatpush1.msra.mxu0 0.0
    %3441 = vmatprep.subr.mxu0 0.0
    %3442 = vmatpush1.msra.mxu0 0.0
    %3443 = vmatprep.subr.mxu0 0.0
    %3444 = vmatpush1.msra.mxu0 0.0
    %3445 = vmatprep.subr.mxu0 0.0
    %3446 = vmatpush1.msra.mxu0 0.0
    %3447 = vmatprep.subr.mxu0 0.0
    %3448 = vmatpush1.msra.mxu0 0.0
    %3449 = vmatprep.subr.mxu0 0.0
    %3450 = vmatpush1.msra.mxu0 0.0
    %3451 = vmatprep.subr.mxu0 0.0
    %3452 = vmatpush1.msra.mxu0 0.0
    %3453 = vmatprep.subr.mxu0 0.0
    %3454 = vmatpush1.msra.mxu0 0.0
    %3455 = vmatprep.subr.mxu0 0.0
    %3456 = vmatpush1.msra.mxu0 0.0
    %3457 = vmatprep.subr.mxu0 0.0
    %3458 = vmatpush1.msra.mxu0 0.0
    %3459 = vmatprep.mubr.f32.mxu0 0.0
    %3460 = vmatmul.mubr.f32.gmra.mrb[0].mxu0 %v3387
    %v3461 = vpop.f32.mrb[0].mxu0
    %v3462 = vadd.f32 %v3264, %v3461
    %v3463 = vpop.f32.mrb[0].mxu0
    %3464 = vmatprep.mubr.f32.mxu0 0.0
    %3465 = vmatmul.mubr.f32.gmra.mrb[0].mxu0 %v3388
    %v3466 = vpop.f32.mrb[0].mxu0
    %v3467 = vadd.f32 %v3264, %v3466
    %v3468 = vpop.f32.mrb[0].mxu0
    %3469 = vmatprep.mubr.f32.mxu0 0.0
    %3470 = vmatmul.mubr.f32.gmra.mrb[0].mxu0 %v3389
    %v3471 = vpop.f32.mrb[0].mxu0
    %v3472 = vadd.f32 %v3264, %v3471
    %v3473 = vpop.f32.mrb[0].mxu0
    %3474 = vmatprep.mubr.f32.mxu0 0.0
    %3475 = vmatmul.mubr.f32.gmra.mrb[0].mxu0 %v3390
    %v3476 = vpop.f32.mrb[0].mxu0
    %v3477 = vadd.f32 %v3264, %v3476
    %v3478 = vpop.f32.mrb[0].mxu0
    %3479 = vmatprep.mubr.f32.mxu0 0.0
    %3480 = vmatmul.mubr.f32.gmra.mrb[0].mxu0 %v3391
    %v3481 = vpop.f32.mrb[0].mxu0
    %v3482 = vadd.f32 %v3264, %v3481
    %v3483 = vpop.f32.mrb[0].mxu0
    %3484 = vmatprep.mubr.f32.mxu0 0.0
    %3485 = vmatmul.mubr.f32.gmra.mrb[0].mxu0 %v3392
    %v3486 = vpop.f32.mrb[0].mxu0
    %v3487 = vadd.f32 %v3264, %v3486
    %v3488 = vpop.f32.mrb[0].mxu0
    %3489 = vmatprep.mubr.f32.mxu0 0.0
    %3490 = vmatmul.mubr.f32.gmra.mrb[0].mxu0 %v3393
    %v3491 = vpop.f32.mrb[0].mxu0
    %v3492 = vadd.f32 %v3264, %v3491
    %v3493 = vpop.f32.mrb[0].mxu0
    %3494 = vmatprep.mubr.f32.mxu0 0.0
    %3495 = vmatmul.mubr.f32.gmra.mrb[0].mxu0 %v3394
    %v3496 = vpop.f32.mrb[0].mxu0
    %v3497 = vadd.f32 %v3264, %v3496
    %v3498 = vpop.f32.mrb[0].mxu0
    %3499 = vdwg.mxu0
    %v3500 = vtanh.pop %v3462
    %v3501 = vtanh.pop %v3467
    %v3502 = vtanh.pop %v3472
    %v3503 = vtanh.pop %v3477
    %v3504 = vtanh.pop %v3482
    %v3505 = vtanh.pop %v3487
    %v3506 = vtanh.pop %v3492
    %v3507 = vtanh.pop %v3497
    %3508 = vst [vmem:[%s11 + $0x20] sm:$0xff] %v3500
    %3509 = vst [vmem:[%s11 + $0xa0] sm:$0xff] %v3501
    %3510 = vst [vmem:[%s11 + $0x120] sm:$0xff] %v3502
    %3511 = vst [vmem:[%s11 + $0x1a0] sm:$0xff] %v3503
    %3512 = vst [vmem:[%s11 + $0x60] sm:$0xff] %v3504
    %3513 = vst [vmem:[%s11 + $0xe0] sm:$0xff] %v3505
    %3514 = vst [vmem:[%s11 + $0x160] sm:$0xff] %v3506
    %3515 = vst [vmem:[%s11 + $0x1e0] sm:$0xff] %v3507
    %v3516 = vld [vmem:[#allocation2 + $0x80] sm:$0xff]
    %v3517 = vld [vmem:[#allocation2 + $0x88] sm:$0xff]
    %v3518 = vld [vmem:[#allocation2 + $0x90] sm:$0xff]
    %v3519 = vld [vmem:[#allocation2 + $0x98] sm:$0xff]
    %v3520 = vld [vmem:[#allocation2 + $0xa0] sm:$0xff]
    %v3521 = vld [vmem:[#allocation2 + $0xa8] sm:$0xff]
    %v3522 = vld [vmem:[#allocation2 + $0xb0] sm:$0xff]
    %v3523 = vld [vmem:[#allocation2 + $0xb8] sm:$0xff]
    %3524 = vmatprep.subr.mxu0 0.0
    %3525 = vmatpush1.msra.mxu0 %v3235
    %3526 = vmatprep.subr.mxu0 0.0
    %3527 = vmatpush1.msra.mxu0 %v3236
    %3528 = vmatprep.subr.mxu0 0.0
    %3529 = vmatpush1.msra.mxu0 %v3237
    %3530 = vmatprep.subr.mxu0 0.0
    %3531 = vmatpush1.msra.mxu0 %v3238
    %3532 = vmatprep.subr.mxu0 0.0
    %3533 = vmatpush1.msra.mxu0 %v3239
    %3534 = vmatprep.subr.mxu0 0.0
    %3535 = vmatpush1.msra.mxu0 %v3240
    %3536 = vmatprep.subr.mxu0 0.0
    %3537 = vmatpush1.msra.mxu0 %v3241
    %3538 = vmatprep.subr.mxu0 0.0
    %3539 = vmatpush1.msra.mxu0 %v3242
    %3540 = vmatprep.subr.mxu0 0.0
    %3541 = vmatpush1.msra.mxu0 %v3243
    %3542 = vmatprep.subr.mxu0 0.0
    %3543 = vmatpush1.msra.mxu0 %v3244
    %3544 = vmatprep.subr.mxu0 0.0
    %3545 = vmatpush1.msra.mxu0 %v3245
    %3546 = vmatprep.subr.mxu0 0.0
    %3547 = vmatpush1.msra.mxu0 %v3246
    %3548 = vmatprep.subr.mxu0 0.0
    %3549 = vmatpush1.msra.mxu0 %v3247
    %3550 = vmatprep.subr.mxu0 0.0
    %3551 = vmatpush1.msra.mxu0 %v3248
    %3552 = vmatprep.subr.mxu0 0.0
    %3553 = vmatpush1.msra.mxu0 %v3249
    %3554 = vmatprep.subr.mxu0 0.0
    %3555 = vmatpush1.msra.mxu0 %v3250
    %3556 = vmatprep.subr.mxu0 0.0
    %3557 = vmatpush1.msra.mxu0 0.0
    %3558 = vmatprep.subr.mxu0 0.0
    %3559 = vmatpush1.msra.mxu0 0.0
    %3560 = vmatprep.subr.mxu0 0.0
    %3561 = vmatpush1.msra.mxu0 0.0
    %3562 = vmatprep.subr.mxu0 0.0
    %3563 = vmatpush1.msra.mxu0 0.0
    %3564 = vmatprep.subr.mxu0 0.0
    %3565 = vmatpush1.msra.mxu0 0.0
    %3566 = vmatprep.subr.mxu0 0.0
    %3567 = vmatpush1.msra.mxu0 0.0
    %3568 = vmatprep.subr.mxu0 0.0
    %3569 = vmatpush1.msra.mxu0 0.0
    %3570 = vmatprep.subr.mxu0 0.0
    %3571 = vmatpush1.msra.mxu0 0.0
    %3572 = vmatprep.subr.mxu0 0.0
    %3573 = vmatpush1.msra.mxu0 0.0
    %3574 = vmatprep.subr.mxu0 0.0
    %3575 = vmatpush1.msra.mxu0 0.0
    %3576 = vmatprep.subr.mxu0 0.0
    %3577 = vmatpush1.msra.mxu0 0.0
    %3578 = vmatprep.subr.mxu0 0.0
    %3579 = vmatpush1.msra.mxu0 0.0
    %3580 = vmatprep.subr.mxu0 0.0
    %3581 = vmatpush1.msra.mxu0 0.0
    %3582 = vmatprep.subr.mxu0 0.0
    %3583 = vmatpush1.msra.mxu0 0.0
    %3584 = vmatprep.subr.mxu0 0.0
    %3585 = vmatpush1.msra.mxu0 0.0
    %3586 = vmatprep.subr.mxu0 0.0
    %3587 = vmatpush1.msra.mxu0 0.0
    %3588 = vmatprep.mubr.f32.mxu0 0.0
    %3589 = vmatmul.mubr.f32.gmra.mrb[0].mxu0 %v3516
    %v3590 = vpop.f32.mrb[0].mxu0
    %v3591 = vadd.f32 %v3264, %v3590
    %v3592 = vpop.f32.mrb[0].mxu0
    %3593 = vmatprep.mubr.f32.mxu0 0.0
    %3594 = vmatmul.mubr.f32.gmra.mrb[0].mxu0 %v3517
    %v3595 = vpop.f32.mrb[0].mxu0
    %v3596 = vadd.f32 %v3264, %v3595
    %v3597 = vpop.f32.mrb[0].mxu0
    %3598 = vmatprep.mubr.f32.mxu0 0.0
    %3599 = vmatmul.mubr.f32.gmra.mrb[0].mxu0 %v3518
    %v3600 = vpop.f32.mrb[0].mxu0
    %v3601 = vadd.f32 %v3264, %v3600
    %v3602 = vpop.f32.mrb[0].mxu0
    %3603 = vmatprep.mubr.f32.mxu0 0.0
    %3604 = vmatmul.mubr.f32.gmra.mrb[0].mxu0 %v3519
    %v3605 = vpop.f32.mrb[0].mxu0
    %v3606 = vadd.f32 %v3264, %v3605
    %v3607 = vpop.f32.mrb[0].mxu0
    %3608 = vmatprep.mubr.f32.mxu0 0.0
    %3609 = vmatmul.mubr.f32.gmra.mrb[0].mxu0 %v3520
    %v3610 = vpop.f32.mrb[0].mxu0
    %v3611 = vadd.f32 %v3264, %v3610
    %v3612 = vpop.f32.mrb[0].mxu0
    %3613 = vmatprep.mubr.f32.mxu0 0.0
    %3614 = vmatmul.mubr.f32.gmra.mrb[0].mxu0 %v3521
    %v3615 = vpop.f32.mrb[0].mxu0
    %v3616 = vadd.f32 %v3264, %v3615
    %v3617 = vpop.f32.mrb[0].mxu0
    %3618 = vmatprep.mubr.f32.mxu0 0.0
    %3619 = vmatmul.mubr.f32.gmra.mrb[0].mxu0 %v3522
    %v3620 = vpop.f32.mrb[0].mxu0
    %v3621 = vadd.f32 %v3264, %v3620
    %v3622 = vpop.f32.mrb[0].mxu0
    %3623 = vmatprep.mubr.f32.mxu0 0.0
    %3624 = vmatmul.mubr.f32.gmra.mrb[0].mxu0 %v3523
    %v3625 = vpop.f32.mrb[0].mxu0
    %v3626 = vadd.f32 %v3264, %v3625
    %v3627 = vpop.f32.mrb[0].mxu0
    %3628 = vdwg.mxu0
    %v3629 = vtanh.pop %v3591
    %v3630 = vtanh.pop %v3596
    %v3631 = vtanh.pop %v3601
    %v3632 = vtanh.pop %v3606
    %v3633 = vtanh.pop %v3611
    %v3634 = vtanh.pop %v3616
    %v3635 = vtanh.pop %v3621
    %v3636 = vtanh.pop %v3626
    %3637 = vst [vmem:[%s11 + $0x10] sm:$0xff] %v3629
    %3638 = vst [vmem:[%s11 + $0x90] sm:$0xff] %v3630
    %3639 = vst [vmem:[%s11 + $0x110] sm:$0xff] %v3631
    %3640 = vst [vmem:[%s11 + $0x190] sm:$0xff] %v3632
    %3641 = vst [vmem:[%s11 + $0x50] sm:$0xff] %v3633
    %3642 = vst [vmem:[%s11 + $0xd0] sm:$0xff] %v3634
    %3643 = vst [vmem:[%s11 + $0x150] sm:$0xff] %v3635
    %3644 = vst [vmem:[%s11 + $0x1d0] sm:$0xff] %v3636
    %v3645 = vld [vmem:[#allocation2 + $0xc0] sm:$0xff]
    %v3646 = vld [vmem:[#allocation2 + $0xc8] sm:$0xff]
    %v3647 = vld [vmem:[#allocation2 + $0xd0] sm:$0xff]
    %v3648 = vld [vmem:[#allocation2 + $0xd8] sm:$0xff]
    %v3649 = vld [vmem:[#allocation2 + $0xe0] sm:$0xff]
    %v3650 = vld [vmem:[#allocation2 + $0xe8] sm:$0xff]
    %v3651 = vld [vmem:[#allocation2 + $0xf0] sm:$0xff]
    %v3652 = vld [vmem:[#allocation2 + $0xf8] sm:$0xff]
    %3653 = vmatprep.subr.mxu0 0.0
    %3654 = vmatpush1.msra.mxu0 %v3235
    %3655 = vmatprep.subr.mxu0 0.0
    %3656 = vmatpush1.msra.mxu0 %v3236
    %3657 = vmatprep.subr.mxu0 0.0
    %3658 = vmatpush1.msra.mxu0 %v3237
    %3659 = vmatprep.subr.mxu0 0.0
    %3660 = vmatpush1.msra.mxu0 %v3238
    %3661 = vmatprep.subr.mxu0 0.0
    %3662 = vmatpush1.msra.mxu0 %v3239
    %3663 = vmatprep.subr.mxu0 0.0
    %3664 = vmatpush1.msra.mxu0 %v3240
    %3665 = vmatprep.subr.mxu0 0.0
    %3666 = vmatpush1.msra.mxu0 %v3241
    %3667 = vmatprep.subr.mxu0 0.0
    %3668 = vmatpush1.msra.mxu0 %v3242
    %3669 = vmatprep.subr.mxu0 0.0
    %3670 = vmatpush1.msra.mxu0 %v3243
    %3671 = vmatprep.subr.mxu0 0.0
    %3672 = vmatpush1.msra.mxu0 %v3244
    %3673 = vmatprep.subr.mxu0 0.0
    %3674 = vmatpush1.msra.mxu0 %v3245
    %3675 = vmatprep.subr.mxu0 0.0
    %3676 = vmatpush1.msra.mxu0 %v3246
    %3677 = vmatprep.subr.mxu0 0.0
    %3678 = vmatpush1.msra.mxu0 %v3247
    %3679 = vmatprep.subr.mxu0 0.0
    %3680 = vmatpush1.msra.mxu0 %v3248
    %3681 = vmatprep.subr.mxu0 0.0
    %3682 = vmatpush1.msra.mxu0 %v3249
    %3683 = vmatprep.subr.mxu0 0.0
    %3684 = vmatpush1.msra.mxu0 %v3250
    %3685 = vmatprep.subr.mxu0 0.0
    %3686 = vmatpush1.msra.mxu0 0.0
    %3687 = vmatprep.subr.mxu0 0.0
    %3688 = vmatpush1.msra.mxu0 0.0
    %3689 = vmatprep.subr.mxu0 0.0
    %3690 = vmatpush1.msra.mxu0 0.0
    %3691 = vmatprep.subr.mxu0 0.0
    %3692 = vmatpush1.msra.mxu0 0.0
    %3693 = vmatprep.subr.mxu0 0.0
    %3694 = vmatpush1.msra.mxu0 0.0
    %3695 = vmatprep.subr.mxu0 0.0
    %3696 = vmatpush1.msra.mxu0 0.0
    %3697 = vmatprep.subr.mxu0 0.0
    %3698 = vmatpush1.msra.mxu0 0.0
    %3699 = vmatprep.subr.mxu0 0.0
    %3700 = vmatpush1.msra.mxu0 0.0
    %3701 = vmatprep.subr.mxu0 0.0
    %3702 = vmatpush1.msra.mxu0 0.0
    %3703 = vmatprep.subr.mxu0 0.0
    %3704 = vmatpush1.msra.mxu0 0.0
    %3705 = vmatprep.subr.mxu0 0.0
    %3706 = vmatpush1.msra.mxu0 0.0
    %3707 = vmatprep.subr.mxu0 0.0
    %3708 = vmatpush1.msra.mxu0 0.0
    %3709 = vmatprep.subr.mxu0 0.0
    %3710 = vmatpush1.msra.mxu0 0.0
    %3711 = vmatprep.subr.mxu0 0.0
    %3712 = vmatpush1.msra.mxu0 0.0
    %3713 = vmatprep.subr.mxu0 0.0
    %3714 = vmatpush1.msra.mxu0 0.0
    %3715 = vmatprep.subr.mxu0 0.0
    %3716 = vmatpush1.msra.mxu0 0.0
    %3717 = vmatprep.mubr.f32.mxu0 0.0
    %3718 = vmatmul.mubr.f32.gmra.mrb[0].mxu0 %v3645
    %v3719 = vpop.f32.mrb[0].mxu0
    %v3720 = vadd.f32 %v3264, %v3719
    %v3721 = vpop.f32.mrb[0].mxu0
    %3722 = vmatprep.mubr.f32.mxu0 0.0
    %3723 = vmatmul.mubr.f32.gmra.mrb[0].mxu0 %v3646
    %v3724 = vpop.f32.mrb[0].mxu0
    %v3725 = vadd.f32 %v3264, %v3724
    %v3726 = vpop.f32.mrb[0].mxu0
    %3727 = vmatprep.mubr.f32.mxu0 0.0
    %3728 = vmatmul.mubr.f32.gmra.mrb[0].mxu0 %v3647
    %v3729 = vpop.f32.mrb[0].mxu0
    %v3730 = vadd.f32 %v3264, %v3729
    %v3731 = vpop.f32.mrb[0].mxu0
    %3732 = vmatprep.mubr.f32.mxu0 0.0
    %3733 = vmatmul.mubr.f32.gmra.mrb[0].mxu0 %v3648
    %v3734 = vpop.f32.mrb[0].mxu0
    %v3735 = vadd.f32 %v3264, %v3734
    %v3736 = vpop.f32.mrb[0].mxu0
    %3737 = vmatprep.mubr.f32.mxu0 0.0
    %3738 = vmatmul.mubr.f32.gmra.mrb[0].mxu0 %v3649
    %v3739 = vpop.f32.mrb[0].mxu0
    %v3740 = vadd.f32 %v3264, %v3739
    %v3741 = vpop.f32.mrb[0].mxu0
    %3742 = vmatprep.mubr.f32.mxu0 0.0
    %3743 = vmatmul.mubr.f32.gmra.mrb[0].mxu0 %v3650
    %v3744 = vpop.f32.mrb[0].mxu0
    %v3745 = vadd.f32 %v3264, %v3744
    %v3746 = vpop.f32.mrb[0].mxu0
    %3747 = vmatprep.mubr.f32.mxu0 0.0
    %3748 = vmatmul.mubr.f32.gmra.mrb[0].mxu0 %v3651
    %v3749 = vpop.f32.mrb[0].mxu0
    %v3750 = vadd.f32 %v3264, %v3749
    %v3751 = vpop.f32.mrb[0].mxu0
    %3752 = vmatprep.mubr.f32.mxu0 0.0
    %3753 = vmatmul.mubr.f32.gmra.mrb[0].mxu0 %v3652
    %v3754 = vpop.f32.mrb[0].mxu0
    %v3755 = vadd.f32 %v3264, %v3754
    %v3756 = vpop.f32.mrb[0].mxu0
    %3757 = vdwg.mxu0
    %v3758 = vtanh.pop %v3720
    %v3759 = vtanh.pop %v3725
    %v3760 = vtanh.pop %v3730
    %v3761 = vtanh.pop %v3735
    %v3762 = vtanh.pop %v3740
    %v3763 = vtanh.pop %v3745
    %v3764 = vtanh.pop %v3750
    %v3765 = vtanh.pop %v3755
    %3766 = vst [vmem:[%s11 + $0x30] sm:$0xff] %v3758
    %3767 = vst [vmem:[%s11 + $0xb0] sm:$0xff] %v3759
    %3768 = vst [vmem:[%s11 + $0x130] sm:$0xff] %v3760
    %3769 = vst [vmem:[%s11 + $0x1b0] sm:$0xff] %v3761
    %3770 = vst [vmem:[%s11 + $0x70] sm:$0xff] %v3762
    %3771 = vst [vmem:[%s11 + $0xf0] sm:$0xff] %v3763
    %3772 = vst [vmem:[%s11 + $0x170] sm:$0xff] %v3764
    %3773 = vst [vmem:[%s11 + $0x1f0] sm:$0xff] %v3765
    %v3774 = vld [vmem:[#allocation2 + $0x100] sm:$0xff]
    %v3775 = vld [vmem:[#allocation2 + $0x108] sm:$0xff]
    %v3776 = vld [vmem:[#allocation2 + $0x110] sm:$0xff]
    %v3777 = vld [vmem:[#allocation2 + $0x118] sm:$0xff]
    %v3778 = vld [vmem:[#allocation2 + $0x120] sm:$0xff]
    %v3779 = vld [vmem:[#allocation2 + $0x128] sm:$0xff]
    %v3780 = vld [vmem:[#allocation2 + $0x130] sm:$0xff]
    %v3781 = vld [vmem:[#allocation2 + $0x138] sm:$0xff]
    %3782 = vmatprep.subr.mxu0 0.0
    %3783 = vmatpush1.msra.mxu0 %v3235
    %3784 = vmatprep.subr.mxu0 0.0
    %3785 = vmatpush1.msra.mxu0 %v3236
    %3786 = vmatprep.subr.mxu0 0.0
    %3787 = vmatpush1.msra.mxu0 %v3237
    %3788 = vmatprep.subr.mxu0 0.0
    %3789 = vmatpush1.msra.mxu0 %v3238
    %3790 = vmatprep.subr.mxu0 0.0
    %3791 = vmatpush1.msra.mxu0 %v3239
    %3792 = vmatprep.subr.mxu0 0.0
    %3793 = vmatpush1.msra.mxu0 %v3240
    %3794 = vmatprep.subr.mxu0 0.0
    %3795 = vmatpush1.msra.mxu0 %v3241
    %3796 = vmatprep.subr.mxu0 0.0
    %3797 = vmatpush1.msra.mxu0 %v3242
    %3798 = vmatprep.subr.mxu0 0.0
    %3799 = vmatpush1.msra.mxu0 %v3243
    %3800 = vmatprep.subr.mxu0 0.0
    %3801 = vmatpush1.msra.mxu0 %v3244
    %3802 = vmatprep.subr.mxu0 0.0
    %3803 = vmatpush1.msra.mxu0 %v3245
    %3804 = vmatprep.subr.mxu0 0.0
    %3805 = vmatpush1.msra.mxu0 %v3246
    %3806 = vmatprep.subr.mxu0 0.0
    %3807 = vmatpush1.msra.mxu0 %v3247
    %3808 = vmatprep.subr.mxu0 0.0
    %3809 = vmatpush1.msra.mxu0 %v3248
    %3810 = vmatprep.subr.mxu0 0.0
    %3811 = vmatpush1.msra.mxu0 %v3249
    %3812 = vmatprep.subr.mxu0 0.0
    %3813 = vmatpush1.msra.mxu0 %v3250
    %3814 = vmatprep.subr.mxu0 0.0
    %3815 = vmatpush1.msra.mxu0 0.0
    %3816 = vmatprep.subr.mxu0 0.0
    %3817 = vmatpush1.msra.mxu0 0.0
    %3818 = vmatprep.subr.mxu0 0.0
    %3819 = vmatpush1.msra.mxu0 0.0
    %3820 = vmatprep.subr.mxu0 0.0
    %3821 = vmatpush1.msra.mxu0 0.0
    %3822 = vmatprep.subr.mxu0 0.0
    %3823 = vmatpush1.msra.mxu0 0.0
    %3824 = vmatprep.subr.mxu0 0.0
    %3825 = vmatpush1.msra.mxu0 0.0
    %3826 = vmatprep.subr.mxu0 0.0
    %3827 = vmatpush1.msra.mxu0 0.0
    %3828 = vmatprep.subr.mxu0 0.0
    %3829 = vmatpush1.msra.mxu0 0.0
    %3830 = vmatprep.subr.mxu0 0.0
    %3831 = vmatpush1.msra.mxu0 0.0
    %3832 = vmatprep.subr.mxu0 0.0
    %3833 = vmatpush1.msra.mxu0 0.0
    %3834 = vmatprep.subr.mxu0 0.0
    %3835 = vmatpush1.msra.mxu0 0.0
    %3836 = vmatprep.subr.mxu0 0.0
    %3837 = vmatpush1.msra.mxu0 0.0
    %3838 = vmatprep.subr.mxu0 0.0
    %3839 = vmatpush1.msra.mxu0 0.0
    %3840 = vmatprep.subr.mxu0 0.0
    %3841 = vmatpush1.msra.mxu0 0.0
    %3842 = vmatprep.subr.mxu0 0.0
    %3843 = vmatpush1.msra.mxu0 0.0
    %3844 = vmatprep.subr.mxu0 0.0
    %3845 = vmatpush1.msra.mxu0 0.0
    %3846 = vmatprep.mubr.f32.mxu0 0.0
    %3847 = vmatmul.mubr.f32.gmra.mrb[0].mxu0 %v3774
    %v3848 = vpop.f32.mrb[0].mxu0
    %v3849 = vadd.f32 %v3264, %v3848
    %v3850 = vpop.f32.mrb[0].mxu0
    %3851 = vmatprep.mubr.f32.mxu0 0.0
    %3852 = vmatmul.mubr.f32.gmra.mrb[0].mxu0 %v3775
    %v3853 = vpop.f32.mrb[0].mxu0
    %v3854 = vadd.f32 %v3264, %v3853
    %v3855 = vpop.f32.mrb[0].mxu0
    %3856 = vmatprep.mubr.f32.mxu0 0.0
    %3857 = vmatmul.mubr.f32.gmra.mrb[0].mxu0 %v3776
    %v3858 = vpop.f32.mrb[0].mxu0
    %v3859 = vadd.f32 %v3264, %v3858
    %v3860 = vpop.f32.mrb[0].mxu0
    %3861 = vmatprep.mubr.f32.mxu0 0.0
    %3862 = vmatmul.mubr.f32.gmra.mrb[0].mxu0 %v3777
    %v3863 = vpop.f32.mrb[0].mxu0
    %v3864 = vadd.f32 %v3264, %v3863
    %v3865 = vpop.f32.mrb[0].mxu0
    %3866 = vmatprep.mubr.f32.mxu0 0.0
    %3867 = vmatmul.mubr.f32.gmra.mrb[0].mxu0 %v3778
    %v3868 = vpop.f32.mrb[0].mxu0
    %v3869 = vadd.f32 %v3264, %v3868
    %v3870 = vpop.f32.mrb[0].mxu0
    %3871 = vmatprep.mubr.f32.mxu0 0.0
    %3872 = vmatmul.mubr.f32.gmra.mrb[0].mxu0 %v3779
    %v3873 = vpop.f32.mrb[0].mxu0
    %v3874 = vadd.f32 %v3264, %v3873
    %v3875 = vpop.f32.mrb[0].mxu0
    %3876 = vmatprep.mubr.f32.mxu0 0.0
    %3877 = vmatmul.mubr.f32.gmra.mrb[0].mxu0 %v3780
    %v3878 = vpop.f32.mrb[0].mxu0
    %v3879 = vadd.f32 %v3264, %v3878
    %v3880 = vpop.f32.mrb[0].mxu0
    %3881 = vmatprep.mubr.f32.mxu0 0.0
    %3882 = vmatmul.mubr.f32.gmra.mrb[0].mxu0 %v3781
    %v3883 = vpop.f32.mrb[0].mxu0
    %v3884 = vadd.f32 %v3264, %v3883
    %v3885 = vpop.f32.mrb[0].mxu0
    %3886 = vdwg.mxu0
    %v3887 = vtanh.pop %v3849
    %v3888 = vtanh.pop %v3854
    %v3889 = vtanh.pop %v3859
    %v3890 = vtanh.pop %v3864
    %v3891 = vtanh.pop %v3869
    %v3892 = vtanh.pop %v3874
    %v3893 = vtanh.pop %v3879
    %v3894 = vtanh.pop %v3884
    %3895 = vst [vmem:[%s11 + $0x8] sm:$0xff] %v3887
    %3896 = vst [vmem:[%s11 + $0x88] sm:$0xff] %v3888
    %3897 = vst [vmem:[%s11 + $0x108] sm:$0xff] %v3889
    %3898 = vst [vmem:[%s11 + $0x188] sm:$0xff] %v3890
    %3899 = vst [vmem:[%s11 + $0x48] sm:$0xff] %v3891
    %3900 = vst [vmem:[%s11 + $0xc8] sm:$0xff] %v3892
    %3901 = vst [vmem:[%s11 + $0x148] sm:$0xff] %v3893
    %3902 = vst [vmem:[%s11 + $0x1c8] sm:$0xff] %v3894
    %v3903 = vld [vmem:[#allocation2 + $0x140] sm:$0xff]
    %v3904 = vld [vmem:[#allocation2 + $0x148] sm:$0xff]
    %v3905 = vld [vmem:[#allocation2 + $0x150] sm:$0xff]
    %v3906 = vld [vmem:[#allocation2 + $0x158] sm:$0xff]
    %v3907 = vld [vmem:[#allocation2 + $0x160] sm:$0xff]
    %v3908 = vld [vmem:[#allocation2 + $0x168] sm:$0xff]
    %v3909 = vld [vmem:[#allocation2 + $0x170] sm:$0xff]
    %v3910 = vld [vmem:[#allocation2 + $0x178] sm:$0xff]
    %3911 = vmatprep.subr.mxu0 0.0
    %3912 = vmatpush1.msra.mxu0 %v3235
    %3913 = vmatprep.subr.mxu0 0.0
    %3914 = vmatpush1.msra.mxu0 %v3236
    %3915 = vmatprep.subr.mxu0 0.0
    %3916 = vmatpush1.msra.mxu0 %v3237
    %3917 = vmatprep.subr.mxu0 0.0
    %3918 = vmatpush1.msra.mxu0 %v3238
    %3919 = vmatprep.subr.mxu0 0.0
    %3920 = vmatpush1.msra.mxu0 %v3239
    %3921 = vmatprep.subr.mxu0 0.0
    %3922 = vmatpush1.msra.mxu0 %v3240
    %3923 = vmatprep.subr.mxu0 0.0
    %3924 = vmatpush1.msra.mxu0 %v3241
    %3925 = vmatprep.subr.mxu0 0.0
    %3926 = vmatpush1.msra.mxu0 %v3242
    %3927 = vmatprep.subr.mxu0 0.0
    %3928 = vmatpush1.msra.mxu0 %v3243
    %3929 = vmatprep.subr.mxu0 0.0
    %3930 = vmatpush1.msra.mxu0 %v3244
    %3931 = vmatprep.subr.mxu0 0.0
    %3932 = vmatpush1.msra.mxu0 %v3245
    %3933 = vmatprep.subr.mxu0 0.0
    %3934 = vmatpush1.msra.mxu0 %v3246
    %3935 = vmatprep.subr.mxu0 0.0
    %3936 = vmatpush1.msra.mxu0 %v3247
    %3937 = vmatprep.subr.mxu0 0.0
    %3938 = vmatpush1.msra.mxu0 %v3248
    %3939 = vmatprep.subr.mxu0 0.0
    %3940 = vmatpush1.msra.mxu0 %v3249
    %3941 = vmatprep.subr.mxu0 0.0
    %3942 = vmatpush1.msra.mxu0 %v3250
    %3943 = vmatprep.subr.mxu0 0.0
    %3944 = vmatpush1.msra.mxu0 0.0
    %3945 = vmatprep.subr.mxu0 0.0
    %3946 = vmatpush1.msra.mxu0 0.0
    %3947 = vmatprep.subr.mxu0 0.0
    %3948 = vmatpush1.msra.mxu0 0.0
    %3949 = vmatprep.subr.mxu0 0.0
    %3950 = vmatpush1.msra.mxu0 0.0
    %3951 = vmatprep.subr.mxu0 0.0
    %3952 = vmatpush1.msra.mxu0 0.0
    %3953 = vmatprep.subr.mxu0 0.0
    %3954 = vmatpush1.msra.mxu0 0.0
    %3955 = vmatprep.subr.mxu0 0.0
    %3956 = vmatpush1.msra.mxu0 0.0
    %3957 = vmatprep.subr.mxu0 0.0
    %3958 = vmatpush1.msra.mxu0 0.0
    %3959 = vmatprep.subr.mxu0 0.0
    %3960 = vmatpush1.msra.mxu0 0.0
    %3961 = vmatprep.subr.mxu0 0.0
    %3962 = vmatpush1.msra.mxu0 0.0
    %3963 = vmatprep.subr.mxu0 0.0
    %3964 = vmatpush1.msra.mxu0 0.0
    %3965 = vmatprep.subr.mxu0 0.0
    %3966 = vmatpush1.msra.mxu0 0.0
    %3967 = vmatprep.subr.mxu0 0.0
    %3968 = vmatpush1.msra.mxu0 0.0
    %3969 = vmatprep.subr.mxu0 0.0
    %3970 = vmatpush1.msra.mxu0 0.0
    %3971 = vmatprep.subr.mxu0 0.0
    %3972 = vmatpush1.msra.mxu0 0.0
    %3973 = vmatprep.subr.mxu0 0.0
    %3974 = vmatpush1.msra.mxu0 0.0
    %3975 = vmatprep.mubr.f32.mxu0 0.0
    %3976 = vmatmul.mubr.f32.gmra.mrb[0].mxu0 %v3903
    %v3977 = vpop.f32.mrb[0].mxu0
    %v3978 = vadd.f32 %v3264, %v3977
    %v3979 = vpop.f32.mrb[0].mxu0
    %3980 = vmatprep.mubr.f32.mxu0 0.0
    %3981 = vmatmul.mubr.f32.gmra.mrb[0].mxu0 %v3904
    %v3982 = vpop.f32.mrb[0].mxu0
    %v3983 = vadd.f32 %v3264, %v3982
    %v3984 = vpop.f32.mrb[0].mxu0
    %3985 = vmatprep.mubr.f32.mxu0 0.0
    %3986 = vmatmul.mubr.f32.gmra.mrb[0].mxu0 %v3905
    %v3987 = vpop.f32.mrb[0].mxu0
    %v3988 = vadd.f32 %v3264, %v3987
    %v3989 = vpop.f32.mrb[0].mxu0
    %3990 = vmatprep.mubr.f32.mxu0 0.0
    %3991 = vmatmul.mubr.f32.gmra.mrb[0].mxu0 %v3906
    %v3992 = vpop.f32.mrb[0].mxu0
    %v3993 = vadd.f32 %v3264, %v3992
    %v3994 = vpop.f32.mrb[0].mxu0
    %3995 = vmatprep.mubr.f32.mxu0 0.0
    %3996 = vmatmul.mubr.f32.gmra.mrb[0].mxu0 %v3907
    %v3997 = vpop.f32.mrb[0].mxu0
    %v3998 = vadd.f32 %v3264, %v3997
    %v3999 = vpop.f32.mrb[0].mxu0
    %4000 = vmatprep.mubr.f32.mxu0 0.0
    %4001 = vmatmul.mubr.f32.gmra.mrb[0].mxu0 %v3908
    %v4002 = vpop.f32.mrb[0].mxu0
    %v4003 = vadd.f32 %v3264, %v4002
    %v4004 = vpop.f32.mrb[0].mxu0
    %4005 = vmatprep.mubr.f32.mxu0 0.0
    %4006 = vmatmul.mubr.f32.gmra.mrb[0].mxu0 %v3909
    %v4007 = vpop.f32.mrb[0].mxu0
    %v4008 = vadd.f32 %v3264, %v4007
    %v4009 = vpop.f32.mrb[0].mxu0
    %4010 = vmatprep.mubr.f32.mxu0 0.0
    %4011 = vmatmul.mubr.f32.gmra.mrb[0].mxu0 %v3910
    %v4012 = vpop.f32.mrb[0].mxu0
    %v4013 = vadd.f32 %v3264, %v4012
    %v4014 = vpop.f32.mrb[0].mxu0
    %4015 = vdwg.mxu0
    %v4016 = vtanh.pop %v3978
    %v4017 = vtanh.pop %v3983
    %v4018 = vtanh.pop %v3988
    %v4019 = vtanh.pop %v3993
    %v4020 = vtanh.pop %v3998
    %v4021 = vtanh.pop %v4003
    %v4022 = vtanh.pop %v4008
    %v4023 = vtanh.pop %v4013
    %4024 = vst [vmem:[%s11 + $0x28] sm:$0xff] %v4016
    %4025 = vst [vmem:[%s11 + $0xa8] sm:$0xff] %v4017
    %4026 = vst [vmem:[%s11 + $0x128] sm:$0xff] %v4018
    %4027 = vst [vmem:[%s11 + $0x1a8] sm:$0xff] %v4019
    %4028 = vst [vmem:[%s11 + $0x68] sm:$0xff] %v4020
    %4029 = vst [vmem:[%s11 + $0xe8] sm:$0xff] %v4021
    %4030 = vst [vmem:[%s11 + $0x168] sm:$0xff] %v4022
    %4031 = vst [vmem:[%s11 + $0x1e8] sm:$0xff] %v4023
    %v4032 = vld [vmem:[#allocation2 + $0x180] sm:$0xff]
    %v4033 = vld [vmem:[#allocation2 + $0x188] sm:$0xff]
    %v4034 = vld [vmem:[#allocation2 + $0x190] sm:$0xff]
    %v4035 = vld [vmem:[#allocation2 + $0x198] sm:$0xff]
    %v4036 = vld [vmem:[#allocation2 + $0x1a0] sm:$0xff]
    %v4037 = vld [vmem:[#allocation2 + $0x1a8] sm:$0xff]
    %v4038 = vld [vmem:[#allocation2 + $0x1b0] sm:$0xff]
    %v4039 = vld [vmem:[#allocation2 + $0x1b8] sm:$0xff]
    %4040 = vmatprep.subr.mxu0 0.0
    %4041 = vmatpush1.msra.mxu0 %v3235
    %4042 = vmatprep.subr.mxu0 0.0
    %4043 = vmatpush1.msra.mxu0 %v3236
    %4044 = vmatprep.subr.mxu0 0.0
    %4045 = vmatpush1.msra.mxu0 %v3237
    %4046 = vmatprep.subr.mxu0 0.0
    %4047 = vmatpush1.msra.mxu0 %v3238
    %4048 = vmatprep.subr.mxu0 0.0
    %4049 = vmatpush1.msra.mxu0 %v3239
    %4050 = vmatprep.subr.mxu0 0.0
    %4051 = vmatpush1.msra.mxu0 %v3240
    %4052 = vmatprep.subr.mxu0 0.0
    %4053 = vmatpush1.msra.mxu0 %v3241
    %4054 = vmatprep.subr.mxu0 0.0
    %4055 = vmatpush1.msra.mxu0 %v3242
    %4056 = vmatprep.subr.mxu0 0.0
    %4057 = vmatpush1.msra.mxu0 %v3243
    %4058 = vmatprep.subr.mxu0 0.0
    %4059 = vmatpush1.msra.mxu0 %v3244
    %4060 = vmatprep.subr.mxu0 0.0
    %4061 = vmatpush1.msra.mxu0 %v3245
    %4062 = vmatprep.subr.mxu0 0.0
    %4063 = vmatpush1.msra.mxu0 %v3246
    %4064 = vmatprep.subr.mxu0 0.0
    %4065 = vmatpush1.msra.mxu0 %v3247
    %4066 = vmatprep.subr.mxu0 0.0
    %4067 = vmatpush1.msra.mxu0 %v3248
    %4068 = vmatprep.subr.mxu0 0.0
    %4069 = vmatpush1.msra.mxu0 %v3249
    %4070 = vmatprep.subr.mxu0 0.0
    %4071 = vmatpush1.msra.mxu0 %v3250
    %4072 = vmatprep.subr.mxu0 0.0
    %4073 = vmatpush1.msra.mxu0 0.0
    %4074 = vmatprep.subr.mxu0 0.0
    %4075 = vmatpush1.msra.mxu0 0.0
    %4076 = vmatprep.subr.mxu0 0.0
    %4077 = vmatpush1.msra.mxu0 0.0
    %4078 = vmatprep.subr.mxu0 0.0
    %4079 = vmatpush1.msra.mxu0 0.0
    %4080 = vmatprep.subr.mxu0 0.0
    %4081 = vmatpush1.msra.mxu0 0.0
    %4082 = vmatprep.subr.mxu0 0.0
    %4083 = vmatpush1.msra.mxu0 0.0
    %4084 = vmatprep.subr.mxu0 0.0
    %4085 = vmatpush1.msra.mxu0 0.0
    %4086 = vmatprep.subr.mxu0 0.0
    %4087 = vmatpush1.msra.mxu0 0.0
    %4088 = vmatprep.subr.mxu0 0.0
    %4089 = vmatpush1.msra.mxu0 0.0
    %4090 = vmatprep.subr.mxu0 0.0
    %4091 = vmatpush1.msra.mxu0 0.0
    %4092 = vmatprep.subr.mxu0 0.0
    %4093 = vmatpush1.msra.mxu0 0.0
    %4094 = vmatprep.subr.mxu0 0.0
    %4095 = vmatpush1.msra.mxu0 0.0
    %4096 = vmatprep.subr.mxu0 0.0
    %4097 = vmatpush1.msra.mxu0 0.0
    %4098 = vmatprep.subr.mxu0 0.0
    %4099 = vmatpush1.msra.mxu0 0.0
    %4100 = vmatprep.subr.mxu0 0.0
    %4101 = vmatpush1.msra.mxu0 0.0
    %4102 = vmatprep.subr.mxu0 0.0
    %4103 = vmatpush1.msra.mxu0 0.0
    %4104 = vmatprep.mubr.f32.mxu0 0.0
    %4105 = vmatmul.mubr.f32.gmra.mrb[0].mxu0 %v4032
    %v4106 = vpop.f32.mrb[0].mxu0
    %v4107 = vadd.f32 %v3264, %v4106
    %v4108 = vpop.f32.mrb[0].mxu0
    %4109 = vmatprep.mubr.f32.mxu0 0.0
    %4110 = vmatmul.mubr.f32.gmra.mrb[0].mxu0 %v4033
    %v4111 = vpop.f32.mrb[0].mxu0
    %v4112 = vadd.f32 %v3264, %v4111
    %v4113 = vpop.f32.mrb[0].mxu0
    %4114 = vmatprep.mubr.f32.mxu0 0.0
    %4115 = vmatmul.mubr.f32.gmra.mrb[0].mxu0 %v4034
    %v4116 = vpop.f32.mrb[0].mxu0
    %v4117 = vadd.f32 %v3264, %v4116
    %v4118 = vpop.f32.mrb[0].mxu0
    %4119 = vmatprep.mubr.f32.mxu0 0.0
    %4120 = vmatmul.mubr.f32.gmra.mrb[0].mxu0 %v4035
    %v4121 = vpop.f32.mrb[0].mxu0
    %v4122 = vadd.f32 %v3264, %v4121
    %v4123 = vpop.f32.mrb[0].mxu0
    %4124 = vmatprep.mubr.f32.mxu0 0.0
    %4125 = vmatmul.mubr.f32.gmra.mrb[0].mxu0 %v4036
    %v4126 = vpop.f32.mrb[0].mxu0
    %v4127 = vadd.f32 %v3264, %v4126
    %v4128 = vpop.f32.mrb[0].mxu0
    %4129 = vmatprep.mubr.f32.mxu0 0.0
    %4130 = vmatmul.mubr.f32.gmra.mrb[0].mxu0 %v4037
    %v4131 = vpop.f32.mrb[0].mxu0
    %v4132 = vadd.f32 %v3264, %v4131
    %v4133 = vpop.f32.mrb[0].mxu0
    %4134 = vmatprep.mubr.f32.mxu0 0.0
    %4135 = vmatmul.mubr.f32.gmra.mrb[0].mxu0 %v4038
    %v4136 = vpop.f32.mrb[0].mxu0
    %v4137 = vadd.f32 %v3264, %v4136
    %v4138 = vpop.f32.mrb[0].mxu0
    %4139 = vmatprep.mubr.f32.mxu0 0.0
    %4140 = vmatmul.mubr.f32.gmra.mrb[0].mxu0 %v4039
    %v4141 = vpop.f32.mrb[0].mxu0
    %v4142 = vadd.f32 %v3264, %v4141
    %v4143 = vpop.f32.mrb[0].mxu0
    %4144 = vdwg.mxu0
    %v4145 = vtanh.pop %v4107
    %v4146 = vtanh.pop %v4112
    %v4147 = vtanh.pop %v4117
    %v4148 = vtanh.pop %v4122
    %v4149 = vtanh.pop %v4127
    %v4150 = vtanh.pop %v4132
    %v4151 = vtanh.pop %v4137
    %v4152 = vtanh.pop %v4142
    %4153 = vst [vmem:[%s11 + $0x18] sm:$0xff] %v4145
    %4154 = vst [vmem:[%s11 + $0x98] sm:$0xff] %v4146
    %4155 = vst [vmem:[%s11 + $0x118] sm:$0xff] %v4147
    %4156 = vst [vmem:[%s11 + $0x198] sm:$0xff] %v4148
    %4157 = vst [vmem:[%s11 + $0x58] sm:$0xff] %v4149
    %4158 = vst [vmem:[%s11 + $0xd8] sm:$0xff] %v4150
    %4159 = vst [vmem:[%s11 + $0x158] sm:$0xff] %v4151
    %4160 = vst [vmem:[%s11 + $0x1d8] sm:$0xff] %v4152
    %v4161 = vld [vmem:[#allocation2 + $0x1c0] sm:$0xff]
    %v4162 = vld [vmem:[#allocation2 + $0x1c8] sm:$0xff]
    %v4163 = vld [vmem:[#allocation2 + $0x1d0] sm:$0xff]
    %v4164 = vld [vmem:[#allocation2 + $0x1d8] sm:$0xff]
    %v4165 = vld [vmem:[#allocation2 + $0x1e0] sm:$0xff]
    %v4166 = vld [vmem:[#allocation2 + $0x1e8] sm:$0xff]
    %v4167 = vld [vmem:[#allocation2 + $0x1f0] sm:$0xff]
    %v4168 = vld [vmem:[#allocation2 + $0x1f8] sm:$0xff]
    %4169 = vmatprep.subr.mxu0 0.0
    %4170 = vmatpush1.msra.mxu0 %v3235
    %4171 = vmatprep.subr.mxu0 0.0
    %4172 = vmatpush1.msra.mxu0 %v3236
    %4173 = vmatprep.subr.mxu0 0.0
    %4174 = vmatpush1.msra.mxu0 %v3237
    %4175 = vmatprep.subr.mxu0 0.0
    %4176 = vmatpush1.msra.mxu0 %v3238
    %4177 = vmatprep.subr.mxu0 0.0
    %4178 = vmatpush1.msra.mxu0 %v3239
    %4179 = vmatprep.subr.mxu0 0.0
    %4180 = vmatpush1.msra.mxu0 %v3240
    %4181 = vmatprep.subr.mxu0 0.0
    %4182 = vmatpush1.msra.mxu0 %v3241
    %4183 = vmatprep.subr.mxu0 0.0
    %4184 = vmatpush1.msra.mxu0 %v3242
    %4185 = vmatprep.subr.mxu0 0.0
    %4186 = vmatpush1.msra.mxu0 %v3243
    %4187 = vmatprep.subr.mxu0 0.0
    %4188 = vmatpush1.msra.mxu0 %v3244
    %4189 = vmatprep.subr.mxu0 0.0
    %4190 = vmatpush1.msra.mxu0 %v3245
    %4191 = vmatprep.subr.mxu0 0.0
    %4192 = vmatpush1.msra.mxu0 %v3246
    %4193 = vmatprep.subr.mxu0 0.0
    %4194 = vmatpush1.msra.mxu0 %v3247
    %4195 = vmatprep.subr.mxu0 0.0
    %4196 = vmatpush1.msra.mxu0 %v3248
    %4197 = vmatprep.subr.mxu0 0.0
    %4198 = vmatpush1.msra.mxu0 %v3249
    %4199 = vmatprep.subr.mxu0 0.0
    %4200 = vmatpush1.msra.mxu0 %v3250
    %4201 = vmatprep.subr.mxu0 0.0
    %4202 = vmatpush1.msra.mxu0 0.0
    %4203 = vmatprep.subr.mxu0 0.0
    %4204 = vmatpush1.msra.mxu0 0.0
    %4205 = vmatprep.subr.mxu0 0.0
    %4206 = vmatpush1.msra.mxu0 0.0
    %4207 = vmatprep.subr.mxu0 0.0
    %4208 = vmatpush1.msra.mxu0 0.0
    %4209 = vmatprep.subr.mxu0 0.0
    %4210 = vmatpush1.msra.mxu0 0.0
    %4211 = vmatprep.subr.mxu0 0.0
    %4212 = vmatpush1.msra.mxu0 0.0
    %4213 = vmatprep.subr.mxu0 0.0
    %4214 = vmatpush1.msra.mxu0 0.0
    %4215 = vmatprep.subr.mxu0 0.0
    %4216 = vmatpush1.msra.mxu0 0.0
    %4217 = vmatprep.subr.mxu0 0.0
    %4218 = vmatpush1.msra.mxu0 0.0
    %4219 = vmatprep.subr.mxu0 0.0
    %4220 = vmatpush1.msra.mxu0 0.0
    %4221 = vmatprep.subr.mxu0 0.0
    %4222 = vmatpush1.msra.mxu0 0.0
    %4223 = vmatprep.subr.mxu0 0.0
    %4224 = vmatpush1.msra.mxu0 0.0
    %4225 = vmatprep.subr.mxu0 0.0
    %4226 = vmatpush1.msra.mxu0 0.0
    %4227 = vmatprep.subr.mxu0 0.0
    %4228 = vmatpush1.msra.mxu0 0.0
    %4229 = vmatprep.subr.mxu0 0.0
    %4230 = vmatpush1.msra.mxu0 0.0
    %4231 = vmatprep.subr.mxu0 0.0
    %4232 = vmatpush1.msra.mxu0 0.0
    %4233 = vmatprep.mubr.f32.mxu0 0.0
    %4234 = vmatmul.mubr.f32.gmra.mrb[0].mxu0 %v4161
    %v4235 = vpop.f32.mrb[0].mxu0
    %v4236 = vadd.f32 %v3264, %v4235
    %v4237 = vpop.f32.mrb[0].mxu0
    %4238 = vmatprep.mubr.f32.mxu0 0.0
    %4239 = vmatmul.mubr.f32.gmra.mrb[0].mxu0 %v4162
    %v4240 = vpop.f32.mrb[0].mxu0
    %v4241 = vadd.f32 %v3264, %v4240
    %v4242 = vpop.f32.mrb[0].mxu0
    %4243 = vmatprep.mubr.f32.mxu0 0.0
    %4244 = vmatmul.mubr.f32.gmra.mrb[0].mxu0 %v4163
    %v4245 = vpop.f32.mrb[0].mxu0
    %v4246 = vadd.f32 %v3264, %v4245
    %v4247 = vpop.f32.mrb[0].mxu0
    %4248 = vmatprep.mubr.f32.mxu0 0.0
    %4249 = vmatmul.mubr.f32.gmra.mrb[0].mxu0 %v4164
    %v4250 = vpop.f32.mrb[0].mxu0
    %v4251 = vadd.f32 %v3264, %v4250
    %v4252 = vpop.f32.mrb[0].mxu0
    %4253 = vmatprep.mubr.f32.mxu0 0.0
    %4254 = vmatmul.mubr.f32.gmra.mrb[0].mxu0 %v4165
    %v4255 = vpop.f32.mrb[0].mxu0
    %v4256 = vadd.f32 %v3264, %v4255
    %v4257 = vpop.f32.mrb[0].mxu0
    %4258 = vmatprep.mubr.f32.mxu0 0.0
    %4259 = vmatmul.mubr.f32.gmra.mrb[0].mxu0 %v4166
    %v4260 = vpop.f32.mrb[0].mxu0
    %v4261 = vadd.f32 %v3264, %v4260
    %v4262 = vpop.f32.mrb[0].mxu0
    %4263 = vmatprep.mubr.f32.mxu0 0.0
    %4264 = vmatmul.mubr.f32.gmra.mrb[0].mxu0 %v4167
    %v4265 = vpop.f32.mrb[0].mxu0
    %v4266 = vadd.f32 %v3264, %v4265
    %v4267 = vpop.f32.mrb[0].mxu0
    %4268 = vmatprep.mubr.f32.mxu0 0.0
    %4269 = vmatmul.mubr.f32.gmra.mrb[0].mxu0 %v4168
    %v4270 = vpop.f32.mrb[0].mxu0
    %v4271 = vadd.f32 %v3264, %v4270
    %v4272 = vpop.f32.mrb[0].mxu0
    %4273 = vdwg.mxu0
    %v4274 = vtanh.pop %v4236
    %v4275 = vtanh.pop %v4241
    %v4276 = vtanh.pop %v4246
    %v4277 = vtanh.pop %v4251
    %v4278 = vtanh.pop %v4256
    %v4279 = vtanh.pop %v4261
    %v4280 = vtanh.pop %v4266
    %v4281 = vtanh.pop %v4271
    %4282 = vst [vmem:[%s11 + $0x38] sm:$0xff] %v4274
    %4283 = vst [vmem:[%s11 + $0xb8] sm:$0xff] %v4275
    %4284 = vst [vmem:[%s11 + $0x138] sm:$0xff] %v4276
    %4285 = vst [vmem:[%s11 + $0x1b8] sm:$0xff] %v4277
    %4286 = vst [vmem:[%s11 + $0x78] sm:$0xff] %v4278
    %4287 = vst [vmem:[%s11 + $0xf8] sm:$0xff] %v4279
    %4288 = vst [vmem:[%s11 + $0x178] sm:$0xff] %v4280
    %4289 = vst [vmem:[%s11 + $0x1f8] sm:$0xff] %v4281
    // Predicated region
    $region66: #{generator_forward.1} parent=1 // pred_check
      _
    $region67: #{generator_forward.1} parent=1 // pred_check_branch
      %4291 = sbr.rel (0) target = $region69
    $region68: #{generator_forward.1} parent=1 // pred_region
      _
    $region69: #{generator_forward.1} parent=1 // pred_fallthru
      _
    // Predicated region
    $region70: #{generator_forward.1} parent=1 // pred_check
      _
    $region71: #{generator_forward.1} parent=1 // pred_check_branch
      %4293 = sbr.rel (0) target = $region73
    $region72: #{generator_forward.1} parent=1 // pred_region
      _
    $region73: #{generator_forward.1} parent=1 // pred_fallthru
      _
    %4294 = vsyncpa [#allocation5], 1
    %4295 = vsyncpa [#allocation7], 1
    %4296 = vsyncpa [#allocation10], 1

</llo_original>
